<compile_context>
chip_gen: v7x
topology: tpu7x:2x2x1
jax: 0.10.0
libtpu: 0.0.40
codegen_flags: <defaults>
</compile_context>

<pallas_src>
import functools

import numpy as np

import jax
import jax.numpy as jnp
from jax import lax
from jax.experimental import pallas as pl
from jax.experimental.pallas import tpu as pltpu

GROUPS = 4
CH = (1, 8, 16, 32, 64)
IN_FEAT = 32      # small frequency axis (reference default 161)
T_FRAMES = 8      # small time axis
BATCH = 2
BN_EPS = 1e-5
LN_EPS = 1e-5


# ----------------------------- the fused kernel -------------------------------

def _unet2_kernel(x_ref, wf1_ref, wf234_ref, eshift_ref, ws_ref,
                  wi1_ref, wh1_ref, wc2_ref, bi1_ref, bh1_ref, bc2_ref,
                  ln_ref, wdec_ref, bdec_ref,
                  out_ref, enc_ref, gi1_ref, gru_ref, *, b, t):
    f32 = jnp.float32
    bf16 = jnp.bfloat16
    d = ws_ref.shape[0]                 # bottleneck width C4*F4 (=128, lane-dense)
    rows = t * b                        # (time, batch) rows, time-major; b = 8-row pad
    rows_pad = rows + b                 # + one zero time frame at the top (causal pad)
    d_enc = enc_ref.shape[1]

    def mm(x, w):
        # bf16 MXU operands, f32 accumulate; elementwise/recurrence math stays f32.
        return jnp.dot(x.astype(bf16), w, preferred_element_type=f32)

    # ---- encoder: 4x [Conv2d((2,3),(1,2),pad=(1,1)) -> causal crop -> BN -> ReLU]
    # Freq-strided conv + zero pad + BN scale are folded into the packed weight;
    # the 2-tap time conv is two sublane-aligned row slices of one fused matmul.
    enc_ref[pl.ds(0, b), :] = jnp.zeros((b, d_enc), f32)   # causal pad rows, zeroed once

    z = mm(x_ref[...], wf1_ref[...])                        # ((T+1)*B, 2*128)
    y = z[0:rows, 0:d_enc] + z[b:rows_pad, d_enc:2 * d_enc] + eshift_ref[0]
    enc_ref[pl.ds(b, rows), :] = jnp.maximum(y, 0.0)

    for l in range(wf234_ref.shape[0]):
        z = mm(enc_ref[...], wf234_ref[l])
        y = z[0:rows, 0:d_enc] + z[b:rows_pad, d_enc:2 * d_enc] + eshift_ref[l + 1]
        y = jnp.maximum(y, 0.0)
        enc_ref[pl.ds(b, rows), :] = y
    e4 = y                                                  # (T*B, D), cols = c*F4 + f

    # skip_connect conv (1,3): pre-load the GRU-output scratch with the skip so the
    # residual add is a per-step aligned accumulate (no long-lived skip tensor).
    gru_ref[...] = mm(e4, ws_ref[...])

    # ---- GGRU: 2 layers of 4 grouped GRUs + LayerNorms (shuffles folded into
    # the packed gate matrices).  Layer-1 input gates are recurrence-free and
    # hoisted into one big matmul; layer-2 gi/gh are fused into one matmul/step.
    gi1_ref[...] = mm(e4, wi1_ref[...]) + bi1_ref[...]      # (T*B, 3D)

    wh1 = wh1_ref[...]
    wc2 = wc2_ref[...]
    bh1 = jnp.broadcast_to(bh1_ref[...], (b, 3 * d))        # hoisted broadcasts
    bc2 = jnp.broadcast_to(bc2_ref[...], (b, 4 * d))
    ln1_g = jnp.broadcast_to(ln_ref[0], (b, d))
    ln1_b = jnp.broadcast_to(ln_ref[1], (b, d))
    ln2_g = jnp.broadcast_to(ln_ref[2], (b, d))
    ln2_b = jnp.broadcast_to(ln_ref[3], (b, d))

    def layer_norm(v, gamma, beta):
        mu = jnp.mean(v, axis=-1, keepdims=True)
        c = v - mu
        var = jnp.mean(c * c, axis=-1, keepdims=True)
        return c * lax.rsqrt(var + LN_EPS) * gamma + beta

    h1 = jnp.zeros((b, d), f32)
    h2 = jnp.zeros((b, d), f32)
    for step in range(t):               # fully unrolled; hidden states stay in vregs
        # layer 1: only the hidden-gate matmul sits on the recurrence path
        gi1 = gi1_ref[pl.ds(step * b, b), :]
        gh1 = mm(h1, wh1) + bh1
        r1 = jax.nn.sigmoid(gi1[:, 0:d] + gh1[:, 0:d])
        z1 = jax.nn.sigmoid(gi1[:, d:2 * d] + gh1[:, d:2 * d])
        n1 = jnp.tanh(gi1[:, 2 * d:3 * d] + r1 * gh1[:, 2 * d:3 * d])
        h1 = (1.0 - z1) * n1 + z1 * h1
        # layer 2: single fused matmul on the lane-concat [LN1(h1), h2]
        # col blocks of g2 = [r-sum, z-sum, gi_n, gh_n]
        x2 = layer_norm(h1, ln1_g, ln1_b)
        g2 = mm(jnp.concatenate([x2, h2], axis=-1), wc2) + bc2      # (B, 4D)
        r2 = jax.nn.sigmoid(g2[:, 0:d])
        z2 = jax.nn.sigmoid(g2[:, d:2 * d])
        n2 = jnp.tanh(g2[:, 2 * d:3 * d] + r2 * g2[:, 3 * d:4 * d])
        h2 = (1.0 - z2) * n2 + z2 * h2
        # LN2 + skip residual, written into aligned 8-row scratch slices
        sl = pl.ds(step * b, b)
        gru_ref[sl, :] = gru_ref[sl, :] + layer_norm(h2, ln2_g, ln2_b)

    # ---- decoder: ConvTranspose2d(C4, 1, (1,3), stride=(1,2)) + sigmoid, [:-1]
    # crop (dilation + crop folded into the packed weight, zero-padded to 128
    # output lanes -> full-lane final store; the wrapper crops real columns).
    out_ref[...] = jax.nn.sigmoid(mm(gru_ref[...], wdec_ref[...])
                                  + bdec_ref[...]).astype(out_ref.dtype)


def unet2_forward(x, pp, *, fdec):
    """x: (B, 1, T, F) NCHW.  Returns (B, 1, T, fdec) sigmoid mask."""
    b, _, t, f = x.shape
    b_pad = ((b + 7) // 8) * 8          # one f32 sublane group per time frame
    d = pp["ws"].shape[0]
    d_enc = pp["wf1"].shape[1] // 2
    f_out = pp["wdec"].shape[1]
    # tiny input prep: time-major rows, batch zero-padded to b_pad, plus one
    # zero (causal-pad) time frame on top.
    x_tb = jnp.transpose(x[:, 0, :, :], (1, 0, 2))                   # (T, B, F)
    x_tb = jnp.pad(x_tb, ((1, 0), (0, b_pad - b), (0, 0)))
    x_prep = x_tb.reshape((t + 1) * b_pad, f)
    kern = functools.partial(_unet2_kernel, b=b_pad, t=t)
    out2d = pl.pallas_call(
        kern,
        out_shape=jax.ShapeDtypeStruct((t * b_pad, f_out), jnp.float32),
        scratch_shapes=[
            pltpu.VMEM(((t + 1) * b_pad, d_enc), jnp.float32),   # encoder activations
            pltpu.VMEM((t * b_pad, 3 * d), jnp.float32),         # hoisted layer-1 gates
            pltpu.VMEM((t * b_pad, d), jnp.float32),             # GRU out + skip
        ],
    )(x_prep, pp["wf1"], pp["wf234"], pp["eshift"], pp["ws"],
      pp["wi1"], pp["wh1"], pp["wc2"], pp["bi1"], pp["bh1"], pp["bc2"],
      pp["ln"], pp["wdec"], pp["bdec"])
    out = out2d.reshape(t, b_pad, f_out)[:, :b, :fdec]
    return jnp.transpose(out, (1, 0, 2))[:, None, :, :]             # NCHW (B,1,T,fdec)


# ----------------------------- parameters -------------------------------------

def init_params(key):
    keys = iter(jax.random.split(key, 128))

    def nrm(shape, scale=0.1):
        return scale * jax.random.normal(next(keys), shape, dtype=jnp.float32)

    enc = []
    f = IN_FEAT
    for i in range(len(CH) - 1):
        cin, cout = CH[i], CH[i + 1]
        w = nrm((cout, cin, 2, 3))
        bias = nrm((cout,))
        gamma = 1.0 + nrm((cout,))
        beta = nrm((cout,))
        mean = nrm((cout,))
        var = 1.0 + jnp.abs(nrm((cout,)))
        scale = gamma * lax.rsqrt(var + BN_EPS)     # folded inference BatchNorm
        shift = beta - mean * scale
        enc.append((w, bias, scale, shift))
        f = (f + 2 - 3) // 2 + 1

    c = CH[-1]
    d = c * f
    ht = d // GROUPS

    def gru_params():
        return (nrm((3, ht, ht)), nrm((3, ht, ht)),
                nrm((3, 1, ht)), nrm((3, 1, ht)))

    ggru = {
        "gru1": [gru_params() for _ in range(GROUPS)],
        "gru2": [gru_params() for _ in range(GROUPS)],
        "ln1_g": 1.0 + nrm((d,)), "ln1_b": nrm((d,)),
        "ln2_g": 1.0 + nrm((d,)), "ln2_b": nrm((d,)),
    }
    return {
        "enc": enc,
        "skip4_w": nrm((c, c, 1, 3)),
        "ggru": ggru,
        "conv1_t_w": nrm((c, 1, 1, 3)),   # ConvTranspose2d layout (Cin, Cout, kt, kf)
        "conv1_t_b": nrm((1,)),
    }


def pack_params(params):
    """One-time (init, numpy) packing of the module weights into the dense,
    lane-wide matrices the kernel consumes.  Folds: BN scale/bias into the conv
    weights, the stride-2 freq conv + zero padding into dense matrices, the GGRU
    group block structure + stack/cat shuffles into the gate matrices (layer-2
    gi/gh fused into one (2D,4D) matrix), and the ConvTranspose dilation + [:-1]
    crop with zero column padding to 128 lanes.  MXU operands are bf16."""
    f32 = np.float32

    # ---- encoder convs: (Cin*Fin, 2*Cout*Fout), col block 0 = time tap dt=0 ----
    wf_list, shift_list = [], []
    fin = IN_FEAT
    for (w, bias, scale, shift) in params["enc"]:
        w = np.asarray(w); bias = np.asarray(bias)
        scale = np.asarray(scale); shift = np.asarray(shift)
        cout, cin, kt, kf = w.shape
        fout = fin // 2
        wf5 = np.zeros((cin, fin, kt, cout, fout), f32)
        for dt in range(kt):
            for fo in range(fout):
                for df in range(kf):
                    fi = 2 * fo + df - 1          # freq stride 2, zero pad 1
                    if 0 <= fi < fin:
                        wf5[:, fi, dt, :, fo] = (w[:, :, dt, df] * scale[:, None]).T
        wf_list.append(wf5.reshape(cin * fin, kt * cout * fout))
        shift_list.append(np.repeat(scale * bias + shift, fout).reshape(1, cout * fout))
        fin = fout
    f4 = fin
    c4 = np.asarray(params["enc"][-1][0]).shape[0]
    d = c4 * f4
    ht = d // GROUPS

    # ---- skip_connect conv (1,3), no bias, symmetric freq pad (1,1) ----
    # TODO(synk): reference Conv2d((1,3)) has no padding (shrinks F by 2 and would
    # break the residual add); symmetric pad keeps shapes consistent.
    wsk = np.asarray(params["skip4_w"])
    ws4 = np.zeros((c4, f4, c4, f4), f32)
    for fo in range(f4):
        for df in range(3):
            fi = fo + df - 1
            if 0 <= fi < f4:
                ws4[:, fi, :, fo] = wsk[:, :, 0, df].T
    ws = ws4.reshape(d, d)

    gg = params["ggru"]

    # ---- layer-1 grouped GRUs: packed (D, 3D) for x @ W, gate order (r, z, n).
    # Input in chunk layout (g*ht + k); output/hidden in the torch.stack-
    # interleaved layout (k*groups + g) so LN1 / layer-2 chunking need no shuffle.
    wi1 = np.zeros((d, 3 * d), f32); wh1 = np.zeros((d, 3 * d), f32)
    bi1 = np.zeros((3 * d,), f32); bh1 = np.zeros((3 * d,), f32)
    for g, (wi, wh, bi, bh) in enumerate(gg["gru1"]):
        wi = np.asarray(wi); wh = np.asarray(wh)
        bi = np.asarray(bi); bh = np.asarray(bh)
        in_idx = g * ht + np.arange(ht)
        out_idx = np.arange(ht) * GROUPS + g
        for gate in range(3):
            cols = gate * d + out_idx
            wi1[np.ix_(in_idx, cols)] = wi[gate]
            wh1[np.ix_(out_idx, cols)] = wh[gate]
            bi1[cols] = bi[gate, 0]
            bh1[cols] = bh[gate, 0]

    # ---- layer-2 grouped GRUs: gi/gh fused into one (2D, 4D) matmul on the
    # lane-concat [LN1(h1), h2]; col blocks = [r-sum, z-sum, gi_n, gh_n]
    # (the n gate needs r * gh_n, so gh_n stays a separate column block).
    wc2 = np.zeros((2 * d, 4 * d), f32)
    bc2 = np.zeros((4 * d,), f32)
    for g, (wi, wh, bi, bh) in enumerate(gg["gru2"]):
        wi = np.asarray(wi); wh = np.asarray(wh)
        bi = np.asarray(bi); bh = np.asarray(bh)
        idx = g * ht + np.arange(ht)            # torch.cat layout: in == out
        for gate in (0, 1):                     # r, z: input + hidden fully fused
            cols = gate * d + idx
            wc2[np.ix_(idx, cols)] = wi[gate]
            wc2[np.ix_(d + idx, cols)] = wh[gate]
            bc2[cols] = bi[gate, 0] + bh[gate, 0]
        wc2[np.ix_(idx, 2 * d + idx)] = wi[2]       # gi_n (from x2)
        wc2[np.ix_(d + idx, 3 * d + idx)] = wh[2]   # gh_n (from h2)
        bc2[2 * d + idx] = bi[2, 0]
        bc2[3 * d + idx] = bh[2, 0]

    # ---- ConvTranspose2d(C4, 1, (1,3), stride=(1,2)) + [..., :-1] crop,
    # zero-padded to a full 128-lane output block (wrapper crops real cols) ----
    wt = np.asarray(params["conv1_t_w"])        # (C4, 1, 1, 3)
    bt = float(np.asarray(params["conv1_t_b"])[0])
    fdec = 2 * f4
    f_out = max(128, -(-fdec // 128) * 128)
    wd = np.zeros((c4, f4, f_out), f32)
    for fi in range(f4):
        for fo in range(fdec):
            k = fo - 2 * fi
            if 0 <= k < 3:
                wd[:, fi, fo] = wt[:, 0, 0, k]

    jbf = lambda a: jnp.asarray(a, jnp.bfloat16)   # MXU operands
    jf = lambda a: jnp.asarray(a, jnp.float32)     # elementwise / bias params
    packed = {
        "wf1": jbf(wf_list[0]),                          # (32, 256)
        "wf234": jbf(np.stack(wf_list[1:], axis=0)),     # (3, 128, 256)
        "eshift": jf(np.stack(shift_list, axis=0)),      # (4, 1, 128)
        "ws": jbf(ws),                                   # (128, 128)
        "wi1": jbf(wi1), "wh1": jbf(wh1),                # (128, 384)
        "wc2": jbf(wc2),                                 # (256, 512)
        "bi1": jf(bi1.reshape(1, 3 * d)),
        "bh1": jf(bh1.reshape(1, 3 * d)),
        "bc2": jf(bc2.reshape(1, 4 * d)),
        "ln": jf(np.stack([np.asarray(gg["ln1_g"]).reshape(1, d),
                           np.asarray(gg["ln1_b"]).reshape(1, d),
                           np.asarray(gg["ln2_g"]).reshape(1, d),
                           np.asarray(gg["ln2_b"]).reshape(1, d)], axis=0)),
        "wdec": jbf(wd.reshape(d, f_out)),               # (128, 128) lane-dense
        "bdec": jf(np.full((1, f_out), bt, f32)),
    }
    return packed, fdec


# --------------------------------- main ----------------------------------------

if __name__ == "__main__":
    key = jax.random.PRNGKey(0)
    k_x, k_p = jax.random.split(key)
    x = jax.random.normal(k_x, (BATCH, CH[0], T_FRAMES, IN_FEAT), dtype=jnp.float32)

    params = init_params(k_p)
    packed, fdec = pack_params(params)

    fwd = jax.jit(functools.partial(unet2_forward, fdec=fdec))
    out = jax.block_until_ready(fwd(x, packed))

    assert out.shape == (BATCH, 1, T_FRAMES, fdec)
    assert bool(jnp.all(jnp.isfinite(out)))
    assert bool(jnp.all((out >= 0.0) & (out <= 1.0)))   # sigmoid mask
    print("KERNEL_OK")
</pallas_src>

<mosaic_0001>
module attributes {stable_mosaic.version = 11 : i64} {
  func.func @_unet2_kernel(%arg0: memref<72x32xf32, #tpu.memory_space<vmem>>, %arg1: memref<32x256xbf16, #tpu.memory_space<vmem>>, %arg2: memref<3x128x256xbf16, #tpu.memory_space<vmem>>, %arg3: memref<4x1x128xf32, #tpu.memory_space<vmem>>, %arg4: memref<128x128xbf16, #tpu.memory_space<vmem>>, %arg5: memref<128x384xbf16, #tpu.memory_space<vmem>>, %arg6: memref<128x384xbf16, #tpu.memory_space<vmem>>, %arg7: memref<256x512xbf16, #tpu.memory_space<vmem>>, %arg8: memref<1x384xf32, #tpu.memory_space<vmem>>, %arg9: memref<1x384xf32, #tpu.memory_space<vmem>>, %arg10: memref<1x512xf32, #tpu.memory_space<vmem>>, %arg11: memref<4x1x128xf32, #tpu.memory_space<vmem>>, %arg12: memref<128x128xbf16, #tpu.memory_space<vmem>>, %arg13: memref<1x128xf32, #tpu.memory_space<vmem>>, %arg14: memref<64x128xf32, #tpu.memory_space<vmem>>, %arg15: memref<72x128xf32, #tpu.memory_space<vmem>>, %arg16: memref<64x384xf32, #tpu.memory_space<vmem>>, %arg17: memref<64x128xf32, #tpu.memory_space<vmem>>) attributes {dimension_semantics = [], scalar_prefetch = 0 : i64, scratch_operands = 3 : i64, tpu.core_type = #tpu.core_type<tc>} {
    %cst = arith.constant 0.000000e+00 : f32
    %0 = vector.broadcast %cst : f32 to vector<8x128xf32>
    %c0 = arith.constant 0 : index
    %c0_0 = arith.constant 0 : index
    %1 = vector.load %arg15[%c0, %c0_0] : memref<72x128xf32, #tpu.memory_space<vmem>>, vector<8x128xf32>
    tpu.vector_store %arg15[%c0, %c0_0], %0 {strides = array<i32>} : memref<72x128xf32, #tpu.memory_space<vmem>>, vector<8x128xf32>,
    %c0_1 = arith.constant 0 : index
    %c0_2 = arith.constant 0 : index
    %2 = vector.load %arg0[%c0_1, %c0_2] : memref<72x32xf32, #tpu.memory_space<vmem>>, vector<72x32xf32>
    %c0_3 = arith.constant 0 : index
    %c0_4 = arith.constant 0 : index
    %3 = vector.load %arg1[%c0_3, %c0_4] : memref<32x256xbf16, #tpu.memory_space<vmem>>, vector<32x256xbf16>
    %4 = arith.truncf %2 : vector<72x32xf32> to vector<72x32xbf16>
    %cst_5 = arith.constant dense<0.000000e+00> : vector<72x256xf32>
    %5 = tpu.matmul %4, %3, %cst_5 {dimension_numbers = #tpu.dot_dimension_numbers<[1], [0], [0], [1], [0, 0, 1, 1], [], []>} : vector<72x32xbf16>, vector<32x256xbf16>, vector<72x256xf32> -> vector<72x256xf32>
    %6 = vector.extract_strided_slice %5 {offsets = [0, 0], sizes = [64, 128], strides = [1, 1]} : vector<72x256xf32> to vector<64x128xf32>
    %7 = vector.extract_strided_slice %5 {offsets = [8, 128], sizes = [64, 128], strides = [1, 1]} : vector<72x256xf32> to vector<64x128xf32>
    %8 = arith.addf %6, %7 : vector<64x128xf32>
    %c0_6 = arith.constant 0 : index
    %c0_7 = arith.constant 0 : index
    %c0_8 = arith.constant 0 : index
    %9 = vector.load %arg3[%c0_6, %c0_7, %c0_8] : memref<4x1x128xf32, #tpu.memory_space<vmem>>, vector<1x1x128xf32>
    %10 = vector.shape_cast %9 : vector<1x1x128xf32> to vector<1x128xf32>
    %11 = vector.broadcast %10 : vector<1x128xf32> to vector<64x128xf32>
    %12 = arith.addf %8, %11 : vector<64x128xf32>
    %cst_9 = arith.constant 0.000000e+00 : f32
    %13 = vector.broadcast %cst_9 : f32 to vector<64x128xf32>
    %14 = arith.maximumf %12, %13 : vector<64x128xf32>
    %c8 = arith.constant 8 : index
    %c0_10 = arith.constant 0 : index
    %15 = vector.load %arg15[%c8, %c0_10] : memref<72x128xf32, #tpu.memory_space<vmem>>, vector<64x128xf32>
    tpu.vector_store %arg15[%c8, %c0_10], %14 {strides = array<i32>} : memref<72x128xf32, #tpu.memory_space<vmem>>, vector<64x128xf32>,
    %c0_11 = arith.constant 0 : index
    %c0_12 = arith.constant 0 : index
    %16 = vector.load %arg15[%c0_11, %c0_12] : memref<72x128xf32, #tpu.memory_space<vmem>>, vector<72x128xf32>
    %c0_13 = arith.constant 0 : index
    %c0_14 = arith.constant 0 : index
    %c0_15 = arith.constant 0 : index
    %17 = vector.load %arg2[%c0_13, %c0_14, %c0_15] : memref<3x128x256xbf16, #tpu.memory_space<vmem>>, vector<1x128x256xbf16>
    %18 = vector.shape_cast %17 : vector<1x128x256xbf16> to vector<128x256xbf16>
    %19 = arith.truncf %16 : vector<72x128xf32> to vector<72x128xbf16>
    %cst_16 = arith.constant dense<0.000000e+00> : vector<72x256xf32>
    %20 = tpu.matmul %19, %18, %cst_16 {dimension_numbers = #tpu.dot_dimension_numbers<[1], [0], [0], [1], [0, 0, 1, 1], [], []>} : vector<72x128xbf16>, vector<128x256xbf16>, vector<72x256xf32> -> vector<72x256xf32>
    %21 = vector.extract_strided_slice %20 {offsets = [0, 0], sizes = [64, 128], strides = [1, 1]} : vector<72x256xf32> to vector<64x128xf32>
    %22 = vector.extract_strided_slice %20 {offsets = [8, 128], sizes = [64, 128], strides = [1, 1]} : vector<72x256xf32> to vector<64x128xf32>
    %23 = arith.addf %21, %22 : vector<64x128xf32>
    %c1 = arith.constant 1 : index
    %c0_17 = arith.constant 0 : index
    %c0_18 = arith.constant 0 : index
    %24 = vector.load %arg3[%c1, %c0_17, %c0_18] : memref<4x1x128xf32, #tpu.memory_space<vmem>>, vector<1x1x128xf32>
    %25 = vector.shape_cast %24 : vector<1x1x128xf32> to vector<1x128xf32>
    %26 = vector.broadcast %25 : vector<1x128xf32> to vector<64x128xf32>
    %27 = arith.addf %23, %26 : vector<64x128xf32>
    %cst_19 = arith.constant 0.000000e+00 : f32
    %28 = vector.broadcast %cst_19 : f32 to vector<64x128xf32>
    %29 = arith.maximumf %27, %28 : vector<64x128xf32>
    %c8_20 = arith.constant 8 : index
    %c0_21 = arith.constant 0 : index
    %30 = vector.load %arg15[%c8_20, %c0_21] : memref<72x128xf32, #tpu.memory_space<vmem>>, vector<64x128xf32>
    tpu.vector_store %arg15[%c8_20, %c0_21], %29 {strides = array<i32>} : memref<72x128xf32, #tpu.memory_space<vmem>>, vector<64x128xf32>,
    %c0_22 = arith.constant 0 : index
    %c0_23 = arith.constant 0 : index
    %31 = vector.load %arg15[%c0_22, %c0_23] : memref<72x128xf32, #tpu.memory_space<vmem>>, vector<72x128xf32>
    %c1_24 = arith.constant 1 : index
    %c0_25 = arith.constant 0 : index
    %c0_26 = arith.constant 0 : index
    %32 = vector.load %arg2[%c1_24, %c0_25, %c0_26] : memref<3x128x256xbf16, #tpu.memory_space<vmem>>, vector<1x128x256xbf16>
    %33 = vector.shape_cast %32 : vector<1x128x256xbf16> to vector<128x256xbf16>
    %34 = arith.truncf %31 : vector<72x128xf32> to vector<72x128xbf16>
    %cst_27 = arith.constant dense<0.000000e+00> : vector<72x256xf32>
    %35 = tpu.matmul %34, %33, %cst_27 {dimension_numbers = #tpu.dot_dimension_numbers<[1], [0], [0], [1], [0, 0, 1, 1], [], []>} : vector<72x128xbf16>, vector<128x256xbf16>, vector<72x256xf32> -> vector<72x256xf32>
    %36 = vector.extract_strided_slice %35 {offsets = [0, 0], sizes = [64, 128], strides = [1, 1]} : vector<72x256xf32> to vector<64x128xf32>
    %37 = vector.extract_strided_slice %35 {offsets = [8, 128], sizes = [64, 128], strides = [1, 1]} : vector<72x256xf32> to vector<64x128xf32>
    %38 = arith.addf %36, %37 : vector<64x128xf32>
    %c2 = arith.constant 2 : index
    %c0_28 = arith.constant 0 : index
    %c0_29 = arith.constant 0 : index
    %39 = vector.load %arg3[%c2, %c0_28, %c0_29] : memref<4x1x128xf32, #tpu.memory_space<vmem>>, vector<1x1x128xf32>
    %40 = vector.shape_cast %39 : vector<1x1x128xf32> to vector<1x128xf32>
    %41 = vector.broadcast %40 : vector<1x128xf32> to vector<64x128xf32>
    %42 = arith.addf %38, %41 : vector<64x128xf32>
    %cst_30 = arith.constant 0.000000e+00 : f32
    %43 = vector.broadcast %cst_30 : f32 to vector<64x128xf32>
    %44 = arith.maximumf %42, %43 : vector<64x128xf32>
    %c8_31 = arith.constant 8 : index
    %c0_32 = arith.constant 0 : index
    %45 = vector.load %arg15[%c8_31, %c0_32] : memref<72x128xf32, #tpu.memory_space<vmem>>, vector<64x128xf32>
    tpu.vector_store %arg15[%c8_31, %c0_32], %44 {strides = array<i32>} : memref<72x128xf32, #tpu.memory_space<vmem>>, vector<64x128xf32>,
    %c0_33 = arith.constant 0 : index
    %c0_34 = arith.constant 0 : index
    %46 = vector.load %arg15[%c0_33, %c0_34] : memref<72x128xf32, #tpu.memory_space<vmem>>, vector<72x128xf32>
    %c2_35 = arith.constant 2 : index
    %c0_36 = arith.constant 0 : index
    %c0_37 = arith.constant 0 : index
    %47 = vector.load %arg2[%c2_35, %c0_36, %c0_37] : memref<3x128x256xbf16, #tpu.memory_space<vmem>>, vector<1x128x256xbf16>
    %48 = vector.shape_cast %47 : vector<1x128x256xbf16> to vector<128x256xbf16>
    %49 = arith.truncf %46 : vector<72x128xf32> to vector<72x128xbf16>
    %cst_38 = arith.constant dense<0.000000e+00> : vector<72x256xf32>
    %50 = tpu.matmul %49, %48, %cst_38 {dimension_numbers = #tpu.dot_dimension_numbers<[1], [0], [0], [1], [0, 0, 1, 1], [], []>} : vector<72x128xbf16>, vector<128x256xbf16>, vector<72x256xf32> -> vector<72x256xf32>
    %51 = vector.extract_strided_slice %50 {offsets = [0, 0], sizes = [64, 128], strides = [1, 1]} : vector<72x256xf32> to vector<64x128xf32>
    %52 = vector.extract_strided_slice %50 {offsets = [8, 128], sizes = [64, 128], strides = [1, 1]} : vector<72x256xf32> to vector<64x128xf32>
    %53 = arith.addf %51, %52 : vector<64x128xf32>
    %c3 = arith.constant 3 : index
    %c0_39 = arith.constant 0 : index
    %c0_40 = arith.constant 0 : index
    %54 = vector.load %arg3[%c3, %c0_39, %c0_40] : memref<4x1x128xf32, #tpu.memory_space<vmem>>, vector<1x1x128xf32>
    %55 = vector.shape_cast %54 : vector<1x1x128xf32> to vector<1x128xf32>
    %56 = vector.broadcast %55 : vector<1x128xf32> to vector<64x128xf32>
    %57 = arith.addf %53, %56 : vector<64x128xf32>
    %cst_41 = arith.constant 0.000000e+00 : f32
    %58 = vector.broadcast %cst_41 : f32 to vector<64x128xf32>
    %59 = arith.maximumf %57, %58 : vector<64x128xf32>
    %c8_42 = arith.constant 8 : index
    %c0_43 = arith.constant 0 : index
    %60 = vector.load %arg15[%c8_42, %c0_43] : memref<72x128xf32, #tpu.memory_space<vmem>>, vector<64x128xf32>
    tpu.vector_store %arg15[%c8_42, %c0_43], %59 {strides = array<i32>} : memref<72x128xf32, #tpu.memory_space<vmem>>, vector<64x128xf32>,
    %c0_44 = arith.constant 0 : index
    %c0_45 = arith.constant 0 : index
    %61 = vector.load %arg4[%c0_44, %c0_45] : memref<128x128xbf16, #tpu.memory_space<vmem>>, vector<128x128xbf16>
    %62 = arith.truncf %59 : vector<64x128xf32> to vector<64x128xbf16>
    %cst_46 = arith.constant dense<0.000000e+00> : vector<64x128xf32>
    %63 = tpu.matmul %62, %61, %cst_46 {dimension_numbers = #tpu.dot_dimension_numbers<[1], [0], [0], [1], [0, 0, 1, 1], [], []>} : vector<64x128xbf16>, vector<128x128xbf16>, vector<64x128xf32> -> vector<64x128xf32>
    %c0_47 = arith.constant 0 : index
    %c0_48 = arith.constant 0 : index
    %64 = vector.load %arg17[%c0_47, %c0_48] : memref<64x128xf32, #tpu.memory_space<vmem>>, vector<64x128xf32>
    tpu.vector_store %arg17[%c0_47, %c0_48], %63 {strides = array<i32>} : memref<64x128xf32, #tpu.memory_space<vmem>>, vector<64x128xf32>,
    %c0_49 = arith.constant 0 : index
    %c0_50 = arith.constant 0 : index
    %65 = vector.load %arg5[%c0_49, %c0_50] : memref<128x384xbf16, #tpu.memory_space<vmem>>, vector<128x384xbf16>
    %66 = arith.truncf %59 : vector<64x128xf32> to vector<64x128xbf16>
    %cst_51 = arith.constant dense<0.000000e+00> : vector<64x384xf32>
    %67 = tpu.matmul %66, %65, %cst_51 {dimension_numbers = #tpu.dot_dimension_numbers<[1], [0], [0], [1], [0, 0, 1, 1], [], []>} : vector<64x128xbf16>, vector<128x384xbf16>, vector<64x384xf32> -> vector<64x384xf32>
    %c0_52 = arith.constant 0 : index
    %c0_53 = arith.constant 0 : index
    %68 = vector.load %arg8[%c0_52, %c0_53] : memref<1x384xf32, #tpu.memory_space<vmem>>, vector<1x384xf32>
    %69 = vector.broadcast %68 : vector<1x384xf32> to vector<64x384xf32>
    %70 = arith.addf %67, %69 : vector<64x384xf32>
    %c0_54 = arith.constant 0 : index
    %c0_55 = arith.constant 0 : index
    %71 = vector.load %arg16[%c0_54, %c0_55] : memref<64x384xf32, #tpu.memory_space<vmem>>, vector<64x384xf32>
    tpu.vector_store %arg16[%c0_54, %c0_55], %70 {strides = array<i32>} : memref<64x384xf32, #tpu.memory_space<vmem>>, vector<64x384xf32>,
    %c0_56 = arith.constant 0 : index
    %c0_57 = arith.constant 0 : index
    %72 = vector.load %arg6[%c0_56, %c0_57] : memref<128x384xbf16, #tpu.memory_space<vmem>>, vector<128x384xbf16>
    %c0_58 = arith.constant 0 : index
    %c0_59 = arith.constant 0 : index
    %73 = vector.load %arg7[%c0_58, %c0_59] : memref<256x512xbf16, #tpu.memory_space<vmem>>, vector<256x512xbf16>
    %c0_60 = arith.constant 0 : index
    %c0_61 = arith.constant 0 : index
    %74 = vector.load %arg9[%c0_60, %c0_61] : memref<1x384xf32, #tpu.memory_space<vmem>>, vector<1x384xf32>
    %75 = vector.shape_cast %74 : vector<1x384xf32> to vector<1x384xf32>
    %76 = vector.broadcast %75 : vector<1x384xf32> to vector<8x384xf32>
    %c0_62 = arith.constant 0 : index
    %c0_63 = arith.constant 0 : index
    %77 = vector.load %arg10[%c0_62, %c0_63] : memref<1x512xf32, #tpu.memory_space<vmem>>, vector<1x512xf32>
    %78 = vector.shape_cast %77 : vector<1x512xf32> to vector<1x512xf32>
    %79 = vector.broadcast %78 : vector<1x512xf32> to vector<8x512xf32>
    %c0_64 = arith.constant 0 : index
    %c0_65 = arith.constant 0 : index
    %c0_66 = arith.constant 0 : index
    %80 = vector.load %arg11[%c0_64, %c0_65, %c0_66] : memref<4x1x128xf32, #tpu.memory_space<vmem>>, vector<1x1x128xf32>
    %81 = vector.shape_cast %80 : vector<1x1x128xf32> to vector<1x128xf32>
    %82 = vector.shape_cast %81 : vector<1x128xf32> to vector<1x128xf32>
    %83 = vector.broadcast %82 : vector<1x128xf32> to vector<8x128xf32>
    %c1_67 = arith.constant 1 : index
    %c0_68 = arith.constant 0 : index
    %c0_69 = arith.constant 0 : index
    %84 = vector.load %arg11[%c1_67, %c0_68, %c0_69] : memref<4x1x128xf32, #tpu.memory_space<vmem>>, vector<1x1x128xf32>
    %85 = vector.shape_cast %84 : vector<1x1x128xf32> to vector<1x128xf32>
    %86 = vector.shape_cast %85 : vector<1x128xf32> to vector<1x128xf32>
    %87 = vector.broadcast %86 : vector<1x128xf32> to vector<8x128xf32>
    %c2_70 = arith.constant 2 : index
    %c0_71 = arith.constant 0 : index
    %c0_72 = arith.constant 0 : index
    %88 = vector.load %arg11[%c2_70, %c0_71, %c0_72] : memref<4x1x128xf32, #tpu.memory_space<vmem>>, vector<1x1x128xf32>
    %89 = vector.shape_cast %88 : vector<1x1x128xf32> to vector<1x128xf32>
    %90 = vector.shape_cast %89 : vector<1x128xf32> to vector<1x128xf32>
    %91 = vector.broadcast %90 : vector<1x128xf32> to vector<8x128xf32>
    %c3_73 = arith.constant 3 : index
    %c0_74 = arith.constant 0 : index
    %c0_75 = arith.constant 0 : index
    %92 = vector.load %arg11[%c3_73, %c0_74, %c0_75] : memref<4x1x128xf32, #tpu.memory_space<vmem>>, vector<1x1x128xf32>
    %93 = vector.shape_cast %92 : vector<1x1x128xf32> to vector<1x128xf32>
    %94 = vector.shape_cast %93 : vector<1x128xf32> to vector<1x128xf32>
    %95 = vector.broadcast %94 : vector<1x128xf32> to vector<8x128xf32>
    %cst_76 = arith.constant 0.000000e+00 : f32
    %96 = vector.broadcast %cst_76 : f32 to vector<8x128xf32>
    %cst_77 = arith.constant 0.000000e+00 : f32
    %97 = vector.broadcast %cst_77 : f32 to vector<8x128xf32>
    %c0_78 = arith.constant 0 : index
    %c0_79 = arith.constant 0 : index
    %98 = vector.load %arg16[%c0_78, %c0_79] : memref<64x384xf32, #tpu.memory_space<vmem>>, vector<8x384xf32>
    %99 = arith.truncf %96 : vector<8x128xf32> to vector<8x128xbf16>
    %cst_80 = arith.constant dense<0.000000e+00> : vector<8x384xf32>
    %100 = tpu.matmul %99, %72, %cst_80 {dimension_numbers = #tpu.dot_dimension_numbers<[1], [0], [0], [1], [0, 0, 1, 1], [], []>} : vector<8x128xbf16>, vector<128x384xbf16>, vector<8x384xf32> -> vector<8x384xf32>
    %101 = arith.addf %100, %76 : vector<8x384xf32>
    %102 = vector.extract_strided_slice %98 {offsets = [0, 0], sizes = [8, 128], strides = [1, 1]} : vector<8x384xf32> to vector<8x128xf32>
    %103 = vector.extract_strided_slice %101 {offsets = [0, 0], sizes = [8, 128], strides = [1, 1]} : vector<8x384xf32> to vector<8x128xf32>
    %104 = arith.addf %102, %103 : vector<8x128xf32>
    %105 = arith.negf %104 : vector<8x128xf32>
    %106 = math.exp %105 : vector<8x128xf32>
    %cst_81 = arith.constant 1.000000e+00 : f32
    %107 = vector.broadcast %cst_81 : f32 to vector<8x128xf32>
    %108 = arith.addf %107, %106 : vector<8x128xf32>
    %109 = arith.divf %107, %108 : vector<8x128xf32>
    %110 = vector.extract_strided_slice %98 {offsets = [0, 128], sizes = [8, 128], strides = [1, 1]} : vector<8x384xf32> to vector<8x128xf32>
    %111 = vector.extract_strided_slice %101 {offsets = [0, 128], sizes = [8, 128], strides = [1, 1]} : vector<8x384xf32> to vector<8x128xf32>
    %112 = arith.addf %110, %111 : vector<8x128xf32>
    %113 = arith.negf %112 : vector<8x128xf32>
    %114 = math.exp %113 : vector<8x128xf32>
    %cst_82 = arith.constant 1.000000e+00 : f32
    %115 = vector.broadcast %cst_82 : f32 to vector<8x128xf32>
    %116 = arith.addf %115, %114 : vector<8x128xf32>
    %117 = arith.divf %115, %116 : vector<8x128xf32>
    %118 = vector.extract_strided_slice %98 {offsets = [0, 256], sizes = [8, 128], strides = [1, 1]} : vector<8x384xf32> to vector<8x128xf32>
    %119 = vector.extract_strided_slice %101 {offsets = [0, 256], sizes = [8, 128], strides = [1, 1]} : vector<8x384xf32> to vector<8x128xf32>
    %120 = arith.mulf %109, %119 : vector<8x128xf32>
    %121 = arith.addf %118, %120 : vector<8x128xf32>
    %122 = math.tanh %121 : vector<8x128xf32>
    %cst_83 = arith.constant 1.000000e+00 : f32
    %123 = vector.broadcast %cst_83 : f32 to vector<8x128xf32>
    %124 = arith.subf %123, %117 : vector<8x128xf32>
    %125 = arith.mulf %124, %122 : vector<8x128xf32>
    %126 = arith.mulf %117, %96 : vector<8x128xf32>
    %127 = arith.addf %125, %126 : vector<8x128xf32>
    %cst_84 = arith.constant dense<0.000000e+00> : vector<8xf32>
    %128 = vector.multi_reduction <add>, %127, %cst_84 [1] : vector<8x128xf32> to vector<8xf32>
    %129 = vector.shape_cast %128 : vector<8xf32> to vector<8x1xf32>
    %cst_85 = arith.constant 1.280000e+02 : f32
    %130 = vector.broadcast %cst_85 : f32 to vector<8x1xf32>
    %131 = arith.divf %129, %130 : vector<8x1xf32>
    %132 = vector.broadcast %131 : vector<8x1xf32> to vector<8x128xf32>
    %133 = arith.subf %127, %132 : vector<8x128xf32>
    %134 = arith.mulf %133, %133 : vector<8x128xf32>
    %cst_86 = arith.constant dense<0.000000e+00> : vector<8xf32>
    %135 = vector.multi_reduction <add>, %134, %cst_86 [1] : vector<8x128xf32> to vector<8xf32>
    %136 = vector.shape_cast %135 : vector<8xf32> to vector<8x1xf32>
    %cst_87 = arith.constant 1.280000e+02 : f32
    %137 = vector.broadcast %cst_87 : f32 to vector<8x1xf32>
    %138 = arith.divf %136, %137 : vector<8x1xf32>
    %cst_88 = arith.constant 9.99999974E-6 : f32
    %139 = vector.broadcast %cst_88 : f32 to vector<8x1xf32>
    %140 = arith.addf %138, %139 : vector<8x1xf32>
    %141 = math.rsqrt %140 : vector<8x1xf32>
    %142 = vector.broadcast %141 : vector<8x1xf32> to vector<8x128xf32>
    %143 = arith.mulf %133, %142 : vector<8x128xf32>
    %144 = arith.mulf %143, %83 : vector<8x128xf32>
    %145 = arith.addf %144, %87 : vector<8x128xf32>
    %146 = tpu.concatenate %145, %97 in 1 : vector<8x128xf32>, vector<8x128xf32> -> vector<8x256xf32>
    %147 = arith.truncf %146 : vector<8x256xf32> to vector<8x256xbf16>
    %cst_89 = arith.constant dense<0.000000e+00> : vector<8x512xf32>
    %148 = tpu.matmul %147, %73, %cst_89 {dimension_numbers = #tpu.dot_dimension_numbers<[1], [0], [0], [1], [0, 0, 1, 1], [], []>} : vector<8x256xbf16>, vector<256x512xbf16>, vector<8x512xf32> -> vector<8x512xf32>
    %149 = arith.addf %148, %79 : vector<8x512xf32>
    %150 = vector.extract_strided_slice %149 {offsets = [0, 0], sizes = [8, 128], strides = [1, 1]} : vector<8x512xf32> to vector<8x128xf32>
    %151 = arith.negf %150 : vector<8x128xf32>
    %152 = math.exp %151 : vector<8x128xf32>
    %cst_90 = arith.constant 1.000000e+00 : f32
    %153 = vector.broadcast %cst_90 : f32 to vector<8x128xf32>
    %154 = arith.addf %153, %152 : vector<8x128xf32>
    %155 = arith.divf %153, %154 : vector<8x128xf32>
    %156 = vector.extract_strided_slice %149 {offsets = [0, 128], sizes = [8, 128], strides = [1, 1]} : vector<8x512xf32> to vector<8x128xf32>
    %157 = arith.negf %156 : vector<8x128xf32>
    %158 = math.exp %157 : vector<8x128xf32>
    %cst_91 = arith.constant 1.000000e+00 : f32
    %159 = vector.broadcast %cst_91 : f32 to vector<8x128xf32>
    %160 = arith.addf %159, %158 : vector<8x128xf32>
    %161 = arith.divf %159, %160 : vector<8x128xf32>
    %162 = vector.extract_strided_slice %149 {offsets = [0, 256], sizes = [8, 128], strides = [1, 1]} : vector<8x512xf32> to vector<8x128xf32>
    %163 = vector.extract_strided_slice %149 {offsets = [0, 384], sizes = [8, 128], strides = [1, 1]} : vector<8x512xf32> to vector<8x128xf32>
    %164 = arith.mulf %155, %163 : vector<8x128xf32>
    %165 = arith.addf %162, %164 : vector<8x128xf32>
    %166 = math.tanh %165 : vector<8x128xf32>
    %cst_92 = arith.constant 1.000000e+00 : f32
    %167 = vector.broadcast %cst_92 : f32 to vector<8x128xf32>
    %168 = arith.subf %167, %161 : vector<8x128xf32>
    %169 = arith.mulf %168, %166 : vector<8x128xf32>
    %170 = arith.mulf %161, %97 : vector<8x128xf32>
    %171 = arith.addf %169, %170 : vector<8x128xf32>
    %c0_93 = arith.constant 0 : index
    %c0_94 = arith.constant 0 : index
    %172 = vector.load %arg17[%c0_93, %c0_94] : memref<64x128xf32, #tpu.memory_space<vmem>>, vector<8x128xf32>
    %cst_95 = arith.constant dense<0.000000e+00> : vector<8xf32>
    %173 = vector.multi_reduction <add>, %171, %cst_95 [1] : vector<8x128xf32> to vector<8xf32>
    %174 = vector.shape_cast %173 : vector<8xf32> to vector<8x1xf32>
    %cst_96 = arith.constant 1.280000e+02 : f32
    %175 = vector.broadcast %cst_96 : f32 to vector<8x1xf32>
    %176 = arith.divf %174, %175 : vector<8x1xf32>
    %177 = vector.broadcast %176 : vector<8x1xf32> to vector<8x128xf32>
    %178 = arith.subf %171, %177 : vector<8x128xf32>
    %179 = arith.mulf %178, %178 : vector<8x128xf32>
    %cst_97 = arith.constant dense<0.000000e+00> : vector<8xf32>
    %180 = vector.multi_reduction <add>, %179, %cst_97 [1] : vector<8x128xf32> to vector<8xf32>
    %181 = vector.shape_cast %180 : vector<8xf32> to vector<8x1xf32>
    %cst_98 = arith.constant 1.280000e+02 : f32
    %182 = vector.broadcast %cst_98 : f32 to vector<8x1xf32>
    %183 = arith.divf %181, %182 : vector<8x1xf32>
    %cst_99 = arith.constant 9.99999974E-6 : f32
    %184 = vector.broadcast %cst_99 : f32 to vector<8x1xf32>
    %185 = arith.addf %183, %184 : vector<8x1xf32>
    %186 = math.rsqrt %185 : vector<8x1xf32>
    %187 = vector.broadcast %186 : vector<8x1xf32> to vector<8x128xf32>
    %188 = arith.mulf %178, %187 : vector<8x128xf32>
    %189 = arith.mulf %188, %91 : vector<8x128xf32>
    %190 = arith.addf %189, %95 : vector<8x128xf32>
    %191 = arith.addf %172, %190 : vector<8x128xf32>
    %c0_100 = arith.constant 0 : index
    %c0_101 = arith.constant 0 : index
    %192 = vector.load %arg17[%c0_100, %c0_101] : memref<64x128xf32, #tpu.memory_space<vmem>>, vector<8x128xf32>
    tpu.vector_store %arg17[%c0_100, %c0_101], %191 {strides = array<i32>} : memref<64x128xf32, #tpu.memory_space<vmem>>, vector<8x128xf32>,
    %c8_102 = arith.constant 8 : index
    %c0_103 = arith.constant 0 : index
    %193 = vector.load %arg16[%c8_102, %c0_103] : memref<64x384xf32, #tpu.memory_space<vmem>>, vector<8x384xf32>
    %194 = arith.truncf %127 : vector<8x128xf32> to vector<8x128xbf16>
    %cst_104 = arith.constant dense<0.000000e+00> : vector<8x384xf32>
    %195 = tpu.matmul %194, %72, %cst_104 {dimension_numbers = #tpu.dot_dimension_numbers<[1], [0], [0], [1], [0, 0, 1, 1], [], []>} : vector<8x128xbf16>, vector<128x384xbf16>, vector<8x384xf32> -> vector<8x384xf32>
    %196 = arith.addf %195, %76 : vector<8x384xf32>
    %197 = vector.extract_strided_slice %193 {offsets = [0, 0], sizes = [8, 128], strides = [1, 1]} : vector<8x384xf32> to vector<8x128xf32>
    %198 = vector.extract_strided_slice %196 {offsets = [0, 0], sizes = [8, 128], strides = [1, 1]} : vector<8x384xf32> to vector<8x128xf32>
    %199 = arith.addf %197, %198 : vector<8x128xf32>
    %200 = arith.negf %199 : vector<8x128xf32>
    %201 = math.exp %200 : vector<8x128xf32>
    %cst_105 = arith.constant 1.000000e+00 : f32
    %202 = vector.broadcast %cst_105 : f32 to vector<8x128xf32>
    %203 = arith.addf %202, %201 : vector<8x128xf32>
    %204 = arith.divf %202, %203 : vector<8x128xf32>
    %205 = vector.extract_strided_slice %193 {offsets = [0, 128], sizes = [8, 128], strides = [1, 1]} : vector<8x384xf32> to vector<8x128xf32>
    %206 = vector.extract_strided_slice %196 {offsets = [0, 128], sizes = [8, 128], strides = [1, 1]} : vector<8x384xf32> to vector<8x128xf32>
    %207 = arith.addf %205, %206 : vector<8x128xf32>
    %208 = arith.negf %207 : vector<8x128xf32>
    %209 = math.exp %208 : vector<8x128xf32>
    %cst_106 = arith.constant 1.000000e+00 : f32
    %210 = vector.broadcast %cst_106 : f32 to vector<8x128xf32>
    %211 = arith.addf %210, %209 : vector<8x128xf32>
    %212 = arith.divf %210, %211 : vector<8x128xf32>
    %213 = vector.extract_strided_slice %193 {offsets = [0, 256], sizes = [8, 128], strides = [1, 1]} : vector<8x384xf32> to vector<8x128xf32>
    %214 = vector.extract_strided_slice %196 {offsets = [0, 256], sizes = [8, 128], strides = [1, 1]} : vector<8x384xf32> to vector<8x128xf32>
    %215 = arith.mulf %204, %214 : vector<8x128xf32>
    %216 = arith.addf %213, %215 : vector<8x128xf32>
    %217 = math.tanh %216 : vector<8x128xf32>
    %cst_107 = arith.constant 1.000000e+00 : f32
    %218 = vector.broadcast %cst_107 : f32 to vector<8x128xf32>
    %219 = arith.subf %218, %212 : vector<8x128xf32>
    %220 = arith.mulf %219, %217 : vector<8x128xf32>
    %221 = arith.mulf %212, %127 : vector<8x128xf32>
    %222 = arith.addf %220, %221 : vector<8x128xf32>
    %cst_108 = arith.constant dense<0.000000e+00> : vector<8xf32>
    %223 = vector.multi_reduction <add>, %222, %cst_108 [1] : vector<8x128xf32> to vector<8xf32>
    %224 = vector.shape_cast %223 : vector<8xf32> to vector<8x1xf32>
    %cst_109 = arith.constant 1.280000e+02 : f32
    %225 = vector.broadcast %cst_109 : f32 to vector<8x1xf32>
    %226 = arith.divf %224, %225 : vector<8x1xf32>
    %227 = vector.broadcast %226 : vector<8x1xf32> to vector<8x128xf32>
    %228 = arith.subf %222, %227 : vector<8x128xf32>
    %229 = arith.mulf %228, %228 : vector<8x128xf32>
    %cst_110 = arith.constant dense<0.000000e+00> : vector<8xf32>
    %230 = vector.multi_reduction <add>, %229, %cst_110 [1] : vector<8x128xf32> to vector<8xf32>
    %231 = vector.shape_cast %230 : vector<8xf32> to vector<8x1xf32>
    %cst_111 = arith.constant 1.280000e+02 : f32
    %232 = vector.broadcast %cst_111 : f32 to vector<8x1xf32>
    %233 = arith.divf %231, %232 : vector<8x1xf32>
    %cst_112 = arith.constant 9.99999974E-6 : f32
    %234 = vector.broadcast %cst_112 : f32 to vector<8x1xf32>
    %235 = arith.addf %233, %234 : vector<8x1xf32>
    %236 = math.rsqrt %235 : vector<8x1xf32>
    %237 = vector.broadcast %236 : vector<8x1xf32> to vector<8x128xf32>
    %238 = arith.mulf %228, %237 : vector<8x128xf32>
    %239 = arith.mulf %238, %83 : vector<8x128xf32>
    %240 = arith.addf %239, %87 : vector<8x128xf32>
    %241 = tpu.concatenate %240, %171 in 1 : vector<8x128xf32>, vector<8x128xf32> -> vector<8x256xf32>
    %242 = arith.truncf %241 : vector<8x256xf32> to vector<8x256xbf16>
    %cst_113 = arith.constant dense<0.000000e+00> : vector<8x512xf32>
    %243 = tpu.matmul %242, %73, %cst_113 {dimension_numbers = #tpu.dot_dimension_numbers<[1], [0], [0], [1], [0, 0, 1, 1], [], []>} : vector<8x256xbf16>, vector<256x512xbf16>, vector<8x512xf32> -> vector<8x512xf32>
    %244 = arith.addf %243, %79 : vector<8x512xf32>
    %245 = vector.extract_strided_slice %244 {offsets = [0, 0], sizes = [8, 128], strides = [1, 1]} : vector<8x512xf32> to vector<8x128xf32>
    %246 = arith.negf %245 : vector<8x128xf32>
    %247 = math.exp %246 : vector<8x128xf32>
    %cst_114 = arith.constant 1.000000e+00 : f32
    %248 = vector.broadcast %cst_114 : f32 to vector<8x128xf32>
    %249 = arith.addf %248, %247 : vector<8x128xf32>
    %250 = arith.divf %248, %249 : vector<8x128xf32>
    %251 = vector.extract_strided_slice %244 {offsets = [0, 128], sizes = [8, 128], strides = [1, 1]} : vector<8x512xf32> to vector<8x128xf32>
    %252 = arith.negf %251 : vector<8x128xf32>
    %253 = math.exp %252 : vector<8x128xf32>
    %cst_115 = arith.constant 1.000000e+00 : f32
    %254 = vector.broadcast %cst_115 : f32 to vector<8x128xf32>
    %255 = arith.addf %254, %253 : vector<8x128xf32>
    %256 = arith.divf %254, %255 : vector<8x128xf32>
    %257 = vector.extract_strided_slice %244 {offsets = [0, 256], sizes = [8, 128], strides = [1, 1]} : vector<8x512xf32> to vector<8x128xf32>
    %258 = vector.extract_strided_slice %244 {offsets = [0, 384], sizes = [8, 128], strides = [1, 1]} : vector<8x512xf32> to vector<8x128xf32>
    %259 = arith.mulf %250, %258 : vector<8x128xf32>
    %260 = arith.addf %257, %259 : vector<8x128xf32>
    %261 = math.tanh %260 : vector<8x128xf32>
    %cst_116 = arith.constant 1.000000e+00 : f32
    %262 = vector.broadcast %cst_116 : f32 to vector<8x128xf32>
    %263 = arith.subf %262, %256 : vector<8x128xf32>
    %264 = arith.mulf %263, %261 : vector<8x128xf32>
    %265 = arith.mulf %256, %171 : vector<8x128xf32>
    %266 = arith.addf %264, %265 : vector<8x128xf32>
    %c8_117 = arith.constant 8 : index
    %c0_118 = arith.constant 0 : index
    %267 = vector.load %arg17[%c8_117, %c0_118] : memref<64x128xf32, #tpu.memory_space<vmem>>, vector<8x128xf32>
    %cst_119 = arith.constant dense<0.000000e+00> : vector<8xf32>
    %268 = vector.multi_reduction <add>, %266, %cst_119 [1] : vector<8x128xf32> to vector<8xf32>
    %269 = vector.shape_cast %268 : vector<8xf32> to vector<8x1xf32>
    %cst_120 = arith.constant 1.280000e+02 : f32
    %270 = vector.broadcast %cst_120 : f32 to vector<8x1xf32>
    %271 = arith.divf %269, %270 : vector<8x1xf32>
    %272 = vector.broadcast %271 : vector<8x1xf32> to vector<8x128xf32>
    %273 = arith.subf %266, %272 : vector<8x128xf32>
    %274 = arith.mulf %273, %273 : vector<8x128xf32>
    %cst_121 = arith.constant dense<0.000000e+00> : vector<8xf32>
    %275 = vector.multi_reduction <add>, %274, %cst_121 [1] : vector<8x128xf32> to vector<8xf32>
    %276 = vector.shape_cast %275 : vector<8xf32> to vector<8x1xf32>
    %cst_122 = arith.constant 1.280000e+02 : f32
    %277 = vector.broadcast %cst_122 : f32 to vector<8x1xf32>
    %278 = arith.divf %276, %277 : vector<8x1xf32>
    %cst_123 = arith.constant 9.99999974E-6 : f32
    %279 = vector.broadcast %cst_123 : f32 to vector<8x1xf32>
    %280 = arith.addf %278, %279 : vector<8x1xf32>
    %281 = math.rsqrt %280 : vector<8x1xf32>
    %282 = vector.broadcast %281 : vector<8x1xf32> to vector<8x128xf32>
    %283 = arith.mulf %273, %282 : vector<8x128xf32>
    %284 = arith.mulf %283, %91 : vector<8x128xf32>
    %285 = arith.addf %284, %95 : vector<8x128xf32>
    %286 = arith.addf %267, %285 : vector<8x128xf32>
    %c8_124 = arith.constant 8 : index
    %c0_125 = arith.constant 0 : index
    %287 = vector.load %arg17[%c8_124, %c0_125] : memref<64x128xf32, #tpu.memory_space<vmem>>, vector<8x128xf32>
    tpu.vector_store %arg17[%c8_124, %c0_125], %286 {strides = array<i32>} : memref<64x128xf32, #tpu.memory_space<vmem>>, vector<8x128xf32>,
    %c16 = arith.constant 16 : index
    %c0_126 = arith.constant 0 : index
    %288 = vector.load %arg16[%c16, %c0_126] : memref<64x384xf32, #tpu.memory_space<vmem>>, vector<8x384xf32>
    %289 = arith.truncf %222 : vector<8x128xf32> to vector<8x128xbf16>
    %cst_127 = arith.constant dense<0.000000e+00> : vector<8x384xf32>
    %290 = tpu.matmul %289, %72, %cst_127 {dimension_numbers = #tpu.dot_dimension_numbers<[1], [0], [0], [1], [0, 0, 1, 1], [], []>} : vector<8x128xbf16>, vector<128x384xbf16>, vector<8x384xf32> -> vector<8x384xf32>
    %291 = arith.addf %290, %76 : vector<8x384xf32>
    %292 = vector.extract_strided_slice %288 {offsets = [0, 0], sizes = [8, 128], strides = [1, 1]} : vector<8x384xf32> to vector<8x128xf32>
    %293 = vector.extract_strided_slice %291 {offsets = [0, 0], sizes = [8, 128], strides = [1, 1]} : vector<8x384xf32> to vector<8x128xf32>
    %294 = arith.addf %292, %293 : vector<8x128xf32>
    %295 = arith.negf %294 : vector<8x128xf32>
    %296 = math.exp %295 : vector<8x128xf32>
    %cst_128 = arith.constant 1.000000e+00 : f32
    %297 = vector.broadcast %cst_128 : f32 to vector<8x128xf32>
    %298 = arith.addf %297, %296 : vector<8x128xf32>
    %299 = arith.divf %297, %298 : vector<8x128xf32>
    %300 = vector.extract_strided_slice %288 {offsets = [0, 128], sizes = [8, 128], strides = [1, 1]} : vector<8x384xf32> to vector<8x128xf32>
    %301 = vector.extract_strided_slice %291 {offsets = [0, 128], sizes = [8, 128], strides = [1, 1]} : vector<8x384xf32> to vector<8x128xf32>
    %302 = arith.addf %300, %301 : vector<8x128xf32>
    %303 = arith.negf %302 : vector<8x128xf32>
    %304 = math.exp %303 : vector<8x128xf32>
    %cst_129 = arith.constant 1.000000e+00 : f32
    %305 = vector.broadcast %cst_129 : f32 to vector<8x128xf32>
    %306 = arith.addf %305, %304 : vector<8x128xf32>
    %307 = arith.divf %305, %306 : vector<8x128xf32>
    %308 = vector.extract_strided_slice %288 {offsets = [0, 256], sizes = [8, 128], strides = [1, 1]} : vector<8x384xf32> to vector<8x128xf32>
    %309 = vector.extract_strided_slice %291 {offsets = [0, 256], sizes = [8, 128], strides = [1, 1]} : vector<8x384xf32> to vector<8x128xf32>
    %310 = arith.mulf %299, %309 : vector<8x128xf32>
    %311 = arith.addf %308, %310 : vector<8x128xf32>
    %312 = math.tanh %311 : vector<8x128xf32>
    %cst_130 = arith.constant 1.000000e+00 : f32
    %313 = vector.broadcast %cst_130 : f32 to vector<8x128xf32>
    %314 = arith.subf %313, %307 : vector<8x128xf32>
    %315 = arith.mulf %314, %312 : vector<8x128xf32>
    %316 = arith.mulf %307, %222 : vector<8x128xf32>
    %317 = arith.addf %315, %316 : vector<8x128xf32>
    %cst_131 = arith.constant dense<0.000000e+00> : vector<8xf32>
    %318 = vector.multi_reduction <add>, %317, %cst_131 [1] : vector<8x128xf32> to vector<8xf32>
    %319 = vector.shape_cast %318 : vector<8xf32> to vector<8x1xf32>
    %cst_132 = arith.constant 1.280000e+02 : f32
    %320 = vector.broadcast %cst_132 : f32 to vector<8x1xf32>
    %321 = arith.divf %319, %320 : vector<8x1xf32>
    %322 = vector.broadcast %321 : vector<8x1xf32> to vector<8x128xf32>
    %323 = arith.subf %317, %322 : vector<8x128xf32>
    %324 = arith.mulf %323, %323 : vector<8x128xf32>
    %cst_133 = arith.constant dense<0.000000e+00> : vector<8xf32>
    %325 = vector.multi_reduction <add>, %324, %cst_133 [1] : vector<8x128xf32> to vector<8xf32>
    %326 = vector.shape_cast %325 : vector<8xf32> to vector<8x1xf32>
    %cst_134 = arith.constant 1.280000e+02 : f32
    %327 = vector.broadcast %cst_134 : f32 to vector<8x1xf32>
    %328 = arith.divf %326, %327 : vector<8x1xf32>
    %cst_135 = arith.constant 9.99999974E-6 : f32
    %329 = vector.broadcast %cst_135 : f32 to vector<8x1xf32>
    %330 = arith.addf %328, %329 : vector<8x1xf32>
    %331 = math.rsqrt %330 : vector<8x1xf32>
    %332 = vector.broadcast %331 : vector<8x1xf32> to vector<8x128xf32>
    %333 = arith.mulf %323, %332 : vector<8x128xf32>
    %334 = arith.mulf %333, %83 : vector<8x128xf32>
    %335 = arith.addf %334, %87 : vector<8x128xf32>
    %336 = tpu.concatenate %335, %266 in 1 : vector<8x128xf32>, vector<8x128xf32> -> vector<8x256xf32>
    %337 = arith.truncf %336 : vector<8x256xf32> to vector<8x256xbf16>
    %cst_136 = arith.constant dense<0.000000e+00> : vector<8x512xf32>
    %338 = tpu.matmul %337, %73, %cst_136 {dimension_numbers = #tpu.dot_dimension_numbers<[1], [0], [0], [1], [0, 0, 1, 1], [], []>} : vector<8x256xbf16>, vector<256x512xbf16>, vector<8x512xf32> -> vector<8x512xf32>
    %339 = arith.addf %338, %79 : vector<8x512xf32>
    %340 = vector.extract_strided_slice %339 {offsets = [0, 0], sizes = [8, 128], strides = [1, 1]} : vector<8x512xf32> to vector<8x128xf32>
    %341 = arith.negf %340 : vector<8x128xf32>
    %342 = math.exp %341 : vector<8x128xf32>
    %cst_137 = arith.constant 1.000000e+00 : f32
    %343 = vector.broadcast %cst_137 : f32 to vector<8x128xf32>
    %344 = arith.addf %343, %342 : vector<8x128xf32>
    %345 = arith.divf %343, %344 : vector<8x128xf32>
    %346 = vector.extract_strided_slice %339 {offsets = [0, 128], sizes = [8, 128], strides = [1, 1]} : vector<8x512xf32> to vector<8x128xf32>
    %347 = arith.negf %346 : vector<8x128xf32>
    %348 = math.exp %347 : vector<8x128xf32>
    %cst_138 = arith.constant 1.000000e+00 : f32
    %349 = vector.broadcast %cst_138 : f32 to vector<8x128xf32>
    %350 = arith.addf %349, %348 : vector<8x128xf32>
    %351 = arith.divf %349, %350 : vector<8x128xf32>
    %352 = vector.extract_strided_slice %339 {offsets = [0, 256], sizes = [8, 128], strides = [1, 1]} : vector<8x512xf32> to vector<8x128xf32>
    %353 = vector.extract_strided_slice %339 {offsets = [0, 384], sizes = [8, 128], strides = [1, 1]} : vector<8x512xf32> to vector<8x128xf32>
    %354 = arith.mulf %345, %353 : vector<8x128xf32>
    %355 = arith.addf %352, %354 : vector<8x128xf32>
    %356 = math.tanh %355 : vector<8x128xf32>
    %cst_139 = arith.constant 1.000000e+00 : f32
    %357 = vector.broadcast %cst_139 : f32 to vector<8x128xf32>
    %358 = arith.subf %357, %351 : vector<8x128xf32>
    %359 = arith.mulf %358, %356 : vector<8x128xf32>
    %360 = arith.mulf %351, %266 : vector<8x128xf32>
    %361 = arith.addf %359, %360 : vector<8x128xf32>
    %c16_140 = arith.constant 16 : index
    %c0_141 = arith.constant 0 : index
    %362 = vector.load %arg17[%c16_140, %c0_141] : memref<64x128xf32, #tpu.memory_space<vmem>>, vector<8x128xf32>
    %cst_142 = arith.constant dense<0.000000e+00> : vector<8xf32>
    %363 = vector.multi_reduction <add>, %361, %cst_142 [1] : vector<8x128xf32> to vector<8xf32>
    %364 = vector.shape_cast %363 : vector<8xf32> to vector<8x1xf32>
    %cst_143 = arith.constant 1.280000e+02 : f32
    %365 = vector.broadcast %cst_143 : f32 to vector<8x1xf32>
    %366 = arith.divf %364, %365 : vector<8x1xf32>
    %367 = vector.broadcast %366 : vector<8x1xf32> to vector<8x128xf32>
    %368 = arith.subf %361, %367 : vector<8x128xf32>
    %369 = arith.mulf %368, %368 : vector<8x128xf32>
    %cst_144 = arith.constant dense<0.000000e+00> : vector<8xf32>
    %370 = vector.multi_reduction <add>, %369, %cst_144 [1] : vector<8x128xf32> to vector<8xf32>
    %371 = vector.shape_cast %370 : vector<8xf32> to vector<8x1xf32>
    %cst_145 = arith.constant 1.280000e+02 : f32
    %372 = vector.broadcast %cst_145 : f32 to vector<8x1xf32>
    %373 = arith.divf %371, %372 : vector<8x1xf32>
    %cst_146 = arith.constant 9.99999974E-6 : f32
    %374 = vector.broadcast %cst_146 : f32 to vector<8x1xf32>
    %375 = arith.addf %373, %374 : vector<8x1xf32>
    %376 = math.rsqrt %375 : vector<8x1xf32>
    %377 = vector.broadcast %376 : vector<8x1xf32> to vector<8x128xf32>
    %378 = arith.mulf %368, %377 : vector<8x128xf32>
    %379 = arith.mulf %378, %91 : vector<8x128xf32>
    %380 = arith.addf %379, %95 : vector<8x128xf32>
    %381 = arith.addf %362, %380 : vector<8x128xf32>
    %c16_147 = arith.constant 16 : index
    %c0_148 = arith.constant 0 : index
    %382 = vector.load %arg17[%c16_147, %c0_148] : memref<64x128xf32, #tpu.memory_space<vmem>>, vector<8x128xf32>
    tpu.vector_store %arg17[%c16_147, %c0_148], %381 {strides = array<i32>} : memref<64x128xf32, #tpu.memory_space<vmem>>, vector<8x128xf32>,
    %c24 = arith.constant 24 : index
    %c0_149 = arith.constant 0 : index
    %383 = vector.load %arg16[%c24, %c0_149] : memref<64x384xf32, #tpu.memory_space<vmem>>, vector<8x384xf32>
    %384 = arith.truncf %317 : vector<8x128xf32> to vector<8x128xbf16>
    %cst_150 = arith.constant dense<0.000000e+00> : vector<8x384xf32>
    %385 = tpu.matmul %384, %72, %cst_150 {dimension_numbers = #tpu.dot_dimension_numbers<[1], [0], [0], [1], [0, 0, 1, 1], [], []>} : vector<8x128xbf16>, vector<128x384xbf16>, vector<8x384xf32> -> vector<8x384xf32>
    %386 = arith.addf %385, %76 : vector<8x384xf32>
    %387 = vector.extract_strided_slice %383 {offsets = [0, 0], sizes = [8, 128], strides = [1, 1]} : vector<8x384xf32> to vector<8x128xf32>
    %388 = vector.extract_strided_slice %386 {offsets = [0, 0], sizes = [8, 128], strides = [1, 1]} : vector<8x384xf32> to vector<8x128xf32>
    %389 = arith.addf %387, %388 : vector<8x128xf32>
    %390 = arith.negf %389 : vector<8x128xf32>
    %391 = math.exp %390 : vector<8x128xf32>
    %cst_151 = arith.constant 1.000000e+00 : f32
    %392 = vector.broadcast %cst_151 : f32 to vector<8x128xf32>
    %393 = arith.addf %392, %391 : vector<8x128xf32>
    %394 = arith.divf %392, %393 : vector<8x128xf32>
    %395 = vector.extract_strided_slice %383 {offsets = [0, 128], sizes = [8, 128], strides = [1, 1]} : vector<8x384xf32> to vector<8x128xf32>
    %396 = vector.extract_strided_slice %386 {offsets = [0, 128], sizes = [8, 128], strides = [1, 1]} : vector<8x384xf32> to vector<8x128xf32>
    %397 = arith.addf %395, %396 : vector<8x128xf32>
    %398 = arith.negf %397 : vector<8x128xf32>
    %399 = math.exp %398 : vector<8x128xf32>
    %cst_152 = arith.constant 1.000000e+00 : f32
    %400 = vector.broadcast %cst_152 : f32 to vector<8x128xf32>
    %401 = arith.addf %400, %399 : vector<8x128xf32>
    %402 = arith.divf %400, %401 : vector<8x128xf32>
    %403 = vector.extract_strided_slice %383 {offsets = [0, 256], sizes = [8, 128], strides = [1, 1]} : vector<8x384xf32> to vector<8x128xf32>
    %404 = vector.extract_strided_slice %386 {offsets = [0, 256], sizes = [8, 128], strides = [1, 1]} : vector<8x384xf32> to vector<8x128xf32>
    %405 = arith.mulf %394, %404 : vector<8x128xf32>
    %406 = arith.addf %403, %405 : vector<8x128xf32>
    %407 = math.tanh %406 : vector<8x128xf32>
    %cst_153 = arith.constant 1.000000e+00 : f32
    %408 = vector.broadcast %cst_153 : f32 to vector<8x128xf32>
    %409 = arith.subf %408, %402 : vector<8x128xf32>
    %410 = arith.mulf %409, %407 : vector<8x128xf32>
    %411 = arith.mulf %402, %317 : vector<8x128xf32>
    %412 = arith.addf %410, %411 : vector<8x128xf32>
    %cst_154 = arith.constant dense<0.000000e+00> : vector<8xf32>
    %413 = vector.multi_reduction <add>, %412, %cst_154 [1] : vector<8x128xf32> to vector<8xf32>
    %414 = vector.shape_cast %413 : vector<8xf32> to vector<8x1xf32>
    %cst_155 = arith.constant 1.280000e+02 : f32
    %415 = vector.broadcast %cst_155 : f32 to vector<8x1xf32>
    %416 = arith.divf %414, %415 : vector<8x1xf32>
    %417 = vector.broadcast %416 : vector<8x1xf32> to vector<8x128xf32>
    %418 = arith.subf %412, %417 : vector<8x128xf32>
    %419 = arith.mulf %418, %418 : vector<8x128xf32>
    %cst_156 = arith.constant dense<0.000000e+00> : vector<8xf32>
    %420 = vector.multi_reduction <add>, %419, %cst_156 [1] : vector<8x128xf32> to vector<8xf32>
    %421 = vector.shape_cast %420 : vector<8xf32> to vector<8x1xf32>
    %cst_157 = arith.constant 1.280000e+02 : f32
    %422 = vector.broadcast %cst_157 : f32 to vector<8x1xf32>
    %423 = arith.divf %421, %422 : vector<8x1xf32>
    %cst_158 = arith.constant 9.99999974E-6 : f32
    %424 = vector.broadcast %cst_158 : f32 to vector<8x1xf32>
    %425 = arith.addf %423, %424 : vector<8x1xf32>
    %426 = math.rsqrt %425 : vector<8x1xf32>
    %427 = vector.broadcast %426 : vector<8x1xf32> to vector<8x128xf32>
    %428 = arith.mulf %418, %427 : vector<8x128xf32>
    %429 = arith.mulf %428, %83 : vector<8x128xf32>
    %430 = arith.addf %429, %87 : vector<8x128xf32>
    %431 = tpu.concatenate %430, %361 in 1 : vector<8x128xf32>, vector<8x128xf32> -> vector<8x256xf32>
    %432 = arith.truncf %431 : vector<8x256xf32> to vector<8x256xbf16>
    %cst_159 = arith.constant dense<0.000000e+00> : vector<8x512xf32>
    %433 = tpu.matmul %432, %73, %cst_159 {dimension_numbers = #tpu.dot_dimension_numbers<[1], [0], [0], [1], [0, 0, 1, 1], [], []>} : vector<8x256xbf16>, vector<256x512xbf16>, vector<8x512xf32> -> vector<8x512xf32>
    %434 = arith.addf %433, %79 : vector<8x512xf32>
    %435 = vector.extract_strided_slice %434 {offsets = [0, 0], sizes = [8, 128], strides = [1, 1]} : vector<8x512xf32> to vector<8x128xf32>
    %436 = arith.negf %435 : vector<8x128xf32>
    %437 = math.exp %436 : vector<8x128xf32>
    %cst_160 = arith.constant 1.000000e+00 : f32
    %438 = vector.broadcast %cst_160 : f32 to vector<8x128xf32>
    %439 = arith.addf %438, %437 : vector<8x128xf32>
    %440 = arith.divf %438, %439 : vector<8x128xf32>
    %441 = vector.extract_strided_slice %434 {offsets = [0, 128], sizes = [8, 128], strides = [1, 1]} : vector<8x512xf32> to vector<8x128xf32>
    %442 = arith.negf %441 : vector<8x128xf32>
    %443 = math.exp %442 : vector<8x128xf32>
    %cst_161 = arith.constant 1.000000e+00 : f32
    %444 = vector.broadcast %cst_161 : f32 to vector<8x128xf32>
    %445 = arith.addf %444, %443 : vector<8x128xf32>
    %446 = arith.divf %444, %445 : vector<8x128xf32>
    %447 = vector.extract_strided_slice %434 {offsets = [0, 256], sizes = [8, 128], strides = [1, 1]} : vector<8x512xf32> to vector<8x128xf32>
    %448 = vector.extract_strided_slice %434 {offsets = [0, 384], sizes = [8, 128], strides = [1, 1]} : vector<8x512xf32> to vector<8x128xf32>
    %449 = arith.mulf %440, %448 : vector<8x128xf32>
    %450 = arith.addf %447, %449 : vector<8x128xf32>
    %451 = math.tanh %450 : vector<8x128xf32>
    %cst_162 = arith.constant 1.000000e+00 : f32
    %452 = vector.broadcast %cst_162 : f32 to vector<8x128xf32>
    %453 = arith.subf %452, %446 : vector<8x128xf32>
    %454 = arith.mulf %453, %451 : vector<8x128xf32>
    %455 = arith.mulf %446, %361 : vector<8x128xf32>
    %456 = arith.addf %454, %455 : vector<8x128xf32>
    %c24_163 = arith.constant 24 : index
    %c0_164 = arith.constant 0 : index
    %457 = vector.load %arg17[%c24_163, %c0_164] : memref<64x128xf32, #tpu.memory_space<vmem>>, vector<8x128xf32>
    %cst_165 = arith.constant dense<0.000000e+00> : vector<8xf32>
    %458 = vector.multi_reduction <add>, %456, %cst_165 [1] : vector<8x128xf32> to vector<8xf32>
    %459 = vector.shape_cast %458 : vector<8xf32> to vector<8x1xf32>
    %cst_166 = arith.constant 1.280000e+02 : f32
    %460 = vector.broadcast %cst_166 : f32 to vector<8x1xf32>
    %461 = arith.divf %459, %460 : vector<8x1xf32>
    %462 = vector.broadcast %461 : vector<8x1xf32> to vector<8x128xf32>
    %463 = arith.subf %456, %462 : vector<8x128xf32>
    %464 = arith.mulf %463, %463 : vector<8x128xf32>
    %cst_167 = arith.constant dense<0.000000e+00> : vector<8xf32>
    %465 = vector.multi_reduction <add>, %464, %cst_167 [1] : vector<8x128xf32> to vector<8xf32>
    %466 = vector.shape_cast %465 : vector<8xf32> to vector<8x1xf32>
    %cst_168 = arith.constant 1.280000e+02 : f32
    %467 = vector.broadcast %cst_168 : f32 to vector<8x1xf32>
    %468 = arith.divf %466, %467 : vector<8x1xf32>
    %cst_169 = arith.constant 9.99999974E-6 : f32
    %469 = vector.broadcast %cst_169 : f32 to vector<8x1xf32>
    %470 = arith.addf %468, %469 : vector<8x1xf32>
    %471 = math.rsqrt %470 : vector<8x1xf32>
    %472 = vector.broadcast %471 : vector<8x1xf32> to vector<8x128xf32>
    %473 = arith.mulf %463, %472 : vector<8x128xf32>
    %474 = arith.mulf %473, %91 : vector<8x128xf32>
    %475 = arith.addf %474, %95 : vector<8x128xf32>
    %476 = arith.addf %457, %475 : vector<8x128xf32>
    %c24_170 = arith.constant 24 : index
    %c0_171 = arith.constant 0 : index
    %477 = vector.load %arg17[%c24_170, %c0_171] : memref<64x128xf32, #tpu.memory_space<vmem>>, vector<8x128xf32>
    tpu.vector_store %arg17[%c24_170, %c0_171], %476 {strides = array<i32>} : memref<64x128xf32, #tpu.memory_space<vmem>>, vector<8x128xf32>,
    %c32 = arith.constant 32 : index
    %c0_172 = arith.constant 0 : index
    %478 = vector.load %arg16[%c32, %c0_172] : memref<64x384xf32, #tpu.memory_space<vmem>>, vector<8x384xf32>
    %479 = arith.truncf %412 : vector<8x128xf32> to vector<8x128xbf16>
    %cst_173 = arith.constant dense<0.000000e+00> : vector<8x384xf32>
    %480 = tpu.matmul %479, %72, %cst_173 {dimension_numbers = #tpu.dot_dimension_numbers<[1], [0], [0], [1], [0, 0, 1, 1], [], []>} : vector<8x128xbf16>, vector<128x384xbf16>, vector<8x384xf32> -> vector<8x384xf32>
    %481 = arith.addf %480, %76 : vector<8x384xf32>
    %482 = vector.extract_strided_slice %478 {offsets = [0, 0], sizes = [8, 128], strides = [1, 1]} : vector<8x384xf32> to vector<8x128xf32>
    %483 = vector.extract_strided_slice %481 {offsets = [0, 0], sizes = [8, 128], strides = [1, 1]} : vector<8x384xf32> to vector<8x128xf32>
    %484 = arith.addf %482, %483 : vector<8x128xf32>
    %485 = arith.negf %484 : vector<8x128xf32>
    %486 = math.exp %485 : vector<8x128xf32>
    %cst_174 = arith.constant 1.000000e+00 : f32
    %487 = vector.broadcast %cst_174 : f32 to vector<8x128xf32>
    %488 = arith.addf %487, %486 : vector<8x128xf32>
    %489 = arith.divf %487, %488 : vector<8x128xf32>
    %490 = vector.extract_strided_slice %478 {offsets = [0, 128], sizes = [8, 128], strides = [1, 1]} : vector<8x384xf32> to vector<8x128xf32>
    %491 = vector.extract_strided_slice %481 {offsets = [0, 128], sizes = [8, 128], strides = [1, 1]} : vector<8x384xf32> to vector<8x128xf32>
    %492 = arith.addf %490, %491 : vector<8x128xf32>
    %493 = arith.negf %492 : vector<8x128xf32>
    %494 = math.exp %493 : vector<8x128xf32>
    %cst_175 = arith.constant 1.000000e+00 : f32
    %495 = vector.broadcast %cst_175 : f32 to vector<8x128xf32>
    %496 = arith.addf %495, %494 : vector<8x128xf32>
    %497 = arith.divf %495, %496 : vector<8x128xf32>
    %498 = vector.extract_strided_slice %478 {offsets = [0, 256], sizes = [8, 128], strides = [1, 1]} : vector<8x384xf32> to vector<8x128xf32>
    %499 = vector.extract_strided_slice %481 {offsets = [0, 256], sizes = [8, 128], strides = [1, 1]} : vector<8x384xf32> to vector<8x128xf32>
    %500 = arith.mulf %489, %499 : vector<8x128xf32>
    %501 = arith.addf %498, %500 : vector<8x128xf32>
    %502 = math.tanh %501 : vector<8x128xf32>
    %cst_176 = arith.constant 1.000000e+00 : f32
    %503 = vector.broadcast %cst_176 : f32 to vector<8x128xf32>
    %504 = arith.subf %503, %497 : vector<8x128xf32>
    %505 = arith.mulf %504, %502 : vector<8x128xf32>
    %506 = arith.mulf %497, %412 : vector<8x128xf32>
    %507 = arith.addf %505, %506 : vector<8x128xf32>
    %cst_177 = arith.constant dense<0.000000e+00> : vector<8xf32>
    %508 = vector.multi_reduction <add>, %507, %cst_177 [1] : vector<8x128xf32> to vector<8xf32>
    %509 = vector.shape_cast %508 : vector<8xf32> to vector<8x1xf32>
    %cst_178 = arith.constant 1.280000e+02 : f32
    %510 = vector.broadcast %cst_178 : f32 to vector<8x1xf32>
    %511 = arith.divf %509, %510 : vector<8x1xf32>
    %512 = vector.broadcast %511 : vector<8x1xf32> to vector<8x128xf32>
    %513 = arith.subf %507, %512 : vector<8x128xf32>
    %514 = arith.mulf %513, %513 : vector<8x128xf32>
    %cst_179 = arith.constant dense<0.000000e+00> : vector<8xf32>
    %515 = vector.multi_reduction <add>, %514, %cst_179 [1] : vector<8x128xf32> to vector<8xf32>
    %516 = vector.shape_cast %515 : vector<8xf32> to vector<8x1xf32>
    %cst_180 = arith.constant 1.280000e+02 : f32
    %517 = vector.broadcast %cst_180 : f32 to vector<8x1xf32>
    %518 = arith.divf %516, %517 : vector<8x1xf32>
    %cst_181 = arith.constant 9.99999974E-6 : f32
    %519 = vector.broadcast %cst_181 : f32 to vector<8x1xf32>
    %520 = arith.addf %518, %519 : vector<8x1xf32>
    %521 = math.rsqrt %520 : vector<8x1xf32>
    %522 = vector.broadcast %521 : vector<8x1xf32> to vector<8x128xf32>
    %523 = arith.mulf %513, %522 : vector<8x128xf32>
    %524 = arith.mulf %523, %83 : vector<8x128xf32>
    %525 = arith.addf %524, %87 : vector<8x128xf32>
    %526 = tpu.concatenate %525, %456 in 1 : vector<8x128xf32>, vector<8x128xf32> -> vector<8x256xf32>
    %527 = arith.truncf %526 : vector<8x256xf32> to vector<8x256xbf16>
    %cst_182 = arith.constant dense<0.000000e+00> : vector<8x512xf32>
    %528 = tpu.matmul %527, %73, %cst_182 {dimension_numbers = #tpu.dot_dimension_numbers<[1], [0], [0], [1], [0, 0, 1, 1], [], []>} : vector<8x256xbf16>, vector<256x512xbf16>, vector<8x512xf32> -> vector<8x512xf32>
    %529 = arith.addf %528, %79 : vector<8x512xf32>
    %530 = vector.extract_strided_slice %529 {offsets = [0, 0], sizes = [8, 128], strides = [1, 1]} : vector<8x512xf32> to vector<8x128xf32>
    %531 = arith.negf %530 : vector<8x128xf32>
    %532 = math.exp %531 : vector<8x128xf32>
    %cst_183 = arith.constant 1.000000e+00 : f32
    %533 = vector.broadcast %cst_183 : f32 to vector<8x128xf32>
    %534 = arith.addf %533, %532 : vector<8x128xf32>
    %535 = arith.divf %533, %534 : vector<8x128xf32>
    %536 = vector.extract_strided_slice %529 {offsets = [0, 128], sizes = [8, 128], strides = [1, 1]} : vector<8x512xf32> to vector<8x128xf32>
    %537 = arith.negf %536 : vector<8x128xf32>
    %538 = math.exp %537 : vector<8x128xf32>
    %cst_184 = arith.constant 1.000000e+00 : f32
    %539 = vector.broadcast %cst_184 : f32 to vector<8x128xf32>
    %540 = arith.addf %539, %538 : vector<8x128xf32>
    %541 = arith.divf %539, %540 : vector<8x128xf32>
    %542 = vector.extract_strided_slice %529 {offsets = [0, 256], sizes = [8, 128], strides = [1, 1]} : vector<8x512xf32> to vector<8x128xf32>
    %543 = vector.extract_strided_slice %529 {offsets = [0, 384], sizes = [8, 128], strides = [1, 1]} : vector<8x512xf32> to vector<8x128xf32>
    %544 = arith.mulf %535, %543 : vector<8x128xf32>
    %545 = arith.addf %542, %544 : vector<8x128xf32>
    %546 = math.tanh %545 : vector<8x128xf32>
    %cst_185 = arith.constant 1.000000e+00 : f32
    %547 = vector.broadcast %cst_185 : f32 to vector<8x128xf32>
    %548 = arith.subf %547, %541 : vector<8x128xf32>
    %549 = arith.mulf %548, %546 : vector<8x128xf32>
    %550 = arith.mulf %541, %456 : vector<8x128xf32>
    %551 = arith.addf %549, %550 : vector<8x128xf32>
    %c32_186 = arith.constant 32 : index
    %c0_187 = arith.constant 0 : index
    %552 = vector.load %arg17[%c32_186, %c0_187] : memref<64x128xf32, #tpu.memory_space<vmem>>, vector<8x128xf32>
    %cst_188 = arith.constant dense<0.000000e+00> : vector<8xf32>
    %553 = vector.multi_reduction <add>, %551, %cst_188 [1] : vector<8x128xf32> to vector<8xf32>
    %554 = vector.shape_cast %553 : vector<8xf32> to vector<8x1xf32>
    %cst_189 = arith.constant 1.280000e+02 : f32
    %555 = vector.broadcast %cst_189 : f32 to vector<8x1xf32>
    %556 = arith.divf %554, %555 : vector<8x1xf32>
    %557 = vector.broadcast %556 : vector<8x1xf32> to vector<8x128xf32>
    %558 = arith.subf %551, %557 : vector<8x128xf32>
    %559 = arith.mulf %558, %558 : vector<8x128xf32>
    %cst_190 = arith.constant dense<0.000000e+00> : vector<8xf32>
    %560 = vector.multi_reduction <add>, %559, %cst_190 [1] : vector<8x128xf32> to vector<8xf32>
    %561 = vector.shape_cast %560 : vector<8xf32> to vector<8x1xf32>
    %cst_191 = arith.constant 1.280000e+02 : f32
    %562 = vector.broadcast %cst_191 : f32 to vector<8x1xf32>
    %563 = arith.divf %561, %562 : vector<8x1xf32>
    %cst_192 = arith.constant 9.99999974E-6 : f32
    %564 = vector.broadcast %cst_192 : f32 to vector<8x1xf32>
    %565 = arith.addf %563, %564 : vector<8x1xf32>
    %566 = math.rsqrt %565 : vector<8x1xf32>
    %567 = vector.broadcast %566 : vector<8x1xf32> to vector<8x128xf32>
    %568 = arith.mulf %558, %567 : vector<8x128xf32>
    %569 = arith.mulf %568, %91 : vector<8x128xf32>
    %570 = arith.addf %569, %95 : vector<8x128xf32>
    %571 = arith.addf %552, %570 : vector<8x128xf32>
    %c32_193 = arith.constant 32 : index
    %c0_194 = arith.constant 0 : index
    %572 = vector.load %arg17[%c32_193, %c0_194] : memref<64x128xf32, #tpu.memory_space<vmem>>, vector<8x128xf32>
    tpu.vector_store %arg17[%c32_193, %c0_194], %571 {strides = array<i32>} : memref<64x128xf32, #tpu.memory_space<vmem>>, vector<8x128xf32>,
    %c40 = arith.constant 40 : index
    %c0_195 = arith.constant 0 : index
    %573 = vector.load %arg16[%c40, %c0_195] : memref<64x384xf32, #tpu.memory_space<vmem>>, vector<8x384xf32>
    %574 = arith.truncf %507 : vector<8x128xf32> to vector<8x128xbf16>
    %cst_196 = arith.constant dense<0.000000e+00> : vector<8x384xf32>
    %575 = tpu.matmul %574, %72, %cst_196 {dimension_numbers = #tpu.dot_dimension_numbers<[1], [0], [0], [1], [0, 0, 1, 1], [], []>} : vector<8x128xbf16>, vector<128x384xbf16>, vector<8x384xf32> -> vector<8x384xf32>
    %576 = arith.addf %575, %76 : vector<8x384xf32>
    %577 = vector.extract_strided_slice %573 {offsets = [0, 0], sizes = [8, 128], strides = [1, 1]} : vector<8x384xf32> to vector<8x128xf32>
    %578 = vector.extract_strided_slice %576 {offsets = [0, 0], sizes = [8, 128], strides = [1, 1]} : vector<8x384xf32> to vector<8x128xf32>
    %579 = arith.addf %577, %578 : vector<8x128xf32>
    %580 = arith.negf %579 : vector<8x128xf32>
    %581 = math.exp %580 : vector<8x128xf32>
    %cst_197 = arith.constant 1.000000e+00 : f32
    %582 = vector.broadcast %cst_197 : f32 to vector<8x128xf32>
    %583 = arith.addf %582, %581 : vector<8x128xf32>
    %584 = arith.divf %582, %583 : vector<8x128xf32>
    %585 = vector.extract_strided_slice %573 {offsets = [0, 128], sizes = [8, 128], strides = [1, 1]} : vector<8x384xf32> to vector<8x128xf32>
    %586 = vector.extract_strided_slice %576 {offsets = [0, 128], sizes = [8, 128], strides = [1, 1]} : vector<8x384xf32> to vector<8x128xf32>
    %587 = arith.addf %585, %586 : vector<8x128xf32>
    %588 = arith.negf %587 : vector<8x128xf32>
    %589 = math.exp %588 : vector<8x128xf32>
    %cst_198 = arith.constant 1.000000e+00 : f32
    %590 = vector.broadcast %cst_198 : f32 to vector<8x128xf32>
    %591 = arith.addf %590, %589 : vector<8x128xf32>
    %592 = arith.divf %590, %591 : vector<8x128xf32>
    %593 = vector.extract_strided_slice %573 {offsets = [0, 256], sizes = [8, 128], strides = [1, 1]} : vector<8x384xf32> to vector<8x128xf32>
    %594 = vector.extract_strided_slice %576 {offsets = [0, 256], sizes = [8, 128], strides = [1, 1]} : vector<8x384xf32> to vector<8x128xf32>
    %595 = arith.mulf %584, %594 : vector<8x128xf32>
    %596 = arith.addf %593, %595 : vector<8x128xf32>
    %597 = math.tanh %596 : vector<8x128xf32>
    %cst_199 = arith.constant 1.000000e+00 : f32
    %598 = vector.broadcast %cst_199 : f32 to vector<8x128xf32>
    %599 = arith.subf %598, %592 : vector<8x128xf32>
    %600 = arith.mulf %599, %597 : vector<8x128xf32>
    %601 = arith.mulf %592, %507 : vector<8x128xf32>
    %602 = arith.addf %600, %601 : vector<8x128xf32>
    %cst_200 = arith.constant dense<0.000000e+00> : vector<8xf32>
    %603 = vector.multi_reduction <add>, %602, %cst_200 [1] : vector<8x128xf32> to vector<8xf32>
    %604 = vector.shape_cast %603 : vector<8xf32> to vector<8x1xf32>
    %cst_201 = arith.constant 1.280000e+02 : f32
    %605 = vector.broadcast %cst_201 : f32 to vector<8x1xf32>
    %606 = arith.divf %604, %605 : vector<8x1xf32>
    %607 = vector.broadcast %606 : vector<8x1xf32> to vector<8x128xf32>
    %608 = arith.subf %602, %607 : vector<8x128xf32>
    %609 = arith.mulf %608, %608 : vector<8x128xf32>
    %cst_202 = arith.constant dense<0.000000e+00> : vector<8xf32>
    %610 = vector.multi_reduction <add>, %609, %cst_202 [1] : vector<8x128xf32> to vector<8xf32>
    %611 = vector.shape_cast %610 : vector<8xf32> to vector<8x1xf32>
    %cst_203 = arith.constant 1.280000e+02 : f32
    %612 = vector.broadcast %cst_203 : f32 to vector<8x1xf32>
    %613 = arith.divf %611, %612 : vector<8x1xf32>
    %cst_204 = arith.constant 9.99999974E-6 : f32
    %614 = vector.broadcast %cst_204 : f32 to vector<8x1xf32>
    %615 = arith.addf %613, %614 : vector<8x1xf32>
    %616 = math.rsqrt %615 : vector<8x1xf32>
    %617 = vector.broadcast %616 : vector<8x1xf32> to vector<8x128xf32>
    %618 = arith.mulf %608, %617 : vector<8x128xf32>
    %619 = arith.mulf %618, %83 : vector<8x128xf32>
    %620 = arith.addf %619, %87 : vector<8x128xf32>
    %621 = tpu.concatenate %620, %551 in 1 : vector<8x128xf32>, vector<8x128xf32> -> vector<8x256xf32>
    %622 = arith.truncf %621 : vector<8x256xf32> to vector<8x256xbf16>
    %cst_205 = arith.constant dense<0.000000e+00> : vector<8x512xf32>
    %623 = tpu.matmul %622, %73, %cst_205 {dimension_numbers = #tpu.dot_dimension_numbers<[1], [0], [0], [1], [0, 0, 1, 1], [], []>} : vector<8x256xbf16>, vector<256x512xbf16>, vector<8x512xf32> -> vector<8x512xf32>
    %624 = arith.addf %623, %79 : vector<8x512xf32>
    %625 = vector.extract_strided_slice %624 {offsets = [0, 0], sizes = [8, 128], strides = [1, 1]} : vector<8x512xf32> to vector<8x128xf32>
    %626 = arith.negf %625 : vector<8x128xf32>
    %627 = math.exp %626 : vector<8x128xf32>
    %cst_206 = arith.constant 1.000000e+00 : f32
    %628 = vector.broadcast %cst_206 : f32 to vector<8x128xf32>
    %629 = arith.addf %628, %627 : vector<8x128xf32>
    %630 = arith.divf %628, %629 : vector<8x128xf32>
    %631 = vector.extract_strided_slice %624 {offsets = [0, 128], sizes = [8, 128], strides = [1, 1]} : vector<8x512xf32> to vector<8x128xf32>
    %632 = arith.negf %631 : vector<8x128xf32>
    %633 = math.exp %632 : vector<8x128xf32>
    %cst_207 = arith.constant 1.000000e+00 : f32
    %634 = vector.broadcast %cst_207 : f32 to vector<8x128xf32>
    %635 = arith.addf %634, %633 : vector<8x128xf32>
    %636 = arith.divf %634, %635 : vector<8x128xf32>
    %637 = vector.extract_strided_slice %624 {offsets = [0, 256], sizes = [8, 128], strides = [1, 1]} : vector<8x512xf32> to vector<8x128xf32>
    %638 = vector.extract_strided_slice %624 {offsets = [0, 384], sizes = [8, 128], strides = [1, 1]} : vector<8x512xf32> to vector<8x128xf32>
    %639 = arith.mulf %630, %638 : vector<8x128xf32>
    %640 = arith.addf %637, %639 : vector<8x128xf32>
    %641 = math.tanh %640 : vector<8x128xf32>
    %cst_208 = arith.constant 1.000000e+00 : f32
    %642 = vector.broadcast %cst_208 : f32 to vector<8x128xf32>
    %643 = arith.subf %642, %636 : vector<8x128xf32>
    %644 = arith.mulf %643, %641 : vector<8x128xf32>
    %645 = arith.mulf %636, %551 : vector<8x128xf32>
    %646 = arith.addf %644, %645 : vector<8x128xf32>
    %c40_209 = arith.constant 40 : index
    %c0_210 = arith.constant 0 : index
    %647 = vector.load %arg17[%c40_209, %c0_210] : memref<64x128xf32, #tpu.memory_space<vmem>>, vector<8x128xf32>
    %cst_211 = arith.constant dense<0.000000e+00> : vector<8xf32>
    %648 = vector.multi_reduction <add>, %646, %cst_211 [1] : vector<8x128xf32> to vector<8xf32>
    %649 = vector.shape_cast %648 : vector<8xf32> to vector<8x1xf32>
    %cst_212 = arith.constant 1.280000e+02 : f32
    %650 = vector.broadcast %cst_212 : f32 to vector<8x1xf32>
    %651 = arith.divf %649, %650 : vector<8x1xf32>
    %652 = vector.broadcast %651 : vector<8x1xf32> to vector<8x128xf32>
    %653 = arith.subf %646, %652 : vector<8x128xf32>
    %654 = arith.mulf %653, %653 : vector<8x128xf32>
    %cst_213 = arith.constant dense<0.000000e+00> : vector<8xf32>
    %655 = vector.multi_reduction <add>, %654, %cst_213 [1] : vector<8x128xf32> to vector<8xf32>
    %656 = vector.shape_cast %655 : vector<8xf32> to vector<8x1xf32>
    %cst_214 = arith.constant 1.280000e+02 : f32
    %657 = vector.broadcast %cst_214 : f32 to vector<8x1xf32>
    %658 = arith.divf %656, %657 : vector<8x1xf32>
    %cst_215 = arith.constant 9.99999974E-6 : f32
    %659 = vector.broadcast %cst_215 : f32 to vector<8x1xf32>
    %660 = arith.addf %658, %659 : vector<8x1xf32>
    %661 = math.rsqrt %660 : vector<8x1xf32>
    %662 = vector.broadcast %661 : vector<8x1xf32> to vector<8x128xf32>
    %663 = arith.mulf %653, %662 : vector<8x128xf32>
    %664 = arith.mulf %663, %91 : vector<8x128xf32>
    %665 = arith.addf %664, %95 : vector<8x128xf32>
    %666 = arith.addf %647, %665 : vector<8x128xf32>
    %c40_216 = arith.constant 40 : index
    %c0_217 = arith.constant 0 : index
    %667 = vector.load %arg17[%c40_216, %c0_217] : memref<64x128xf32, #tpu.memory_space<vmem>>, vector<8x128xf32>
    tpu.vector_store %arg17[%c40_216, %c0_217], %666 {strides = array<i32>} : memref<64x128xf32, #tpu.memory_space<vmem>>, vector<8x128xf32>,
    %c48 = arith.constant 48 : index
    %c0_218 = arith.constant 0 : index
    %668 = vector.load %arg16[%c48, %c0_218] : memref<64x384xf32, #tpu.memory_space<vmem>>, vector<8x384xf32>
    %669 = arith.truncf %602 : vector<8x128xf32> to vector<8x128xbf16>
    %cst_219 = arith.constant dense<0.000000e+00> : vector<8x384xf32>
    %670 = tpu.matmul %669, %72, %cst_219 {dimension_numbers = #tpu.dot_dimension_numbers<[1], [0], [0], [1], [0, 0, 1, 1], [], []>} : vector<8x128xbf16>, vector<128x384xbf16>, vector<8x384xf32> -> vector<8x384xf32>
    %671 = arith.addf %670, %76 : vector<8x384xf32>
    %672 = vector.extract_strided_slice %668 {offsets = [0, 0], sizes = [8, 128], strides = [1, 1]} : vector<8x384xf32> to vector<8x128xf32>
    %673 = vector.extract_strided_slice %671 {offsets = [0, 0], sizes = [8, 128], strides = [1, 1]} : vector<8x384xf32> to vector<8x128xf32>
    %674 = arith.addf %672, %673 : vector<8x128xf32>
    %675 = arith.negf %674 : vector<8x128xf32>
    %676 = math.exp %675 : vector<8x128xf32>
    %cst_220 = arith.constant 1.000000e+00 : f32
    %677 = vector.broadcast %cst_220 : f32 to vector<8x128xf32>
    %678 = arith.addf %677, %676 : vector<8x128xf32>
    %679 = arith.divf %677, %678 : vector<8x128xf32>
    %680 = vector.extract_strided_slice %668 {offsets = [0, 128], sizes = [8, 128], strides = [1, 1]} : vector<8x384xf32> to vector<8x128xf32>
    %681 = vector.extract_strided_slice %671 {offsets = [0, 128], sizes = [8, 128], strides = [1, 1]} : vector<8x384xf32> to vector<8x128xf32>
    %682 = arith.addf %680, %681 : vector<8x128xf32>
    %683 = arith.negf %682 : vector<8x128xf32>
    %684 = math.exp %683 : vector<8x128xf32>
    %cst_221 = arith.constant 1.000000e+00 : f32
    %685 = vector.broadcast %cst_221 : f32 to vector<8x128xf32>
    %686 = arith.addf %685, %684 : vector<8x128xf32>
    %687 = arith.divf %685, %686 : vector<8x128xf32>
    %688 = vector.extract_strided_slice %668 {offsets = [0, 256], sizes = [8, 128], strides = [1, 1]} : vector<8x384xf32> to vector<8x128xf32>
    %689 = vector.extract_strided_slice %671 {offsets = [0, 256], sizes = [8, 128], strides = [1, 1]} : vector<8x384xf32> to vector<8x128xf32>
    %690 = arith.mulf %679, %689 : vector<8x128xf32>
    %691 = arith.addf %688, %690 : vector<8x128xf32>
    %692 = math.tanh %691 : vector<8x128xf32>
    %cst_222 = arith.constant 1.000000e+00 : f32
    %693 = vector.broadcast %cst_222 : f32 to vector<8x128xf32>
    %694 = arith.subf %693, %687 : vector<8x128xf32>
    %695 = arith.mulf %694, %692 : vector<8x128xf32>
    %696 = arith.mulf %687, %602 : vector<8x128xf32>
    %697 = arith.addf %695, %696 : vector<8x128xf32>
    %cst_223 = arith.constant dense<0.000000e+00> : vector<8xf32>
    %698 = vector.multi_reduction <add>, %697, %cst_223 [1] : vector<8x128xf32> to vector<8xf32>
    %699 = vector.shape_cast %698 : vector<8xf32> to vector<8x1xf32>
    %cst_224 = arith.constant 1.280000e+02 : f32
    %700 = vector.broadcast %cst_224 : f32 to vector<8x1xf32>
    %701 = arith.divf %699, %700 : vector<8x1xf32>
    %702 = vector.broadcast %701 : vector<8x1xf32> to vector<8x128xf32>
    %703 = arith.subf %697, %702 : vector<8x128xf32>
    %704 = arith.mulf %703, %703 : vector<8x128xf32>
    %cst_225 = arith.constant dense<0.000000e+00> : vector<8xf32>
    %705 = vector.multi_reduction <add>, %704, %cst_225 [1] : vector<8x128xf32> to vector<8xf32>
    %706 = vector.shape_cast %705 : vector<8xf32> to vector<8x1xf32>
    %cst_226 = arith.constant 1.280000e+02 : f32
    %707 = vector.broadcast %cst_226 : f32 to vector<8x1xf32>
    %708 = arith.divf %706, %707 : vector<8x1xf32>
    %cst_227 = arith.constant 9.99999974E-6 : f32
    %709 = vector.broadcast %cst_227 : f32 to vector<8x1xf32>
    %710 = arith.addf %708, %709 : vector<8x1xf32>
    %711 = math.rsqrt %710 : vector<8x1xf32>
    %712 = vector.broadcast %711 : vector<8x1xf32> to vector<8x128xf32>
    %713 = arith.mulf %703, %712 : vector<8x128xf32>
    %714 = arith.mulf %713, %83 : vector<8x128xf32>
    %715 = arith.addf %714, %87 : vector<8x128xf32>
    %716 = tpu.concatenate %715, %646 in 1 : vector<8x128xf32>, vector<8x128xf32> -> vector<8x256xf32>
    %717 = arith.truncf %716 : vector<8x256xf32> to vector<8x256xbf16>
    %cst_228 = arith.constant dense<0.000000e+00> : vector<8x512xf32>
    %718 = tpu.matmul %717, %73, %cst_228 {dimension_numbers = #tpu.dot_dimension_numbers<[1], [0], [0], [1], [0, 0, 1, 1], [], []>} : vector<8x256xbf16>, vector<256x512xbf16>, vector<8x512xf32> -> vector<8x512xf32>
    %719 = arith.addf %718, %79 : vector<8x512xf32>
    %720 = vector.extract_strided_slice %719 {offsets = [0, 0], sizes = [8, 128], strides = [1, 1]} : vector<8x512xf32> to vector<8x128xf32>
    %721 = arith.negf %720 : vector<8x128xf32>
    %722 = math.exp %721 : vector<8x128xf32>
    %cst_229 = arith.constant 1.000000e+00 : f32
    %723 = vector.broadcast %cst_229 : f32 to vector<8x128xf32>
    %724 = arith.addf %723, %722 : vector<8x128xf32>
    %725 = arith.divf %723, %724 : vector<8x128xf32>
    %726 = vector.extract_strided_slice %719 {offsets = [0, 128], sizes = [8, 128], strides = [1, 1]} : vector<8x512xf32> to vector<8x128xf32>
    %727 = arith.negf %726 : vector<8x128xf32>
    %728 = math.exp %727 : vector<8x128xf32>
    %cst_230 = arith.constant 1.000000e+00 : f32
    %729 = vector.broadcast %cst_230 : f32 to vector<8x128xf32>
    %730 = arith.addf %729, %728 : vector<8x128xf32>
    %731 = arith.divf %729, %730 : vector<8x128xf32>
    %732 = vector.extract_strided_slice %719 {offsets = [0, 256], sizes = [8, 128], strides = [1, 1]} : vector<8x512xf32> to vector<8x128xf32>
    %733 = vector.extract_strided_slice %719 {offsets = [0, 384], sizes = [8, 128], strides = [1, 1]} : vector<8x512xf32> to vector<8x128xf32>
    %734 = arith.mulf %725, %733 : vector<8x128xf32>
    %735 = arith.addf %732, %734 : vector<8x128xf32>
    %736 = math.tanh %735 : vector<8x128xf32>
    %cst_231 = arith.constant 1.000000e+00 : f32
    %737 = vector.broadcast %cst_231 : f32 to vector<8x128xf32>
    %738 = arith.subf %737, %731 : vector<8x128xf32>
    %739 = arith.mulf %738, %736 : vector<8x128xf32>
    %740 = arith.mulf %731, %646 : vector<8x128xf32>
    %741 = arith.addf %739, %740 : vector<8x128xf32>
    %c48_232 = arith.constant 48 : index
    %c0_233 = arith.constant 0 : index
    %742 = vector.load %arg17[%c48_232, %c0_233] : memref<64x128xf32, #tpu.memory_space<vmem>>, vector<8x128xf32>
    %cst_234 = arith.constant dense<0.000000e+00> : vector<8xf32>
    %743 = vector.multi_reduction <add>, %741, %cst_234 [1] : vector<8x128xf32> to vector<8xf32>
    %744 = vector.shape_cast %743 : vector<8xf32> to vector<8x1xf32>
    %cst_235 = arith.constant 1.280000e+02 : f32
    %745 = vector.broadcast %cst_235 : f32 to vector<8x1xf32>
    %746 = arith.divf %744, %745 : vector<8x1xf32>
    %747 = vector.broadcast %746 : vector<8x1xf32> to vector<8x128xf32>
    %748 = arith.subf %741, %747 : vector<8x128xf32>
    %749 = arith.mulf %748, %748 : vector<8x128xf32>
    %cst_236 = arith.constant dense<0.000000e+00> : vector<8xf32>
    %750 = vector.multi_reduction <add>, %749, %cst_236 [1] : vector<8x128xf32> to vector<8xf32>
    %751 = vector.shape_cast %750 : vector<8xf32> to vector<8x1xf32>
    %cst_237 = arith.constant 1.280000e+02 : f32
    %752 = vector.broadcast %cst_237 : f32 to vector<8x1xf32>
    %753 = arith.divf %751, %752 : vector<8x1xf32>
    %cst_238 = arith.constant 9.99999974E-6 : f32
    %754 = vector.broadcast %cst_238 : f32 to vector<8x1xf32>
    %755 = arith.addf %753, %754 : vector<8x1xf32>
    %756 = math.rsqrt %755 : vector<8x1xf32>
    %757 = vector.broadcast %756 : vector<8x1xf32> to vector<8x128xf32>
    %758 = arith.mulf %748, %757 : vector<8x128xf32>
    %759 = arith.mulf %758, %91 : vector<8x128xf32>
    %760 = arith.addf %759, %95 : vector<8x128xf32>
    %761 = arith.addf %742, %760 : vector<8x128xf32>
    %c48_239 = arith.constant 48 : index
    %c0_240 = arith.constant 0 : index
    %762 = vector.load %arg17[%c48_239, %c0_240] : memref<64x128xf32, #tpu.memory_space<vmem>>, vector<8x128xf32>
    tpu.vector_store %arg17[%c48_239, %c0_240], %761 {strides = array<i32>} : memref<64x128xf32, #tpu.memory_space<vmem>>, vector<8x128xf32>,
    %c56 = arith.constant 56 : index
    %c0_241 = arith.constant 0 : index
    %763 = vector.load %arg16[%c56, %c0_241] : memref<64x384xf32, #tpu.memory_space<vmem>>, vector<8x384xf32>
    %764 = arith.truncf %697 : vector<8x128xf32> to vector<8x128xbf16>
    %cst_242 = arith.constant dense<0.000000e+00> : vector<8x384xf32>
    %765 = tpu.matmul %764, %72, %cst_242 {dimension_numbers = #tpu.dot_dimension_numbers<[1], [0], [0], [1], [0, 0, 1, 1], [], []>} : vector<8x128xbf16>, vector<128x384xbf16>, vector<8x384xf32> -> vector<8x384xf32>
    %766 = arith.addf %765, %76 : vector<8x384xf32>
    %767 = vector.extract_strided_slice %763 {offsets = [0, 0], sizes = [8, 128], strides = [1, 1]} : vector<8x384xf32> to vector<8x128xf32>
    %768 = vector.extract_strided_slice %766 {offsets = [0, 0], sizes = [8, 128], strides = [1, 1]} : vector<8x384xf32> to vector<8x128xf32>
    %769 = arith.addf %767, %768 : vector<8x128xf32>
    %770 = arith.negf %769 : vector<8x128xf32>
    %771 = math.exp %770 : vector<8x128xf32>
    %cst_243 = arith.constant 1.000000e+00 : f32
    %772 = vector.broadcast %cst_243 : f32 to vector<8x128xf32>
    %773 = arith.addf %772, %771 : vector<8x128xf32>
    %774 = arith.divf %772, %773 : vector<8x128xf32>
    %775 = vector.extract_strided_slice %763 {offsets = [0, 128], sizes = [8, 128], strides = [1, 1]} : vector<8x384xf32> to vector<8x128xf32>
    %776 = vector.extract_strided_slice %766 {offsets = [0, 128], sizes = [8, 128], strides = [1, 1]} : vector<8x384xf32> to vector<8x128xf32>
    %777 = arith.addf %775, %776 : vector<8x128xf32>
    %778 = arith.negf %777 : vector<8x128xf32>
    %779 = math.exp %778 : vector<8x128xf32>
    %cst_244 = arith.constant 1.000000e+00 : f32
    %780 = vector.broadcast %cst_244 : f32 to vector<8x128xf32>
    %781 = arith.addf %780, %779 : vector<8x128xf32>
    %782 = arith.divf %780, %781 : vector<8x128xf32>
    %783 = vector.extract_strided_slice %763 {offsets = [0, 256], sizes = [8, 128], strides = [1, 1]} : vector<8x384xf32> to vector<8x128xf32>
    %784 = vector.extract_strided_slice %766 {offsets = [0, 256], sizes = [8, 128], strides = [1, 1]} : vector<8x384xf32> to vector<8x128xf32>
    %785 = arith.mulf %774, %784 : vector<8x128xf32>
    %786 = arith.addf %783, %785 : vector<8x128xf32>
    %787 = math.tanh %786 : vector<8x128xf32>
    %cst_245 = arith.constant 1.000000e+00 : f32
    %788 = vector.broadcast %cst_245 : f32 to vector<8x128xf32>
    %789 = arith.subf %788, %782 : vector<8x128xf32>
    %790 = arith.mulf %789, %787 : vector<8x128xf32>
    %791 = arith.mulf %782, %697 : vector<8x128xf32>
    %792 = arith.addf %790, %791 : vector<8x128xf32>
    %cst_246 = arith.constant dense<0.000000e+00> : vector<8xf32>
    %793 = vector.multi_reduction <add>, %792, %cst_246 [1] : vector<8x128xf32> to vector<8xf32>
    %794 = vector.shape_cast %793 : vector<8xf32> to vector<8x1xf32>
    %cst_247 = arith.constant 1.280000e+02 : f32
    %795 = vector.broadcast %cst_247 : f32 to vector<8x1xf32>
    %796 = arith.divf %794, %795 : vector<8x1xf32>
    %797 = vector.broadcast %796 : vector<8x1xf32> to vector<8x128xf32>
    %798 = arith.subf %792, %797 : vector<8x128xf32>
    %799 = arith.mulf %798, %798 : vector<8x128xf32>
    %cst_248 = arith.constant dense<0.000000e+00> : vector<8xf32>
    %800 = vector.multi_reduction <add>, %799, %cst_248 [1] : vector<8x128xf32> to vector<8xf32>
    %801 = vector.shape_cast %800 : vector<8xf32> to vector<8x1xf32>
    %cst_249 = arith.constant 1.280000e+02 : f32
    %802 = vector.broadcast %cst_249 : f32 to vector<8x1xf32>
    %803 = arith.divf %801, %802 : vector<8x1xf32>
    %cst_250 = arith.constant 9.99999974E-6 : f32
    %804 = vector.broadcast %cst_250 : f32 to vector<8x1xf32>
    %805 = arith.addf %803, %804 : vector<8x1xf32>
    %806 = math.rsqrt %805 : vector<8x1xf32>
    %807 = vector.broadcast %806 : vector<8x1xf32> to vector<8x128xf32>
    %808 = arith.mulf %798, %807 : vector<8x128xf32>
    %809 = arith.mulf %808, %83 : vector<8x128xf32>
    %810 = arith.addf %809, %87 : vector<8x128xf32>
    %811 = tpu.concatenate %810, %741 in 1 : vector<8x128xf32>, vector<8x128xf32> -> vector<8x256xf32>
    %812 = arith.truncf %811 : vector<8x256xf32> to vector<8x256xbf16>
    %cst_251 = arith.constant dense<0.000000e+00> : vector<8x512xf32>
    %813 = tpu.matmul %812, %73, %cst_251 {dimension_numbers = #tpu.dot_dimension_numbers<[1], [0], [0], [1], [0, 0, 1, 1], [], []>} : vector<8x256xbf16>, vector<256x512xbf16>, vector<8x512xf32> -> vector<8x512xf32>
    %814 = arith.addf %813, %79 : vector<8x512xf32>
    %815 = vector.extract_strided_slice %814 {offsets = [0, 0], sizes = [8, 128], strides = [1, 1]} : vector<8x512xf32> to vector<8x128xf32>
    %816 = arith.negf %815 : vector<8x128xf32>
    %817 = math.exp %816 : vector<8x128xf32>
    %cst_252 = arith.constant 1.000000e+00 : f32
    %818 = vector.broadcast %cst_252 : f32 to vector<8x128xf32>
    %819 = arith.addf %818, %817 : vector<8x128xf32>
    %820 = arith.divf %818, %819 : vector<8x128xf32>
    %821 = vector.extract_strided_slice %814 {offsets = [0, 128], sizes = [8, 128], strides = [1, 1]} : vector<8x512xf32> to vector<8x128xf32>
    %822 = arith.negf %821 : vector<8x128xf32>
    %823 = math.exp %822 : vector<8x128xf32>
    %cst_253 = arith.constant 1.000000e+00 : f32
    %824 = vector.broadcast %cst_253 : f32 to vector<8x128xf32>
    %825 = arith.addf %824, %823 : vector<8x128xf32>
    %826 = arith.divf %824, %825 : vector<8x128xf32>
    %827 = vector.extract_strided_slice %814 {offsets = [0, 256], sizes = [8, 128], strides = [1, 1]} : vector<8x512xf32> to vector<8x128xf32>
    %828 = vector.extract_strided_slice %814 {offsets = [0, 384], sizes = [8, 128], strides = [1, 1]} : vector<8x512xf32> to vector<8x128xf32>
    %829 = arith.mulf %820, %828 : vector<8x128xf32>
    %830 = arith.addf %827, %829 : vector<8x128xf32>
    %831 = math.tanh %830 : vector<8x128xf32>
    %cst_254 = arith.constant 1.000000e+00 : f32
    %832 = vector.broadcast %cst_254 : f32 to vector<8x128xf32>
    %833 = arith.subf %832, %826 : vector<8x128xf32>
    %834 = arith.mulf %833, %831 : vector<8x128xf32>
    %835 = arith.mulf %826, %741 : vector<8x128xf32>
    %836 = arith.addf %834, %835 : vector<8x128xf32>
    %c56_255 = arith.constant 56 : index
    %c0_256 = arith.constant 0 : index
    %837 = vector.load %arg17[%c56_255, %c0_256] : memref<64x128xf32, #tpu.memory_space<vmem>>, vector<8x128xf32>
    %cst_257 = arith.constant dense<0.000000e+00> : vector<8xf32>
    %838 = vector.multi_reduction <add>, %836, %cst_257 [1] : vector<8x128xf32> to vector<8xf32>
    %839 = vector.shape_cast %838 : vector<8xf32> to vector<8x1xf32>
    %cst_258 = arith.constant 1.280000e+02 : f32
    %840 = vector.broadcast %cst_258 : f32 to vector<8x1xf32>
    %841 = arith.divf %839, %840 : vector<8x1xf32>
    %842 = vector.broadcast %841 : vector<8x1xf32> to vector<8x128xf32>
    %843 = arith.subf %836, %842 : vector<8x128xf32>
    %844 = arith.mulf %843, %843 : vector<8x128xf32>
    %cst_259 = arith.constant dense<0.000000e+00> : vector<8xf32>
    %845 = vector.multi_reduction <add>, %844, %cst_259 [1] : vector<8x128xf32> to vector<8xf32>
    %846 = vector.shape_cast %845 : vector<8xf32> to vector<8x1xf32>
    %cst_260 = arith.constant 1.280000e+02 : f32
    %847 = vector.broadcast %cst_260 : f32 to vector<8x1xf32>
    %848 = arith.divf %846, %847 : vector<8x1xf32>
    %cst_261 = arith.constant 9.99999974E-6 : f32
    %849 = vector.broadcast %cst_261 : f32 to vector<8x1xf32>
    %850 = arith.addf %848, %849 : vector<8x1xf32>
    %851 = math.rsqrt %850 : vector<8x1xf32>
    %852 = vector.broadcast %851 : vector<8x1xf32> to vector<8x128xf32>
    %853 = arith.mulf %843, %852 : vector<8x128xf32>
    %854 = arith.mulf %853, %91 : vector<8x128xf32>
    %855 = arith.addf %854, %95 : vector<8x128xf32>
    %856 = arith.addf %837, %855 : vector<8x128xf32>
    %c56_262 = arith.constant 56 : index
    %c0_263 = arith.constant 0 : index
    %857 = vector.load %arg17[%c56_262, %c0_263] : memref<64x128xf32, #tpu.memory_space<vmem>>, vector<8x128xf32>
    tpu.vector_store %arg17[%c56_262, %c0_263], %856 {strides = array<i32>} : memref<64x128xf32, #tpu.memory_space<vmem>>, vector<8x128xf32>,
    %c0_264 = arith.constant 0 : index
    %c0_265 = arith.constant 0 : index
    %858 = vector.load %arg17[%c0_264, %c0_265] : memref<64x128xf32, #tpu.memory_space<vmem>>, vector<64x128xf32>
    %c0_266 = arith.constant 0 : index
    %c0_267 = arith.constant 0 : index
    %859 = vector.load %arg12[%c0_266, %c0_267] : memref<128x128xbf16, #tpu.memory_space<vmem>>, vector<128x128xbf16>
    %860 = arith.truncf %858 : vector<64x128xf32> to vector<64x128xbf16>
    %cst_268 = arith.constant dense<0.000000e+00> : vector<64x128xf32>
    %861 = tpu.matmul %860, %859, %cst_268 {dimension_numbers = #tpu.dot_dimension_numbers<[1], [0], [0], [1], [0, 0, 1, 1], [], []>} : vector<64x128xbf16>, vector<128x128xbf16>, vector<64x128xf32> -> vector<64x128xf32>
    %c0_269 = arith.constant 0 : index
    %c0_270 = arith.constant 0 : index
    %862 = vector.load %arg13[%c0_269, %c0_270] : memref<1x128xf32, #tpu.memory_space<vmem>>, vector<1x128xf32>
    %863 = vector.broadcast %862 : vector<1x128xf32> to vector<64x128xf32>
    %864 = arith.addf %861, %863 : vector<64x128xf32>
    %865 = arith.negf %864 : vector<64x128xf32>
    %866 = math.exp %865 : vector<64x128xf32>
    %cst_271 = arith.constant 1.000000e+00 : f32
    %867 = vector.broadcast %cst_271 : f32 to vector<64x128xf32>
    %868 = arith.addf %867, %866 : vector<64x128xf32>
    %869 = arith.divf %867, %868 : vector<64x128xf32>
    %c0_272 = arith.constant 0 : index
    %c0_273 = arith.constant 0 : index
    %870 = vector.load %arg14[%c0_272, %c0_273] : memref<64x128xf32, #tpu.memory_space<vmem>>, vector<64x128xf32>
    tpu.vector_store %arg14[%c0_272, %c0_273], %869 {strides = array<i32>} : memref<64x128xf32, #tpu.memory_space<vmem>>, vector<64x128xf32>,
    return
  }
}

</mosaic_0001>

<llo_original>
// kernel: unet2_forward.1
$region0: #{unet2_forward.1}
  #allocation0 [shape = 'u32[]', space=smem, size = 0x4, offset = 0x4, fixed_abs, tag = 'smem constant byte address 0x4 - core index']
  #allocation1 [shape = 'u32[144,128]{1,0:T(1,128)}', space=vmem, size = 0x12000, scoped, tag = 'internal scratch']
  #allocation2 [shape = 'f32[72,128]{1,0:T(8,128)}', space=vmem, size = 0x9000, scoped, tag = 'scratch operand']
  #allocation3 [shape = 'f32[64,384]{1,0:T(8,128)}', space=vmem, size = 0x18000, scoped, tag = 'scratch operand']
  #allocation4 [shape = 'f32[64,128]{1,0:T(8,128)}', space=vmem, size = 0x8000, scoped, tag = 'scratch operand']
  %s0 = inlined_call_operand.vmem [shape: f32[72,32], index: 0, kind: input, shape index: {}]
  %s1 = inlined_call_operand.hbm [shape: bf16[32,256], index: 1, kind: input, shape index: {}]
  %s2 = inlined_call_operand.hbm [shape: bf16[3,128,256], index: 2, kind: input, shape index: {}]
  %s3 = inlined_call_operand.vmem [shape: f32[4,1,128], index: 3, kind: input, shape index: {}]
  %s4 = inlined_call_operand.vmem [shape: bf16[128,128], index: 4, kind: input, shape index: {}]
  %s5 = inlined_call_operand.hbm [shape: bf16[128,384], index: 5, kind: input, shape index: {}]
  %s6 = inlined_call_operand.hbm [shape: bf16[128,384], index: 6, kind: input, shape index: {}]
  %s7 = inlined_call_operand.hbm [shape: bf16[256,512], index: 7, kind: input, shape index: {}]
  %s8 = inlined_call_operand.hbm [shape: f32[1,384], index: 8, kind: input, shape index: {}]
  %s9 = inlined_call_operand.hbm [shape: f32[1,384], index: 9, kind: input, shape index: {}]
  %s10 = inlined_call_operand.hbm [shape: f32[1,512], index: 10, kind: input, shape index: {}]
  %s11 = inlined_call_operand.vmem [shape: f32[4,1,128], index: 11, kind: input, shape index: {}]
  %s12 = inlined_call_operand.vmem [shape: bf16[128,128], index: 12, kind: input, shape index: {}]
  %s13 = inlined_call_operand.vmem [shape: f32[1,128], index: 13, kind: input, shape index: {}]
  %s14 = inlined_call_operand.vmem [shape: f32[64,128], index: 14, kind: output, shape index: {}]
  %s15 = sld [smem:[#allocation0]]
  $region98: #{unet2_forward.1} parent=0
    _
  %s17 = ssub.s32 1, %s15
  %s18 = scalar_select 0, %s17, %s15
  $region1: #{unet2_forward.1} parent=0
    #allocation5 [shape = 'u8[16384]{0}', space=vmem, size = 0x4000, scoped, tag = 'input window, operand 1, single buffered']
    #allocation6 [shape = 's32[1]{0}', space=sflag, size = 0x4, scoped, tag = 'scoped memory for unet2_forward.1']
    #allocation7 [shape = 'u8[196608]{0}', space=vmem, size = 0x30000, scoped, tag = 'input window, operand 2, single buffered']
    #allocation8 [shape = 's32[1]{0}', space=sflag, size = 0x4, scoped, tag = 'scoped memory for unet2_forward.1']
    #allocation9 [shape = 'u8[98304]{0}', space=vmem, size = 0x18000, scoped, tag = 'input window, operand 5, single buffered']
    #allocation10 [shape = 'u8[98304]{0}', space=vmem, size = 0x18000, scoped, tag = 'input window, operand 6, single buffered']
    #allocation11 [shape = 's32[1]{0}', space=sflag, size = 0x4, scoped, tag = 'scoped memory for unet2_forward.1']
    #allocation12 [shape = 'u8[262144]{0}', space=vmem, size = 0x40000, scoped, tag = 'input window, operand 7, single buffered']
    #allocation13 [shape = 'u8[1536]{0}', space=vmem, size = 0x800, scoped, tag = 'input window, operand 8, single buffered']
    #allocation14 [shape = 's32[1]{0}', space=sflag, size = 0x4, scoped, tag = 'scoped memory for unet2_forward.1']
    #allocation15 [shape = 'u8[1536]{0}', space=vmem, size = 0x800, scoped, tag = 'input window, operand 9, single buffered']
    #allocation16 [shape = 'u8[2048]{0}', space=vmem, size = 0x800, scoped, tag = 'input window, operand 10, single buffered']
    #allocation17 [shape = 's32[1]{0}', space=sflag, size = 0x4, scoped, tag = 'scoped memory for unet2_forward.1']
    %19 = vsyncpa [#allocation6], 0
    %20 = vsyncpa [#allocation8], 0
    %21 = vsyncpa [#allocation11], 0
    %22 = vsyncpa [#allocation14], 0
    %23 = vsyncpa [#allocation17], 0
    // Predicated region
    $region2: #{unet2_forward.1} parent=1 // pred_check
      _
    $region3: #{unet2_forward.1} parent=1 // pred_check_branch
      %25 = sbr.rel (0) target = $region5
    $region4: #{unet2_forward.1} parent=1 // pred_region
      _
    $region5: #{unet2_forward.1} parent=1 // pred_fallthru
      _
    // Predicated region
    $region6: #{unet2_forward.1} parent=1 // pred_check
      _
    $region7: #{unet2_forward.1} parent=1 // pred_check_branch
      %27 = sbr.rel (0) target = $region9
    $region8: #{unet2_forward.1} parent=1 // pred_region
      %s29 = ssub.s32 512, 512
      %30 = vsyncadd [#allocation6], %s29
      %s31 = sshll.u32 [#allocation5], 4
      %s32 = int_to_ptr.vmem [resolvable:$true] %s31
      %37 = dma.hbm_to_vmem [thread:$0]  %s1, 512, %s32, [#allocation6], 128, 128, 8
    $region9: #{unet2_forward.1} parent=1 // pred_fallthru
      _
    // Predicated region
    $region10: #{unet2_forward.1} parent=1 // pred_check
      _
    $region11: #{unet2_forward.1} parent=1 // pred_check_branch
      %39 = sbr.rel (0) target = $region13
    $region12: #{unet2_forward.1} parent=1 // pred_region
      %s41 = ssub.s32 6144, 6144
      %42 = vsyncadd [#allocation8], %s41
      %s43 = sshll.u32 [#allocation7], 4
      %s44 = int_to_ptr.vmem [resolvable:$true] %s43
      %49 = dma.hbm_to_vmem [thread:$0]  %s2, 6144, %s44, [#allocation8], 128, 128, 8
    $region13: #{unet2_forward.1} parent=1 // pred_fallthru
      _
    // Predicated region
    $region14: #{unet2_forward.1} parent=1 // pred_check
      _
    $region15: #{unet2_forward.1} parent=1 // pred_check_branch
      %51 = sbr.rel (0) target = $region17
    $region16: #{unet2_forward.1} parent=1 // pred_region
      _
    $region17: #{unet2_forward.1} parent=1 // pred_fallthru
      _
    // Predicated region
    $region18: #{unet2_forward.1} parent=1 // pred_check
      _
    $region19: #{unet2_forward.1} parent=1 // pred_check_branch
      %53 = sbr.rel (0) target = $region21
    $region20: #{unet2_forward.1} parent=1 // pred_region
      _
    $region21: #{unet2_forward.1} parent=1 // pred_fallthru
      _
    // Predicated region
    $region22: #{unet2_forward.1} parent=1 // pred_check
      _
    $region23: #{unet2_forward.1} parent=1 // pred_check_branch
      %55 = sbr.rel (0) target = $region25
    $region24: #{unet2_forward.1} parent=1 // pred_region
      %s57 = ssub.s32 3072, 3072
      %58 = vsyncadd [#allocation8], %s57
      %s59 = sshll.u32 [#allocation9], 4
      %s60 = int_to_ptr.vmem [resolvable:$true] %s59
      %65 = dma.hbm_to_vmem [thread:$0]  %s5, 3072, %s60, [#allocation8], 192, 192, 12
    $region25: #{unet2_forward.1} parent=1 // pred_fallthru
      _
    // Predicated region
    $region26: #{unet2_forward.1} parent=1 // pred_check
      _
    $region27: #{unet2_forward.1} parent=1 // pred_check_branch
      %67 = sbr.rel (0) target = $region29
    $region28: #{unet2_forward.1} parent=1 // pred_region
      %s69 = ssub.s32 3072, 3072
      %70 = vsyncadd [#allocation11], %s69
      %s71 = sshll.u32 [#allocation10], 4
      %s72 = int_to_ptr.vmem [resolvable:$true] %s71
      %77 = dma.hbm_to_vmem [thread:$0]  %s6, 3072, %s72, [#allocation11], 192, 192, 12
    $region29: #{unet2_forward.1} parent=1 // pred_fallthru
      _
    // Predicated region
    $region30: #{unet2_forward.1} parent=1 // pred_check
      _
    $region31: #{unet2_forward.1} parent=1 // pred_check_branch
      %79 = sbr.rel (0) target = $region33
    $region32: #{unet2_forward.1} parent=1 // pred_region
      %s81 = ssub.s32 8192, 8192
      %82 = vsyncadd [#allocation11], %s81
      %s83 = sshll.u32 [#allocation12], 4
      %s84 = int_to_ptr.vmem [resolvable:$true] %s83
      %89 = dma.hbm_to_vmem [thread:$0]  %s7, 8192, %s84, [#allocation11], 256, 256, 16
    $region33: #{unet2_forward.1} parent=1 // pred_fallthru
      _
    // Predicated region
    $region34: #{unet2_forward.1} parent=1 // pred_check
      _
    $region35: #{unet2_forward.1} parent=1 // pred_check_branch
      %91 = sbr.rel (0) target = $region37
    $region36: #{unet2_forward.1} parent=1 // pred_region
      %s93 = ssub.s32 48, 48
      %94 = vsyncadd [#allocation14], %s93
      %s96 = sshll.u32 [#allocation13], 4
      %s97 = int_to_ptr.vmem [resolvable:$true] %s96
      %99 = dma.hbm_to_vmem [thread:$0]  %s8, 48, %s97, [#allocation14]
    $region37: #{unet2_forward.1} parent=1 // pred_fallthru
      _
    // Predicated region
    $region38: #{unet2_forward.1} parent=1 // pred_check
      _
    $region39: #{unet2_forward.1} parent=1 // pred_check_branch
      %101 = sbr.rel (0) target = $region41
    $region40: #{unet2_forward.1} parent=1 // pred_region
      %s103 = ssub.s32 48, 48
      %104 = vsyncadd [#allocation14], %s103
      %s106 = sshll.u32 [#allocation15], 4
      %s107 = int_to_ptr.vmem [resolvable:$true] %s106
      %109 = dma.hbm_to_vmem [thread:$0]  %s9, 48, %s107, [#allocation14]
    $region41: #{unet2_forward.1} parent=1 // pred_fallthru
      _
    // Predicated region
    $region42: #{unet2_forward.1} parent=1 // pred_check
      _
    $region43: #{unet2_forward.1} parent=1 // pred_check_branch
      %111 = sbr.rel (0) target = $region45
    $region44: #{unet2_forward.1} parent=1 // pred_region
      %s113 = ssub.s32 64, 64
      %114 = vsyncadd [#allocation17], %s113
      %s116 = sshll.u32 [#allocation16], 4
      %s117 = int_to_ptr.vmem [resolvable:$true] %s116
      %119 = dma.hbm_to_vmem [thread:$0]  %s10, 64, %s117, [#allocation17]
    $region45: #{unet2_forward.1} parent=1 // pred_fallthru
      _
    // Predicated region
    $region46: #{unet2_forward.1} parent=1 // pred_check
      _
    $region47: #{unet2_forward.1} parent=1 // pred_check_branch
      %121 = sbr.rel (0) target = $region49
    $region48: #{unet2_forward.1} parent=1 // pred_region
      _
    $region49: #{unet2_forward.1} parent=1 // pred_fallthru
      _
    // Predicated region
    $region50: #{unet2_forward.1} parent=1 // pred_check
      _
    $region51: #{unet2_forward.1} parent=1 // pred_check_branch
      %123 = sbr.rel (0) target = $region53
    $region52: #{unet2_forward.1} parent=1 // pred_region
      _
    $region53: #{unet2_forward.1} parent=1 // pred_fallthru
      _
    // Predicated region
    $region54: #{unet2_forward.1} parent=1 // pred_check
      _
    $region55: #{unet2_forward.1} parent=1 // pred_check_branch
      %125 = sbr.rel (0) target = $region57
    $region56: #{unet2_forward.1} parent=1 // pred_region
      _
    $region57: #{unet2_forward.1} parent=1 // pred_fallthru
      _
    // Predicated region
    $region58: #{unet2_forward.1} parent=1 // pred_check
      _
    $region59: #{unet2_forward.1} parent=1 // pred_check_branch
      %127 = sbr.rel (0) target = $region61
    $region60: #{unet2_forward.1} parent=1 // pred_region
      %128 = dma.done [#allocation6], 512
    $region61: #{unet2_forward.1} parent=1 // pred_fallthru
      _
    // Predicated region
    $region62: #{unet2_forward.1} parent=1 // pred_check
      _
    $region63: #{unet2_forward.1} parent=1 // pred_check_branch
      %130 = sbr.rel (0) target = $region65
    $region64: #{unet2_forward.1} parent=1 // pred_region
      %131 = dma.done [#allocation8], 6144
    $region65: #{unet2_forward.1} parent=1 // pred_fallthru
      _
    // Predicated region
    $region66: #{unet2_forward.1} parent=1 // pred_check
      _
    $region67: #{unet2_forward.1} parent=1 // pred_check_branch
      %133 = sbr.rel (0) target = $region69
    $region68: #{unet2_forward.1} parent=1 // pred_region
      %134 = dma.done [#allocation8], 3072
    $region69: #{unet2_forward.1} parent=1 // pred_fallthru
      _
    // Predicated region
    $region70: #{unet2_forward.1} parent=1 // pred_check
      _
    $region71: #{unet2_forward.1} parent=1 // pred_check_branch
      %136 = sbr.rel (0) target = $region73
    $region72: #{unet2_forward.1} parent=1 // pred_region
      %137 = dma.done [#allocation11], 3072
    $region73: #{unet2_forward.1} parent=1 // pred_fallthru
      _
    // Predicated region
    $region74: #{unet2_forward.1} parent=1 // pred_check
      _
    $region75: #{unet2_forward.1} parent=1 // pred_check_branch
      %139 = sbr.rel (0) target = $region77
    $region76: #{unet2_forward.1} parent=1 // pred_region
      %140 = dma.done [#allocation11], 8192
    $region77: #{unet2_forward.1} parent=1 // pred_fallthru
      _
    // Predicated region
    $region78: #{unet2_forward.1} parent=1 // pred_check
      _
    $region79: #{unet2_forward.1} parent=1 // pred_check_branch
      %142 = sbr.rel (0) target = $region81
    $region80: #{unet2_forward.1} parent=1 // pred_region
      %143 = dma.done [#allocation14], 48
    $region81: #{unet2_forward.1} parent=1 // pred_fallthru
      _
    // Predicated region
    $region82: #{unet2_forward.1} parent=1 // pred_check
      _
    $region83: #{unet2_forward.1} parent=1 // pred_check_branch
      %145 = sbr.rel (0) target = $region85
    $region84: #{unet2_forward.1} parent=1 // pred_region
      %146 = dma.done [#allocation14], 48
    $region85: #{unet2_forward.1} parent=1 // pred_fallthru
      _
    // Predicated region
    $region86: #{unet2_forward.1} parent=1 // pred_check
      _
    $region87: #{unet2_forward.1} parent=1 // pred_check_branch
      %148 = sbr.rel (0) target = $region89
    $region88: #{unet2_forward.1} parent=1 // pred_region
      %149 = dma.done [#allocation17], 64
    $region89: #{unet2_forward.1} parent=1 // pred_fallthru
      _
    %151 = vst [vmem:[#allocation2] sm:$0xff] 0.0
    %v152 = vld [vmem:[%s0] sm:$0xff]
    %v153 = vld [vmem:[%s0 + $0x8] sm:$0xff]
    %v154 = vld [vmem:[%s0 + $0x10] sm:$0xff]
    %v155 = vld [vmem:[%s0 + $0x18] sm:$0xff]
    %v156 = vld [vmem:[%s0 + $0x20] sm:$0xff]
    %v157 = vld [vmem:[%s0 + $0x28] sm:$0xff]
    %v158 = vld [vmem:[%s0 + $0x30] sm:$0xff]
    %v159 = vld [vmem:[%s0 + $0x38] sm:$0xff]
    %v160 = vld [vmem:[%s0 + $0x40] sm:$0xff]
    %v161 = vld [vmem:[#allocation5] sm:$0xff]
    %v162 = vld [vmem:[#allocation5 + $0x8] sm:$0xff]
    %v163 = vld [vmem:[#allocation5 + $0x10] sm:$0xff]
    %v164 = vld [vmem:[#allocation5 + $0x18] sm:$0xff]
    %v165 = vpack.c.bf16 %v153, %v152
    %v166 = vpack.c.bf16 %v155, %v154
    %v167 = vpack.c.bf16 %v157, %v156
    %v168 = vpack.c.bf16 %v159, %v158
    %v169 = vpack.c.bf16 %v160, %v160
    %v174 = vunpack.c.l.b16 %v161
    %v175 = vunpack.c.h.b16 %v161
    %v176 = vunpack.c.l.b16 %v162
    %v177 = vunpack.c.h.b16 %v162
    %v178 = vunpack.c.l.b16 %v163
    %v179 = vunpack.c.h.b16 %v163
    %v180 = vunpack.c.l.b16 %v164
    %v181 = vunpack.c.h.b16 %v164
    %v182 = vpack.c.b16 %v176, %v174
    %v183 = vpack.c.b16 %v177, %v175
    %v184 = vpack.c.b16 %v180, %v178
    %v185 = vpack.c.b16 %v181, %v179
    %vm190 = vcmask 261120
    %v192 = vsel %vm190, %v165, 0
    %v195 = vsel %vm190, %v166, 0
    %v198 = vsel %vm190, %v167, 0
    %v201 = vsel %vm190, %v168, 0
    %v204 = vsel %vm190, %v169, 0
    %206 = vmatprep.subr.bf16.mxu0 %v183
    %207 = vmatpush1.bf16.msra.mxu0 %v182
    %208 = vmatprep.subr.bf16.mxu0 %v185
    %209 = vmatpush1.bf16.msra.mxu0 %v184
    %210 = vmatprep.subr.bf16.mxu0 0
    %211 = vmatpush1.bf16.msra.mxu0 0
    %212 = vmatprep.subr.bf16.mxu0 0
    %213 = vmatpush1.bf16.msra.mxu0 0
    %214 = vmatprep.subr.bf16.mxu0 0
    %215 = vmatpush1.bf16.msra.mxu0 0
    %216 = vmatprep.subr.bf16.mxu0 0
    %217 = vmatpush1.bf16.msra.mxu0 0
    %218 = vmatprep.subr.bf16.mxu0 0
    %219 = vmatpush1.bf16.msra.mxu0 0
    %220 = vmatprep.subr.bf16.mxu0 0
    %221 = vmatpush1.bf16.msra.mxu0 0
    %222 = vmatprep.subr.bf16.mxu0 0
    %223 = vmatpush1.bf16.msra.mxu0 0
    %224 = vmatprep.subr.bf16.mxu0 0
    %225 = vmatpush1.bf16.msra.mxu0 0
    %226 = vmatprep.subr.bf16.mxu0 0
    %227 = vmatpush1.bf16.msra.mxu0 0
    %228 = vmatprep.subr.bf16.mxu0 0
    %229 = vmatpush1.bf16.msra.mxu0 0
    %230 = vmatprep.subr.bf16.mxu0 0
    %231 = vmatpush1.bf16.msra.mxu0 0
    %232 = vmatprep.subr.bf16.mxu0 0
    %233 = vmatpush1.bf16.msra.mxu0 0
    %234 = vmatprep.subr.bf16.mxu0 0
    %235 = vmatpush1.bf16.msra.mxu0 0
    %236 = vmatprep.subr.bf16.mxu0 0
    %237 = vmatpush1.bf16.msra.mxu0 0
    %238 = vmatprep.mubr.bf16.mxu0 0
    %239 = vmatmul.mubr.bf16.gmra.mrb[0].mxu0 %v192
    %v240 = vpop.f32.mrb[0].mxu0
    %v241 = vadd.f32 0.0, %v240
    %v242 = vpop.f32.mrb[0].mxu0
    %v243 = vpop.f32.mrb[0].mxu0
    %v244 = vadd.f32 0.0, %v243
    %v245 = vpop.f32.mrb[0].mxu0
    %v246 = vadd.f32 0.0, %v245
    %247 = vmatprep.mubr.bf16.mxu0 0
    %248 = vmatmul.mubr.bf16.gmra.mrb[0].mxu0 %v195
    %v249 = vpop.f32.mrb[0].mxu0
    %v250 = vadd.f32 0.0, %v249
    %v251 = vpop.f32.mrb[0].mxu0
    %v252 = vadd.f32 0.0, %v251
    %v253 = vpop.f32.mrb[0].mxu0
    %v254 = vadd.f32 0.0, %v253
    %v255 = vpop.f32.mrb[0].mxu0
    %v256 = vadd.f32 0.0, %v255
    %257 = vmatprep.mubr.bf16.mxu0 0
    %258 = vmatmul.mubr.bf16.gmra.mrb[0].mxu0 %v198
    %v259 = vpop.f32.mrb[0].mxu0
    %v260 = vadd.f32 0.0, %v259
    %v261 = vpop.f32.mrb[0].mxu0
    %v262 = vadd.f32 0.0, %v261
    %v263 = vpop.f32.mrb[0].mxu0
    %v264 = vadd.f32 0.0, %v263
    %v265 = vpop.f32.mrb[0].mxu0
    %v266 = vadd.f32 0.0, %v265
    %267 = vmatprep.mubr.bf16.mxu0 0
    %268 = vmatmul.mubr.bf16.gmra.mrb[0].mxu0 %v201
    %v269 = vpop.f32.mrb[0].mxu0
    %v270 = vadd.f32 0.0, %v269
    %v271 = vpop.f32.mrb[0].mxu0
    %v272 = vadd.f32 0.0, %v271
    %v273 = vpop.f32.mrb[0].mxu0
    %v274 = vadd.f32 0.0, %v273
    %v275 = vpop.f32.mrb[0].mxu0
    %v276 = vadd.f32 0.0, %v275
    %277 = vmatprep.mubr.bf16.mxu0 0
    %278 = vmatmul.mubr.bf16.gmra.mrb[0].mxu0 %v204
    %v279 = vpop.f32.mrb[0].mxu0
    %v280 = vpop.f32.mrb[0].mxu0
    %v281 = vadd.f32 0.0, %v280
    %v282 = vpop.f32.mrb[0].mxu0
    %v283 = vpop.f32.mrb[0].mxu0
    %284 = vdwg.mxu0
    %v285 = vadd.f32 %v241, %v246
    %v286 = vadd.f32 %v244, %v252
    %v287 = vadd.f32 %v250, %v256
    %v288 = vadd.f32 %v254, %v262
    %v289 = vadd.f32 %v260, %v266
    %v290 = vadd.f32 %v264, %v272
    %v291 = vadd.f32 %v270, %v276
    %v292 = vadd.f32 %v274, %v281
    %v293 = vld [vmem:[%s3] sm:$0x1]
    %v295 = vlaneseq
    %v296 = vshrl.u32 %v295, 7
    %v297 = vsub.s32 0, %v296
    %v298 = vrot.slane %v293, %v297
    %v300 = vadd.f32 %v285, %v298
    %v301 = vadd.f32 %v286, %v298
    %v302 = vadd.f32 %v287, %v298
    %v303 = vadd.f32 %v288, %v298
    %v304 = vadd.f32 %v289, %v298
    %v305 = vadd.f32 %v290, %v298
    %v306 = vadd.f32 %v291, %v298
    %v307 = vadd.f32 %v292, %v298
    %v308 = vmax.f32 %v300, 0.0
    %v309 = vmax.f32 %v301, 0.0
    %v310 = vmax.f32 %v302, 0.0
    %v311 = vmax.f32 %v303, 0.0
    %v312 = vmax.f32 %v304, 0.0
    %v313 = vmax.f32 %v305, 0.0
    %v314 = vmax.f32 %v306, 0.0
    %v315 = vmax.f32 %v307, 0.0
    %316 = vst [vmem:[#allocation2 + $0x8] sm:$0xff] %v308
    %317 = vst [vmem:[#allocation2 + $0x10] sm:$0xff] %v309
    %318 = vst [vmem:[#allocation2 + $0x18] sm:$0xff] %v310
    %319 = vst [vmem:[#allocation2 + $0x20] sm:$0xff] %v311
    %320 = vst [vmem:[#allocation2 + $0x28] sm:$0xff] %v312
    %321 = vst [vmem:[#allocation2 + $0x30] sm:$0xff] %v313
    %322 = vst [vmem:[#allocation2 + $0x38] sm:$0xff] %v314
    %323 = vst [vmem:[#allocation2 + $0x40] sm:$0xff] %v315
    %v324 = vld [vmem:[#allocation2] sm:$0xff]
    %v325 = vld [vmem:[#allocation2 + $0x8] sm:$0xff]
    %v326 = vld [vmem:[#allocation2 + $0x10] sm:$0xff]
    %v327 = vld [vmem:[#allocation2 + $0x18] sm:$0xff]
    %v328 = vld [vmem:[#allocation2 + $0x20] sm:$0xff]
    %v329 = vld [vmem:[#allocation2 + $0x28] sm:$0xff]
    %v330 = vld [vmem:[#allocation2 + $0x30] sm:$0xff]
    %v331 = vld [vmem:[#allocation2 + $0x38] sm:$0xff]
    %v332 = vld [vmem:[#allocation2 + $0x40] sm:$0xff]
    %v333 = vld [vmem:[#allocation7] sm:$0xff]
    %v334 = vld [vmem:[#allocation7 + $0x8] sm:$0xff]
    %v335 = vld [vmem:[#allocation7 + $0x10] sm:$0xff]
    %v336 = vld [vmem:[#allocation7 + $0x18] sm:$0xff]
    %v337 = vld [vmem:[#allocation7 + $0x20] sm:$0xff]
    %v338 = vld [vmem:[#allocation7 + $0x28] sm:$0xff]
    %v339 = vld [vmem:[#allocation7 + $0x30] sm:$0xff]
    %v340 = vld [vmem:[#allocation7 + $0x38] sm:$0xff]
    %v341 = vld [vmem:[#allocation7 + $0x40] sm:$0xff]
    %v342 = vld [vmem:[#allocation7 + $0x48] sm:$0xff]
    %v343 = vld [vmem:[#allocation7 + $0x50] sm:$0xff]
    %v344 = vld [vmem:[#allocation7 + $0x58] sm:$0xff]
    %v345 = vld [vmem:[#allocation7 + $0x60] sm:$0xff]
    %v346 = vld [vmem:[#allocation7 + $0x68] sm:$0xff]
    %v347 = vld [vmem:[#allocation7 + $0x70] sm:$0xff]
    %v348 = vld [vmem:[#allocation7 + $0x78] sm:$0xff]
    %v349 = vpack.c.bf16 %v325, %v324
    %v350 = vpack.c.bf16 %v327, %v326
    %v351 = vpack.c.bf16 %v329, %v328
    %v352 = vpack.c.bf16 %v331, %v330
    %v353 = vpack.c.bf16 %v332, %v332
    %v370 = vunpack.c.l.b16 %v333
    %v371 = vunpack.c.h.b16 %v333
    %v372 = vunpack.c.l.b16 %v334
    %v373 = vunpack.c.h.b16 %v334
    %v374 = vunpack.c.l.b16 %v335
    %v375 = vunpack.c.h.b16 %v335
    %v376 = vunpack.c.l.b16 %v336
    %v377 = vunpack.c.h.b16 %v336
    %v378 = vunpack.c.l.b16 %v337
    %v379 = vunpack.c.h.b16 %v337
    %v380 = vunpack.c.l.b16 %v338
    %v381 = vunpack.c.h.b16 %v338
    %v382 = vunpack.c.l.b16 %v339
    %v383 = vunpack.c.h.b16 %v339
    %v384 = vunpack.c.l.b16 %v340
    %v385 = vunpack.c.h.b16 %v340
    %v386 = vunpack.c.l.b16 %v341
    %v387 = vunpack.c.h.b16 %v341
    %v388 = vunpack.c.l.b16 %v342
    %v389 = vunpack.c.h.b16 %v342
    %v390 = vunpack.c.l.b16 %v343
    %v391 = vunpack.c.h.b16 %v343
    %v392 = vunpack.c.l.b16 %v344
    %v393 = vunpack.c.h.b16 %v344
    %v394 = vunpack.c.l.b16 %v345
    %v395 = vunpack.c.h.b16 %v345
    %v396 = vunpack.c.l.b16 %v346
    %v397 = vunpack.c.h.b16 %v346
    %v398 = vunpack.c.l.b16 %v347
    %v399 = vunpack.c.h.b16 %v347
    %v400 = vunpack.c.l.b16 %v348
    %v401 = vunpack.c.h.b16 %v348
    %v402 = vpack.c.b16 %v372, %v370
    %v403 = vpack.c.b16 %v373, %v371
    %v404 = vpack.c.b16 %v376, %v374
    %v405 = vpack.c.b16 %v377, %v375
    %v406 = vpack.c.b16 %v380, %v378
    %v407 = vpack.c.b16 %v381, %v379
    %v408 = vpack.c.b16 %v384, %v382
    %v409 = vpack.c.b16 %v385, %v383
    %v410 = vpack.c.b16 %v388, %v386
    %v411 = vpack.c.b16 %v389, %v387
    %v412 = vpack.c.b16 %v392, %v390
    %v413 = vpack.c.b16 %v393, %v391
    %v414 = vpack.c.b16 %v396, %v394
    %v415 = vpack.c.b16 %v397, %v395
    %v416 = vpack.c.b16 %v400, %v398
    %v417 = vpack.c.b16 %v401, %v399
    %434 = vmatprep.subr.bf16.mxu0 %v403
    %435 = vmatpush1.bf16.msra.mxu0 %v402
    %436 = vmatprep.subr.bf16.mxu0 %v405
    %437 = vmatpush1.bf16.msra.mxu0 %v404
    %438 = vmatprep.subr.bf16.mxu0 %v407
    %439 = vmatpush1.bf16.msra.mxu0 %v406
    %440 = vmatprep.subr.bf16.mxu0 %v409
    %441 = vmatpush1.bf16.msra.mxu0 %v408
    %442 = vmatprep.subr.bf16.mxu0 %v411
    %443 = vmatpush1.bf16.msra.mxu0 %v410
    %444 = vmatprep.subr.bf16.mxu0 %v413
    %445 = vmatpush1.bf16.msra.mxu0 %v412
    %446 = vmatprep.subr.bf16.mxu0 %v415
    %447 = vmatpush1.bf16.msra.mxu0 %v414
    %448 = vmatprep.subr.bf16.mxu0 %v417
    %449 = vmatpush1.bf16.msra.mxu0 %v416
    %450 = vmatprep.subr.bf16.mxu0 0
    %451 = vmatpush1.bf16.msra.mxu0 0
    %452 = vmatprep.subr.bf16.mxu0 0
    %453 = vmatpush1.bf16.msra.mxu0 0
    %454 = vmatprep.subr.bf16.mxu0 0
    %455 = vmatpush1.bf16.msra.mxu0 0
    %456 = vmatprep.subr.bf16.mxu0 0
    %457 = vmatpush1.bf16.msra.mxu0 0
    %458 = vmatprep.subr.bf16.mxu0 0
    %459 = vmatpush1.bf16.msra.mxu0 0
    %460 = vmatprep.subr.bf16.mxu0 0
    %461 = vmatpush1.bf16.msra.mxu0 0
    %462 = vmatprep.subr.bf16.mxu0 0
    %463 = vmatpush1.bf16.msra.mxu0 0
    %464 = vmatprep.subr.bf16.mxu0 0
    %465 = vmatpush1.bf16.msra.mxu0 0
    %466 = vmatprep.mubr.bf16.mxu0 0
    %467 = vmatmul.mubr.bf16.gmra.mrb[0].mxu0 %v349
    %v468 = vpop.f32.mrb[0].mxu0
    %v469 = vadd.f32 0.0, %v468
    %v470 = vpop.f32.mrb[0].mxu0
    %v471 = vpop.f32.mrb[0].mxu0
    %v472 = vadd.f32 0.0, %v471
    %v473 = vpop.f32.mrb[0].mxu0
    %v474 = vadd.f32 0.0, %v473
    %475 = vmatprep.mubr.bf16.mxu0 0
    %476 = vmatmul.mubr.bf16.gmra.mrb[0].mxu0 %v350
    %v477 = vpop.f32.mrb[0].mxu0
    %v478 = vadd.f32 0.0, %v477
    %v479 = vpop.f32.mrb[0].mxu0
    %v480 = vadd.f32 0.0, %v479
    %v481 = vpop.f32.mrb[0].mxu0
    %v482 = vadd.f32 0.0, %v481
    %v483 = vpop.f32.mrb[0].mxu0
    %v484 = vadd.f32 0.0, %v483
    %485 = vmatprep.mubr.bf16.mxu0 0
    %486 = vmatmul.mubr.bf16.gmra.mrb[0].mxu0 %v351
    %v487 = vpop.f32.mrb[0].mxu0
    %v488 = vadd.f32 0.0, %v487
    %v489 = vpop.f32.mrb[0].mxu0
    %v490 = vadd.f32 0.0, %v489
    %v491 = vpop.f32.mrb[0].mxu0
    %v492 = vadd.f32 0.0, %v491
    %v493 = vpop.f32.mrb[0].mxu0
    %v494 = vadd.f32 0.0, %v493
    %495 = vmatprep.mubr.bf16.mxu0 0
    %496 = vmatmul.mubr.bf16.gmra.mrb[0].mxu0 %v352
    %v497 = vpop.f32.mrb[0].mxu0
    %v498 = vadd.f32 0.0, %v497
    %v499 = vpop.f32.mrb[0].mxu0
    %v500 = vadd.f32 0.0, %v499
    %v501 = vpop.f32.mrb[0].mxu0
    %v502 = vadd.f32 0.0, %v501
    %v503 = vpop.f32.mrb[0].mxu0
    %v504 = vadd.f32 0.0, %v503
    %505 = vmatprep.mubr.bf16.mxu0 0
    %506 = vmatmul.mubr.bf16.gmra.mrb[0].mxu0 %v353
    %v507 = vpop.f32.mrb[0].mxu0
    %v508 = vpop.f32.mrb[0].mxu0
    %v509 = vadd.f32 0.0, %v508
    %v510 = vpop.f32.mrb[0].mxu0
    %v511 = vpop.f32.mrb[0].mxu0
    %512 = vdwg.mxu0
    %v513 = vadd.f32 %v469, %v474
    %v514 = vadd.f32 %v472, %v480
    %v515 = vadd.f32 %v478, %v484
    %v516 = vadd.f32 %v482, %v490
    %v517 = vadd.f32 %v488, %v494
    %v518 = vadd.f32 %v492, %v500
    %v519 = vadd.f32 %v498, %v504
    %v520 = vadd.f32 %v502, %v509
    %s521 = scalar_lea.vmem %s3, 1
    %v522 = vld [vmem:[%s521] sm:$0x1]
    %v524 = vlaneseq
    %v525 = vshrl.u32 %v524, 7
    %v526 = vsub.s32 0, %v525
    %v527 = vrot.slane %v522, %v526
    %v529 = vadd.f32 %v513, %v527
    %v530 = vadd.f32 %v514, %v527
    %v531 = vadd.f32 %v515, %v527
    %v532 = vadd.f32 %v516, %v527
    %v533 = vadd.f32 %v517, %v527
    %v534 = vadd.f32 %v518, %v527
    %v535 = vadd.f32 %v519, %v527
    %v536 = vadd.f32 %v520, %v527
    %v537 = vmax.f32 %v529, 0.0
    %v538 = vmax.f32 %v530, 0.0
    %v539 = vmax.f32 %v531, 0.0
    %v540 = vmax.f32 %v532, 0.0
    %v541 = vmax.f32 %v533, 0.0
    %v542 = vmax.f32 %v534, 0.0
    %v543 = vmax.f32 %v535, 0.0
    %v544 = vmax.f32 %v536, 0.0
    %545 = vst [vmem:[#allocation2 + $0x8] sm:$0xff] %v537
    %546 = vst [vmem:[#allocation2 + $0x10] sm:$0xff] %v538
    %547 = vst [vmem:[#allocation2 + $0x18] sm:$0xff] %v539
    %548 = vst [vmem:[#allocation2 + $0x20] sm:$0xff] %v540
    %549 = vst [vmem:[#allocation2 + $0x28] sm:$0xff] %v541
    %550 = vst [vmem:[#allocation2 + $0x30] sm:$0xff] %v542
    %551 = vst [vmem:[#allocation2 + $0x38] sm:$0xff] %v543
    %552 = vst [vmem:[#allocation2 + $0x40] sm:$0xff] %v544
    %v553 = vld [vmem:[#allocation2] sm:$0xff]
    %v554 = vld [vmem:[#allocation2 + $0x8] sm:$0xff]
    %v555 = vld [vmem:[#allocation2 + $0x10] sm:$0xff]
    %v556 = vld [vmem:[#allocation2 + $0x18] sm:$0xff]
    %v557 = vld [vmem:[#allocation2 + $0x20] sm:$0xff]
    %v558 = vld [vmem:[#allocation2 + $0x28] sm:$0xff]
    %v559 = vld [vmem:[#allocation2 + $0x30] sm:$0xff]
    %v560 = vld [vmem:[#allocation2 + $0x38] sm:$0xff]
    %v561 = vld [vmem:[#allocation2 + $0x40] sm:$0xff]
    %s562 = scalar_lea.vmem [#allocation7], 128
    %v563 = vld [vmem:[%s562] sm:$0xff]
    %v564 = vld [vmem:[%s562 + $0x8] sm:$0xff]
    %v565 = vld [vmem:[%s562 + $0x10] sm:$0xff]
    %v566 = vld [vmem:[%s562 + $0x18] sm:$0xff]
    %v567 = vld [vmem:[%s562 + $0x20] sm:$0xff]
    %v568 = vld [vmem:[%s562 + $0x28] sm:$0xff]
    %v569 = vld [vmem:[%s562 + $0x30] sm:$0xff]
    %v570 = vld [vmem:[%s562 + $0x38] sm:$0xff]
    %v571 = vld [vmem:[%s562 + $0x40] sm:$0xff]
    %v572 = vld [vmem:[%s562 + $0x48] sm:$0xff]
    %v573 = vld [vmem:[%s562 + $0x50] sm:$0xff]
    %v574 = vld [vmem:[%s562 + $0x58] sm:$0xff]
    %v575 = vld [vmem:[%s562 + $0x60] sm:$0xff]
    %v576 = vld [vmem:[%s562 + $0x68] sm:$0xff]
    %v577 = vld [vmem:[%s562 + $0x70] sm:$0xff]
    %v578 = vld [vmem:[%s562 + $0x78] sm:$0xff]
    %v579 = vpack.c.bf16 %v554, %v553
    %v580 = vpack.c.bf16 %v556, %v555
    %v581 = vpack.c.bf16 %v558, %v557
    %v582 = vpack.c.bf16 %v560, %v559
    %v583 = vpack.c.bf16 %v561, %v561
    %v600 = vunpack.c.l.b16 %v563
    %v601 = vunpack.c.h.b16 %v563
    %v602 = vunpack.c.l.b16 %v564
    %v603 = vunpack.c.h.b16 %v564
    %v604 = vunpack.c.l.b16 %v565
    %v605 = vunpack.c.h.b16 %v565
    %v606 = vunpack.c.l.b16 %v566
    %v607 = vunpack.c.h.b16 %v566
    %v608 = vunpack.c.l.b16 %v567
    %v609 = vunpack.c.h.b16 %v567
    %v610 = vunpack.c.l.b16 %v568
    %v611 = vunpack.c.h.b16 %v568
    %v612 = vunpack.c.l.b16 %v569
    %v613 = vunpack.c.h.b16 %v569
    %v614 = vunpack.c.l.b16 %v570
    %v615 = vunpack.c.h.b16 %v570
    %v616 = vunpack.c.l.b16 %v571
    %v617 = vunpack.c.h.b16 %v571
    %v618 = vunpack.c.l.b16 %v572
    %v619 = vunpack.c.h.b16 %v572
    %v620 = vunpack.c.l.b16 %v573
    %v621 = vunpack.c.h.b16 %v573
    %v622 = vunpack.c.l.b16 %v574
    %v623 = vunpack.c.h.b16 %v574
    %v624 = vunpack.c.l.b16 %v575
    %v625 = vunpack.c.h.b16 %v575
    %v626 = vunpack.c.l.b16 %v576
    %v627 = vunpack.c.h.b16 %v576
    %v628 = vunpack.c.l.b16 %v577
    %v629 = vunpack.c.h.b16 %v577
    %v630 = vunpack.c.l.b16 %v578
    %v631 = vunpack.c.h.b16 %v578
    %v632 = vpack.c.b16 %v602, %v600
    %v633 = vpack.c.b16 %v603, %v601
    %v634 = vpack.c.b16 %v606, %v604
    %v635 = vpack.c.b16 %v607, %v605
    %v636 = vpack.c.b16 %v610, %v608
    %v637 = vpack.c.b16 %v611, %v609
    %v638 = vpack.c.b16 %v614, %v612
    %v639 = vpack.c.b16 %v615, %v613
    %v640 = vpack.c.b16 %v618, %v616
    %v641 = vpack.c.b16 %v619, %v617
    %v642 = vpack.c.b16 %v622, %v620
    %v643 = vpack.c.b16 %v623, %v621
    %v644 = vpack.c.b16 %v626, %v624
    %v645 = vpack.c.b16 %v627, %v625
    %v646 = vpack.c.b16 %v630, %v628
    %v647 = vpack.c.b16 %v631, %v629
    %664 = vmatprep.subr.bf16.mxu0 %v633
    %665 = vmatpush1.bf16.msra.mxu0 %v632
    %666 = vmatprep.subr.bf16.mxu0 %v635
    %667 = vmatpush1.bf16.msra.mxu0 %v634
    %668 = vmatprep.subr.bf16.mxu0 %v637
    %669 = vmatpush1.bf16.msra.mxu0 %v636
    %670 = vmatprep.subr.bf16.mxu0 %v639
    %671 = vmatpush1.bf16.msra.mxu0 %v638
    %672 = vmatprep.subr.bf16.mxu0 %v641
    %673 = vmatpush1.bf16.msra.mxu0 %v640
    %674 = vmatprep.subr.bf16.mxu0 %v643
    %675 = vmatpush1.bf16.msra.mxu0 %v642
    %676 = vmatprep.subr.bf16.mxu0 %v645
    %677 = vmatpush1.bf16.msra.mxu0 %v644
    %678 = vmatprep.subr.bf16.mxu0 %v647
    %679 = vmatpush1.bf16.msra.mxu0 %v646
    %680 = vmatprep.subr.bf16.mxu0 0
    %681 = vmatpush1.bf16.msra.mxu0 0
    %682 = vmatprep.subr.bf16.mxu0 0
    %683 = vmatpush1.bf16.msra.mxu0 0
    %684 = vmatprep.subr.bf16.mxu0 0
    %685 = vmatpush1.bf16.msra.mxu0 0
    %686 = vmatprep.subr.bf16.mxu0 0
    %687 = vmatpush1.bf16.msra.mxu0 0
    %688 = vmatprep.subr.bf16.mxu0 0
    %689 = vmatpush1.bf16.msra.mxu0 0
    %690 = vmatprep.subr.bf16.mxu0 0
    %691 = vmatpush1.bf16.msra.mxu0 0
    %692 = vmatprep.subr.bf16.mxu0 0
    %693 = vmatpush1.bf16.msra.mxu0 0
    %694 = vmatprep.subr.bf16.mxu0 0
    %695 = vmatpush1.bf16.msra.mxu0 0
    %696 = vmatprep.mubr.bf16.mxu0 0
    %697 = vmatmul.mubr.bf16.gmra.mrb[0].mxu0 %v579
    %v698 = vpop.f32.mrb[0].mxu0
    %v699 = vadd.f32 0.0, %v698
    %v700 = vpop.f32.mrb[0].mxu0
    %v701 = vpop.f32.mrb[0].mxu0
    %v702 = vadd.f32 0.0, %v701
    %v703 = vpop.f32.mrb[0].mxu0
    %v704 = vadd.f32 0.0, %v703
    %705 = vmatprep.mubr.bf16.mxu0 0
    %706 = vmatmul.mubr.bf16.gmra.mrb[0].mxu0 %v580
    %v707 = vpop.f32.mrb[0].mxu0
    %v708 = vadd.f32 0.0, %v707
    %v709 = vpop.f32.mrb[0].mxu0
    %v710 = vadd.f32 0.0, %v709
    %v711 = vpop.f32.mrb[0].mxu0
    %v712 = vadd.f32 0.0, %v711
    %v713 = vpop.f32.mrb[0].mxu0
    %v714 = vadd.f32 0.0, %v713
    %715 = vmatprep.mubr.bf16.mxu0 0
    %716 = vmatmul.mubr.bf16.gmra.mrb[0].mxu0 %v581
    %v717 = vpop.f32.mrb[0].mxu0
    %v718 = vadd.f32 0.0, %v717
    %v719 = vpop.f32.mrb[0].mxu0
    %v720 = vadd.f32 0.0, %v719
    %v721 = vpop.f32.mrb[0].mxu0
    %v722 = vadd.f32 0.0, %v721
    %v723 = vpop.f32.mrb[0].mxu0
    %v724 = vadd.f32 0.0, %v723
    %725 = vmatprep.mubr.bf16.mxu0 0
    %726 = vmatmul.mubr.bf16.gmra.mrb[0].mxu0 %v582
    %v727 = vpop.f32.mrb[0].mxu0
    %v728 = vadd.f32 0.0, %v727
    %v729 = vpop.f32.mrb[0].mxu0
    %v730 = vadd.f32 0.0, %v729
    %v731 = vpop.f32.mrb[0].mxu0
    %v732 = vadd.f32 0.0, %v731
    %v733 = vpop.f32.mrb[0].mxu0
    %v734 = vadd.f32 0.0, %v733
    %735 = vmatprep.mubr.bf16.mxu0 0
    %736 = vmatmul.mubr.bf16.gmra.mrb[0].mxu0 %v583
    %v737 = vpop.f32.mrb[0].mxu0
    %v738 = vpop.f32.mrb[0].mxu0
    %v739 = vadd.f32 0.0, %v738
    %v740 = vpop.f32.mrb[0].mxu0
    %v741 = vpop.f32.mrb[0].mxu0
    %742 = vdwg.mxu0
    %v743 = vadd.f32 %v699, %v704
    %v744 = vadd.f32 %v702, %v710
    %v745 = vadd.f32 %v708, %v714
    %v746 = vadd.f32 %v712, %v720
    %v747 = vadd.f32 %v718, %v724
    %v748 = vadd.f32 %v722, %v730
    %v749 = vadd.f32 %v728, %v734
    %v750 = vadd.f32 %v732, %v739
    %s751 = scalar_lea.vmem %s3, 2
    %v752 = vld [vmem:[%s751] sm:$0x1]
    %v754 = vlaneseq
    %v755 = vshrl.u32 %v754, 7
    %v756 = vsub.s32 0, %v755
    %v757 = vrot.slane %v752, %v756
    %v759 = vadd.f32 %v743, %v757
    %v760 = vadd.f32 %v744, %v757
    %v761 = vadd.f32 %v745, %v757
    %v762 = vadd.f32 %v746, %v757
    %v763 = vadd.f32 %v747, %v757
    %v764 = vadd.f32 %v748, %v757
    %v765 = vadd.f32 %v749, %v757
    %v766 = vadd.f32 %v750, %v757
    %v767 = vmax.f32 %v759, 0.0
    %v768 = vmax.f32 %v760, 0.0
    %v769 = vmax.f32 %v761, 0.0
    %v770 = vmax.f32 %v762, 0.0
    %v771 = vmax.f32 %v763, 0.0
    %v772 = vmax.f32 %v764, 0.0
    %v773 = vmax.f32 %v765, 0.0
    %v774 = vmax.f32 %v766, 0.0
    %775 = vst [vmem:[#allocation2 + $0x8] sm:$0xff] %v767
    %776 = vst [vmem:[#allocation2 + $0x10] sm:$0xff] %v768
    %777 = vst [vmem:[#allocation2 + $0x18] sm:$0xff] %v769
    %778 = vst [vmem:[#allocation2 + $0x20] sm:$0xff] %v770
    %779 = vst [vmem:[#allocation2 + $0x28] sm:$0xff] %v771
    %780 = vst [vmem:[#allocation2 + $0x30] sm:$0xff] %v772
    %781 = vst [vmem:[#allocation2 + $0x38] sm:$0xff] %v773
    %782 = vst [vmem:[#allocation2 + $0x40] sm:$0xff] %v774
    %v783 = vld [vmem:[#allocation2] sm:$0xff]
    %v784 = vld [vmem:[#allocation2 + $0x8] sm:$0xff]
    %v785 = vld [vmem:[#allocation2 + $0x10] sm:$0xff]
    %v786 = vld [vmem:[#allocation2 + $0x18] sm:$0xff]
    %v787 = vld [vmem:[#allocation2 + $0x20] sm:$0xff]
    %v788 = vld [vmem:[#allocation2 + $0x28] sm:$0xff]
    %v789 = vld [vmem:[#allocation2 + $0x30] sm:$0xff]
    %v790 = vld [vmem:[#allocation2 + $0x38] sm:$0xff]
    %v791 = vld [vmem:[#allocation2 + $0x40] sm:$0xff]
    %s792 = scalar_lea.vmem [#allocation7], 256
    %v793 = vld [vmem:[%s792] sm:$0xff]
    %v794 = vld [vmem:[%s792 + $0x8] sm:$0xff]
    %v795 = vld [vmem:[%s792 + $0x10] sm:$0xff]
    %v796 = vld [vmem:[%s792 + $0x18] sm:$0xff]
    %v797 = vld [vmem:[%s792 + $0x20] sm:$0xff]
    %v798 = vld [vmem:[%s792 + $0x28] sm:$0xff]
    %v799 = vld [vmem:[%s792 + $0x30] sm:$0xff]
    %v800 = vld [vmem:[%s792 + $0x38] sm:$0xff]
    %v801 = vld [vmem:[%s792 + $0x40] sm:$0xff]
    %v802 = vld [vmem:[%s792 + $0x48] sm:$0xff]
    %v803 = vld [vmem:[%s792 + $0x50] sm:$0xff]
    %v804 = vld [vmem:[%s792 + $0x58] sm:$0xff]
    %v805 = vld [vmem:[%s792 + $0x60] sm:$0xff]
    %v806 = vld [vmem:[%s792 + $0x68] sm:$0xff]
    %v807 = vld [vmem:[%s792 + $0x70] sm:$0xff]
    %v808 = vld [vmem:[%s792 + $0x78] sm:$0xff]
    %v809 = vpack.c.bf16 %v784, %v783
    %v810 = vpack.c.bf16 %v786, %v785
    %v811 = vpack.c.bf16 %v788, %v787
    %v812 = vpack.c.bf16 %v790, %v789
    %v813 = vpack.c.bf16 %v791, %v791
    %v830 = vunpack.c.l.b16 %v793
    %v831 = vunpack.c.h.b16 %v793
    %v832 = vunpack.c.l.b16 %v794
    %v833 = vunpack.c.h.b16 %v794
    %v834 = vunpack.c.l.b16 %v795
    %v835 = vunpack.c.h.b16 %v795
    %v836 = vunpack.c.l.b16 %v796
    %v837 = vunpack.c.h.b16 %v796
    %v838 = vunpack.c.l.b16 %v797
    %v839 = vunpack.c.h.b16 %v797
    %v840 = vunpack.c.l.b16 %v798
    %v841 = vunpack.c.h.b16 %v798
    %v842 = vunpack.c.l.b16 %v799
    %v843 = vunpack.c.h.b16 %v799
    %v844 = vunpack.c.l.b16 %v800
    %v845 = vunpack.c.h.b16 %v800
    %v846 = vunpack.c.l.b16 %v801
    %v847 = vunpack.c.h.b16 %v801
    %v848 = vunpack.c.l.b16 %v802
    %v849 = vunpack.c.h.b16 %v802
    %v850 = vunpack.c.l.b16 %v803
    %v851 = vunpack.c.h.b16 %v803
    %v852 = vunpack.c.l.b16 %v804
    %v853 = vunpack.c.h.b16 %v804
    %v854 = vunpack.c.l.b16 %v805
    %v855 = vunpack.c.h.b16 %v805
    %v856 = vunpack.c.l.b16 %v806
    %v857 = vunpack.c.h.b16 %v806
    %v858 = vunpack.c.l.b16 %v807
    %v859 = vunpack.c.h.b16 %v807
    %v860 = vunpack.c.l.b16 %v808
    %v861 = vunpack.c.h.b16 %v808
    %v862 = vpack.c.b16 %v832, %v830
    %v863 = vpack.c.b16 %v833, %v831
    %v864 = vpack.c.b16 %v836, %v834
    %v865 = vpack.c.b16 %v837, %v835
    %v866 = vpack.c.b16 %v840, %v838
    %v867 = vpack.c.b16 %v841, %v839
    %v868 = vpack.c.b16 %v844, %v842
    %v869 = vpack.c.b16 %v845, %v843
    %v870 = vpack.c.b16 %v848, %v846
    %v871 = vpack.c.b16 %v849, %v847
    %v872 = vpack.c.b16 %v852, %v850
    %v873 = vpack.c.b16 %v853, %v851
    %v874 = vpack.c.b16 %v856, %v854
    %v875 = vpack.c.b16 %v857, %v855
    %v876 = vpack.c.b16 %v860, %v858
    %v877 = vpack.c.b16 %v861, %v859
    %894 = vmatprep.subr.bf16.mxu0 %v863
    %895 = vmatpush1.bf16.msra.mxu0 %v862
    %896 = vmatprep.subr.bf16.mxu0 %v865
    %897 = vmatpush1.bf16.msra.mxu0 %v864
    %898 = vmatprep.subr.bf16.mxu0 %v867
    %899 = vmatpush1.bf16.msra.mxu0 %v866
    %900 = vmatprep.subr.bf16.mxu0 %v869
    %901 = vmatpush1.bf16.msra.mxu0 %v868
    %902 = vmatprep.subr.bf16.mxu0 %v871
    %903 = vmatpush1.bf16.msra.mxu0 %v870
    %904 = vmatprep.subr.bf16.mxu0 %v873
    %905 = vmatpush1.bf16.msra.mxu0 %v872
    %906 = vmatprep.subr.bf16.mxu0 %v875
    %907 = vmatpush1.bf16.msra.mxu0 %v874
    %908 = vmatprep.subr.bf16.mxu0 %v877
    %909 = vmatpush1.bf16.msra.mxu0 %v876
    %910 = vmatprep.subr.bf16.mxu0 0
    %911 = vmatpush1.bf16.msra.mxu0 0
    %912 = vmatprep.subr.bf16.mxu0 0
    %913 = vmatpush1.bf16.msra.mxu0 0
    %914 = vmatprep.subr.bf16.mxu0 0
    %915 = vmatpush1.bf16.msra.mxu0 0
    %916 = vmatprep.subr.bf16.mxu0 0
    %917 = vmatpush1.bf16.msra.mxu0 0
    %918 = vmatprep.subr.bf16.mxu0 0
    %919 = vmatpush1.bf16.msra.mxu0 0
    %920 = vmatprep.subr.bf16.mxu0 0
    %921 = vmatpush1.bf16.msra.mxu0 0
    %922 = vmatprep.subr.bf16.mxu0 0
    %923 = vmatpush1.bf16.msra.mxu0 0
    %924 = vmatprep.subr.bf16.mxu0 0
    %925 = vmatpush1.bf16.msra.mxu0 0
    %926 = vmatprep.mubr.bf16.mxu0 0
    %927 = vmatmul.mubr.bf16.gmra.mrb[0].mxu0 %v809
    %v928 = vpop.f32.mrb[0].mxu0
    %v929 = vadd.f32 0.0, %v928
    %v930 = vpop.f32.mrb[0].mxu0
    %v931 = vpop.f32.mrb[0].mxu0
    %v932 = vadd.f32 0.0, %v931
    %v933 = vpop.f32.mrb[0].mxu0
    %v934 = vadd.f32 0.0, %v933
    %935 = vmatprep.mubr.bf16.mxu0 0
    %936 = vmatmul.mubr.bf16.gmra.mrb[0].mxu0 %v810
    %v937 = vpop.f32.mrb[0].mxu0
    %v938 = vadd.f32 0.0, %v937
    %v939 = vpop.f32.mrb[0].mxu0
    %v940 = vadd.f32 0.0, %v939
    %v941 = vpop.f32.mrb[0].mxu0
    %v942 = vadd.f32 0.0, %v941
    %v943 = vpop.f32.mrb[0].mxu0
    %v944 = vadd.f32 0.0, %v943
    %945 = vmatprep.mubr.bf16.mxu0 0
    %946 = vmatmul.mubr.bf16.gmra.mrb[0].mxu0 %v811
    %v947 = vpop.f32.mrb[0].mxu0
    %v948 = vadd.f32 0.0, %v947
    %v949 = vpop.f32.mrb[0].mxu0
    %v950 = vadd.f32 0.0, %v949
    %v951 = vpop.f32.mrb[0].mxu0
    %v952 = vadd.f32 0.0, %v951
    %v953 = vpop.f32.mrb[0].mxu0
    %v954 = vadd.f32 0.0, %v953
    %955 = vmatprep.mubr.bf16.mxu0 0
    %956 = vmatmul.mubr.bf16.gmra.mrb[0].mxu0 %v812
    %v957 = vpop.f32.mrb[0].mxu0
    %v958 = vadd.f32 0.0, %v957
    %v959 = vpop.f32.mrb[0].mxu0
    %v960 = vadd.f32 0.0, %v959
    %v961 = vpop.f32.mrb[0].mxu0
    %v962 = vadd.f32 0.0, %v961
    %v963 = vpop.f32.mrb[0].mxu0
    %v964 = vadd.f32 0.0, %v963
    %965 = vmatprep.mubr.bf16.mxu0 0
    %966 = vmatmul.mubr.bf16.gmra.mrb[0].mxu0 %v813
    %v967 = vpop.f32.mrb[0].mxu0
    %v968 = vpop.f32.mrb[0].mxu0
    %v969 = vadd.f32 0.0, %v968
    %v970 = vpop.f32.mrb[0].mxu0
    %v971 = vpop.f32.mrb[0].mxu0
    %972 = vdwg.mxu0
    %v973 = vadd.f32 %v929, %v934
    %v974 = vadd.f32 %v932, %v940
    %v975 = vadd.f32 %v938, %v944
    %v976 = vadd.f32 %v942, %v950
    %v977 = vadd.f32 %v948, %v954
    %v978 = vadd.f32 %v952, %v960
    %v979 = vadd.f32 %v958, %v964
    %v980 = vadd.f32 %v962, %v969
    %s981 = scalar_lea.vmem %s3, 3
    %v982 = vld [vmem:[%s981] sm:$0x1]
    %v984 = vlaneseq
    %v985 = vshrl.u32 %v984, 7
    %v986 = vsub.s32 0, %v985
    %v987 = vrot.slane %v982, %v986
    %v989 = vadd.f32 %v973, %v987
    %v990 = vadd.f32 %v974, %v987
    %v991 = vadd.f32 %v975, %v987
    %v992 = vadd.f32 %v976, %v987
    %v993 = vadd.f32 %v977, %v987
    %v994 = vadd.f32 %v978, %v987
    %v995 = vadd.f32 %v979, %v987
    %v996 = vadd.f32 %v980, %v987
    %v997 = vmax.f32 %v989, 0.0
    %v998 = vmax.f32 %v990, 0.0
    %v999 = vmax.f32 %v991, 0.0
    %v1000 = vmax.f32 %v992, 0.0
    %v1001 = vmax.f32 %v993, 0.0
    %v1002 = vmax.f32 %v994, 0.0
    %v1003 = vmax.f32 %v995, 0.0
    %v1004 = vmax.f32 %v996, 0.0
    %1005 = vst [vmem:[#allocation2 + $0x8] sm:$0xff] %v997
    %1006 = vst [vmem:[#allocation2 + $0x10] sm:$0xff] %v998
    %1007 = vst [vmem:[#allocation2 + $0x18] sm:$0xff] %v999
    %1008 = vst [vmem:[#allocation2 + $0x20] sm:$0xff] %v1000
    %1009 = vst [vmem:[#allocation2 + $0x28] sm:$0xff] %v1001
    %1010 = vst [vmem:[#allocation2 + $0x30] sm:$0xff] %v1002
    %1011 = vst [vmem:[#allocation2 + $0x38] sm:$0xff] %v1003
    %1012 = vst [vmem:[#allocation2 + $0x40] sm:$0xff] %v1004
    %v1013 = vld [vmem:[%s4] sm:$0xf]
    %v1014 = vld [vmem:[%s4 + $0x4] sm:$0xf]
    %v1015 = vld [vmem:[%s4 + $0x8] sm:$0xf]
    %v1016 = vld [vmem:[%s4 + $0xc] sm:$0xf]
    %v1017 = vld [vmem:[%s4 + $0x10] sm:$0xf]
    %v1018 = vld [vmem:[%s4 + $0x14] sm:$0xf]
    %v1019 = vld [vmem:[%s4 + $0x18] sm:$0xf]
    %v1020 = vld [vmem:[%s4 + $0x1c] sm:$0xf]
    %v1021 = vld [vmem:[%s4 + $0x20] sm:$0xf]
    %v1022 = vld [vmem:[%s4 + $0x24] sm:$0xf]
    %v1023 = vld [vmem:[%s4 + $0x28] sm:$0xf]
    %v1024 = vld [vmem:[%s4 + $0x2c] sm:$0xf]
    %v1025 = vld [vmem:[%s4 + $0x30] sm:$0xf]
    %v1026 = vld [vmem:[%s4 + $0x34] sm:$0xf]
    %v1027 = vld [vmem:[%s4 + $0x38] sm:$0xf]
    %v1028 = vld [vmem:[%s4 + $0x3c] sm:$0xf]
    %v1029 = vpack.c.bf16 %v998, %v997
    %v1030 = vpack.c.bf16 %v1000, %v999
    %v1031 = vpack.c.bf16 %v1002, %v1001
    %v1032 = vpack.c.bf16 %v1004, %v1003
    %v1049 = vunpack.c.l.b16 %v1013
    %v1050 = vunpack.c.l.b16 %v1014
    %v1051 = vunpack.c.l.b16 %v1015
    %v1052 = vunpack.c.l.b16 %v1016
    %v1053 = vunpack.c.l.b16 %v1017
    %v1054 = vunpack.c.l.b16 %v1018
    %v1055 = vunpack.c.l.b16 %v1019
    %v1056 = vunpack.c.l.b16 %v1020
    %v1057 = vunpack.c.l.b16 %v1021
    %v1058 = vunpack.c.l.b16 %v1022
    %v1059 = vunpack.c.l.b16 %v1023
    %v1060 = vunpack.c.l.b16 %v1024
    %v1061 = vunpack.c.l.b16 %v1025
    %v1062 = vunpack.c.l.b16 %v1026
    %v1063 = vunpack.c.l.b16 %v1027
    %v1064 = vunpack.c.l.b16 %v1028
    %v1065 = vpack.c.b16 %v1050, %v1049
    %v1066 = vpack.c.b16 %v1052, %v1051
    %v1067 = vpack.c.b16 %v1054, %v1053
    %v1068 = vpack.c.b16 %v1056, %v1055
    %v1069 = vpack.c.b16 %v1058, %v1057
    %v1070 = vpack.c.b16 %v1060, %v1059
    %v1071 = vpack.c.b16 %v1062, %v1061
    %v1072 = vpack.c.b16 %v1064, %v1063
    %1081 = vmatprep.subr.bf16.mxu0 0
    %1082 = vmatpush1.bf16.msra.mxu0 %v1065
    %1083 = vmatprep.subr.bf16.mxu0 0
    %1084 = vmatpush1.bf16.msra.mxu0 %v1066
    %1085 = vmatprep.subr.bf16.mxu0 0
    %1086 = vmatpush1.bf16.msra.mxu0 %v1067
    %1087 = vmatprep.subr.bf16.mxu0 0
    %1088 = vmatpush1.bf16.msra.mxu0 %v1068
    %1089 = vmatprep.subr.bf16.mxu0 0
    %1090 = vmatpush1.bf16.msra.mxu0 %v1069
    %1091 = vmatprep.subr.bf16.mxu0 0
    %1092 = vmatpush1.bf16.msra.mxu0 %v1070
    %1093 = vmatprep.subr.bf16.mxu0 0
    %1094 = vmatpush1.bf16.msra.mxu0 %v1071
    %1095 = vmatprep.subr.bf16.mxu0 0
    %1096 = vmatpush1.bf16.msra.mxu0 %v1072
    %1097 = vmatprep.subr.bf16.mxu0 0
    %1098 = vmatpush1.bf16.msra.mxu0 0
    %1099 = vmatprep.subr.bf16.mxu0 0
    %1100 = vmatpush1.bf16.msra.mxu0 0
    %1101 = vmatprep.subr.bf16.mxu0 0
    %1102 = vmatpush1.bf16.msra.mxu0 0
    %1103 = vmatprep.subr.bf16.mxu0 0
    %1104 = vmatpush1.bf16.msra.mxu0 0
    %1105 = vmatprep.subr.bf16.mxu0 0
    %1106 = vmatpush1.bf16.msra.mxu0 0
    %1107 = vmatprep.subr.bf16.mxu0 0
    %1108 = vmatpush1.bf16.msra.mxu0 0
    %1109 = vmatprep.subr.bf16.mxu0 0
    %1110 = vmatpush1.bf16.msra.mxu0 0
    %1111 = vmatprep.subr.bf16.mxu0 0
    %1112 = vmatpush1.bf16.msra.mxu0 0
    %1113 = vmatprep.mubr.bf16.mxu0 0
    %1114 = vmatmul.mubr.bf16.gmra.mrb[0].mxu0 %v1029
    %v1115 = vpop.f32.mrb[0].mxu0
    %v1116 = vadd.f32 0.0, %v1115
    %v1117 = vpop.f32.mrb[0].mxu0
    %v1118 = vpop.f32.mrb[0].mxu0
    %v1119 = vadd.f32 0.0, %v1118
    %v1120 = vpop.f32.mrb[0].mxu0
    %1121 = vmatprep.mubr.bf16.mxu0 0
    %1122 = vmatmul.mubr.bf16.gmra.mrb[0].mxu0 %v1030
    %v1123 = vpop.f32.mrb[0].mxu0
    %v1124 = vadd.f32 0.0, %v1123
    %v1125 = vpop.f32.mrb[0].mxu0
    %v1126 = vpop.f32.mrb[0].mxu0
    %v1127 = vadd.f32 0.0, %v1126
    %v1128 = vpop.f32.mrb[0].mxu0
    %1129 = vmatprep.mubr.bf16.mxu0 0
    %1130 = vmatmul.mubr.bf16.gmra.mrb[0].mxu0 %v1031
    %v1131 = vpop.f32.mrb[0].mxu0
    %v1132 = vadd.f32 0.0, %v1131
    %v1133 = vpop.f32.mrb[0].mxu0
    %v1134 = vpop.f32.mrb[0].mxu0
    %v1135 = vadd.f32 0.0, %v1134
    %v1136 = vpop.f32.mrb[0].mxu0
    %1137 = vmatprep.mubr.bf16.mxu0 0
    %1138 = vmatmul.mubr.bf16.gmra.mrb[0].mxu0 %v1032
    %v1139 = vpop.f32.mrb[0].mxu0
    %v1140 = vadd.f32 0.0, %v1139
    %v1141 = vpop.f32.mrb[0].mxu0
    %v1142 = vpop.f32.mrb[0].mxu0
    %v1143 = vadd.f32 0.0, %v1142
    %v1144 = vpop.f32.mrb[0].mxu0
    %1145 = vdwg.mxu0
    %1146 = vst [vmem:[#allocation4] sm:$0xff] %v1116
    %1147 = vst [vmem:[#allocation4 + $0x8] sm:$0xff] %v1119
    %1148 = vst [vmem:[#allocation4 + $0x10] sm:$0xff] %v1124
    %1149 = vst [vmem:[#allocation4 + $0x18] sm:$0xff] %v1127
    %1150 = vst [vmem:[#allocation4 + $0x20] sm:$0xff] %v1132
    %1151 = vst [vmem:[#allocation4 + $0x28] sm:$0xff] %v1135
    %1152 = vst [vmem:[#allocation4 + $0x30] sm:$0xff] %v1140
    %1153 = vst [vmem:[#allocation4 + $0x38] sm:$0xff] %v1143
    %v1154 = vld [vmem:[#allocation9] sm:$0xff]
    %v1155 = vld [vmem:[#allocation9 + $0x8] sm:$0xf]
    %v1156 = vld [vmem:[#allocation9 + $0xc] sm:$0xff]
    %v1157 = vld [vmem:[#allocation9 + $0x14] sm:$0xf]
    %v1158 = vld [vmem:[#allocation9 + $0x18] sm:$0xff]
    %v1159 = vld [vmem:[#allocation9 + $0x20] sm:$0xf]
    %v1160 = vld [vmem:[#allocation9 + $0x24] sm:$0xff]
    %v1161 = vld [vmem:[#allocation9 + $0x2c] sm:$0xf]
    %v1162 = vld [vmem:[#allocation9 + $0x30] sm:$0xff]
    %v1163 = vld [vmem:[#allocation9 + $0x38] sm:$0xf]
    %v1164 = vld [vmem:[#allocation9 + $0x3c] sm:$0xff]
    %v1165 = vld [vmem:[#allocation9 + $0x44] sm:$0xf]
    %v1166 = vld [vmem:[#allocation9 + $0x48] sm:$0xff]
    %v1167 = vld [vmem:[#allocation9 + $0x50] sm:$0xf]
    %v1168 = vld [vmem:[#allocation9 + $0x54] sm:$0xff]
    %v1169 = vld [vmem:[#allocation9 + $0x5c] sm:$0xf]
    %v1170 = vld [vmem:[#allocation9 + $0x60] sm:$0xff]
    %v1171 = vld [vmem:[#allocation9 + $0x68] sm:$0xf]
    %v1172 = vld [vmem:[#allocation9 + $0x6c] sm:$0xff]
    %v1173 = vld [vmem:[#allocation9 + $0x74] sm:$0xf]
    %v1174 = vld [vmem:[#allocation9 + $0x78] sm:$0xff]
    %v1175 = vld [vmem:[#allocation9 + $0x80] sm:$0xf]
    %v1176 = vld [vmem:[#allocation9 + $0x84] sm:$0xff]
    %v1177 = vld [vmem:[#allocation9 + $0x8c] sm:$0xf]
    %v1178 = vld [vmem:[#allocation9 + $0x90] sm:$0xff]
    %v1179 = vld [vmem:[#allocation9 + $0x98] sm:$0xf]
    %v1180 = vld [vmem:[#allocation9 + $0x9c] sm:$0xff]
    %v1181 = vld [vmem:[#allocation9 + $0xa4] sm:$0xf]
    %v1182 = vld [vmem:[#allocation9 + $0xa8] sm:$0xff]
    %v1183 = vld [vmem:[#allocation9 + $0xb0] sm:$0xf]
    %v1184 = vld [vmem:[#allocation9 + $0xb4] sm:$0xff]
    %v1185 = vld [vmem:[#allocation9 + $0xbc] sm:$0xf]
    %v1186 = vld [vmem:[#allocation13] sm:$0x7]
    %v1188 = vlaneseq
    %v1189 = vshrl.u32 %v1188, 7
    %v1190 = vsub.s32 0, %v1189
    %v1191 = vrot.slane %v1186, %v1190
    %v1192 = vlaneseq
    %v1193 = vshrl.u32 %v1192, 7
    %v1194 = vsub.s32 1, %v1193
    %v1195 = vrot.slane %v1186, %v1194
    %v1196 = vlaneseq
    %v1197 = vshrl.u32 %v1196, 7
    %v1198 = vsub.s32 2, %v1197
    %v1199 = vrot.slane %v1186, %v1198
    %v1235 = vunpack.c.l.b16 %v1154
    %v1236 = vunpack.c.h.b16 %v1154
    %v1237 = vunpack.c.l.b16 %v1155
    %v1238 = vunpack.c.l.b16 %v1156
    %v1239 = vunpack.c.h.b16 %v1156
    %v1240 = vunpack.c.l.b16 %v1157
    %v1241 = vunpack.c.l.b16 %v1158
    %v1242 = vunpack.c.h.b16 %v1158
    %v1243 = vunpack.c.l.b16 %v1159
    %v1244 = vunpack.c.l.b16 %v1160
    %v1245 = vunpack.c.h.b16 %v1160
    %v1246 = vunpack.c.l.b16 %v1161
    %v1247 = vunpack.c.l.b16 %v1162
    %v1248 = vunpack.c.h.b16 %v1162
    %v1249 = vunpack.c.l.b16 %v1163
    %v1250 = vunpack.c.l.b16 %v1164
    %v1251 = vunpack.c.h.b16 %v1164
    %v1252 = vunpack.c.l.b16 %v1165
    %v1253 = vunpack.c.l.b16 %v1166
    %v1254 = vunpack.c.h.b16 %v1166
    %v1255 = vunpack.c.l.b16 %v1167
    %v1256 = vunpack.c.l.b16 %v1168
    %v1257 = vunpack.c.h.b16 %v1168
    %v1258 = vunpack.c.l.b16 %v1169
    %v1259 = vunpack.c.l.b16 %v1170
    %v1260 = vunpack.c.h.b16 %v1170
    %v1261 = vunpack.c.l.b16 %v1171
    %v1262 = vunpack.c.l.b16 %v1172
    %v1263 = vunpack.c.h.b16 %v1172
    %v1264 = vunpack.c.l.b16 %v1173
    %v1265 = vunpack.c.l.b16 %v1174
    %v1266 = vunpack.c.h.b16 %v1174
    %v1267 = vunpack.c.l.b16 %v1175
    %v1268 = vunpack.c.l.b16 %v1176
    %v1269 = vunpack.c.h.b16 %v1176
    %v1270 = vunpack.c.l.b16 %v1177
    %v1271 = vunpack.c.l.b16 %v1178
    %v1272 = vunpack.c.h.b16 %v1178
    %v1273 = vunpack.c.l.b16 %v1179
    %v1274 = vunpack.c.l.b16 %v1180
    %v1275 = vunpack.c.h.b16 %v1180
    %v1276 = vunpack.c.l.b16 %v1181
    %v1277 = vunpack.c.l.b16 %v1182
    %v1278 = vunpack.c.h.b16 %v1182
    %v1279 = vunpack.c.l.b16 %v1183
    %v1280 = vunpack.c.l.b16 %v1184
    %v1281 = vunpack.c.h.b16 %v1184
    %v1282 = vunpack.c.l.b16 %v1185
    %v1283 = vpack.c.b16 %v1238, %v1235
    %v1284 = vpack.c.b16 %v1239, %v1236
    %v1285 = vpack.c.b16 %v1240, %v1237
    %v1286 = vpack.c.b16 %v1244, %v1241
    %v1287 = vpack.c.b16 %v1245, %v1242
    %v1288 = vpack.c.b16 %v1246, %v1243
    %v1289 = vpack.c.b16 %v1250, %v1247
    %v1290 = vpack.c.b16 %v1251, %v1248
    %v1291 = vpack.c.b16 %v1252, %v1249
    %v1292 = vpack.c.b16 %v1256, %v1253
    %v1293 = vpack.c.b16 %v1257, %v1254
    %v1294 = vpack.c.b16 %v1258, %v1255
    %v1295 = vpack.c.b16 %v1262, %v1259
    %v1296 = vpack.c.b16 %v1263, %v1260
    %v1297 = vpack.c.b16 %v1264, %v1261
    %v1298 = vpack.c.b16 %v1268, %v1265
    %v1299 = vpack.c.b16 %v1269, %v1266
    %v1300 = vpack.c.b16 %v1270, %v1267
    %v1301 = vpack.c.b16 %v1274, %v1271
    %v1302 = vpack.c.b16 %v1275, %v1272
    %v1303 = vpack.c.b16 %v1276, %v1273
    %v1304 = vpack.c.b16 %v1280, %v1277
    %v1305 = vpack.c.b16 %v1281, %v1278
    %v1306 = vpack.c.b16 %v1282, %v1279
    %1331 = vmatprep.subr.bf16.mxu0 %v1284
    %1332 = vmatpush1.bf16.msra.mxu0 %v1283
    %1333 = vmatprep.subr.bf16.mxu0 %v1287
    %1334 = vmatpush1.bf16.msra.mxu0 %v1286
    %1335 = vmatprep.subr.bf16.mxu0 %v1290
    %1336 = vmatpush1.bf16.msra.mxu0 %v1289
    %1337 = vmatprep.subr.bf16.mxu0 %v1293
    %1338 = vmatpush1.bf16.msra.mxu0 %v1292
    %1339 = vmatprep.subr.bf16.mxu0 %v1296
    %1340 = vmatpush1.bf16.msra.mxu0 %v1295
    %1341 = vmatprep.subr.bf16.mxu0 %v1299
    %1342 = vmatpush1.bf16.msra.mxu0 %v1298
    %1343 = vmatprep.subr.bf16.mxu0 %v1302
    %1344 = vmatpush1.bf16.msra.mxu0 %v1301
    %1345 = vmatprep.subr.bf16.mxu0 %v1305
    %1346 = vmatpush1.bf16.msra.mxu0 %v1304
    %1347 = vmatprep.subr.bf16.mxu0 0
    %1348 = vmatpush1.bf16.msra.mxu0 0
    %1349 = vmatprep.subr.bf16.mxu0 0
    %1350 = vmatpush1.bf16.msra.mxu0 0
    %1351 = vmatprep.subr.bf16.mxu0 0
    %1352 = vmatpush1.bf16.msra.mxu0 0
    %1353 = vmatprep.subr.bf16.mxu0 0
    %1354 = vmatpush1.bf16.msra.mxu0 0
    %1355 = vmatprep.subr.bf16.mxu0 0
    %1356 = vmatpush1.bf16.msra.mxu0 0
    %1357 = vmatprep.subr.bf16.mxu0 0
    %1358 = vmatpush1.bf16.msra.mxu0 0
    %1359 = vmatprep.subr.bf16.mxu0 0
    %1360 = vmatpush1.bf16.msra.mxu0 0
    %1361 = vmatprep.subr.bf16.mxu0 0
    %1362 = vmatpush1.bf16.msra.mxu0 0
    %1363 = vmatprep.mubr.bf16.mxu0 0
    %1364 = vmatmul.mubr.bf16.gmra.mrb[0].mxu0 %v1029
    %v1365 = vpop.f32.mrb[0].mxu0
    %v1366 = vadd.f32 %v1191, %v1365
    %v1367 = vpop.f32.mrb[0].mxu0
    %v1368 = vadd.f32 %v1195, %v1367
    %v1369 = vpop.f32.mrb[0].mxu0
    %v1370 = vadd.f32 %v1191, %v1369
    %v1371 = vpop.f32.mrb[0].mxu0
    %v1372 = vadd.f32 %v1195, %v1371
    %1373 = vmatprep.mubr.bf16.mxu0 0
    %1374 = vmatmul.mubr.bf16.gmra.mrb[0].mxu0 %v1030
    %v1375 = vpop.f32.mrb[0].mxu0
    %v1376 = vadd.f32 %v1191, %v1375
    %v1377 = vpop.f32.mrb[0].mxu0
    %v1378 = vadd.f32 %v1195, %v1377
    %v1379 = vpop.f32.mrb[0].mxu0
    %v1380 = vadd.f32 %v1191, %v1379
    %v1381 = vpop.f32.mrb[0].mxu0
    %v1382 = vadd.f32 %v1195, %v1381
    %1383 = vmatprep.mubr.bf16.mxu0 0
    %1384 = vmatmul.mubr.bf16.gmra.mrb[0].mxu0 %v1031
    %v1385 = vpop.f32.mrb[0].mxu0
    %v1386 = vadd.f32 %v1191, %v1385
    %v1387 = vpop.f32.mrb[0].mxu0
    %v1388 = vadd.f32 %v1195, %v1387
    %v1389 = vpop.f32.mrb[0].mxu0
    %v1390 = vadd.f32 %v1191, %v1389
    %v1391 = vpop.f32.mrb[0].mxu0
    %v1392 = vadd.f32 %v1195, %v1391
    %1393 = vmatprep.mubr.bf16.mxu0 0
    %1394 = vmatmul.mubr.bf16.gmra.mrb[0].mxu0 %v1032
    %v1395 = vpop.f32.mrb[0].mxu0
    %v1396 = vadd.f32 %v1191, %v1395
    %v1397 = vpop.f32.mrb[0].mxu0
    %v1398 = vadd.f32 %v1195, %v1397
    %v1399 = vpop.f32.mrb[0].mxu0
    %v1400 = vadd.f32 %v1191, %v1399
    %v1401 = vpop.f32.mrb[0].mxu0
    %v1402 = vadd.f32 %v1195, %v1401
    %1403 = vdwg.mxu0
    %1404 = vmatprep.subr.bf16.mxu0 0
    %1405 = vmatpush1.bf16.msra.mxu0 %v1285
    %1406 = vmatprep.subr.bf16.mxu0 0
    %1407 = vmatpush1.bf16.msra.mxu0 %v1288
    %1408 = vmatprep.subr.bf16.mxu0 0
    %1409 = vmatpush1.bf16.msra.mxu0 %v1291
    %1410 = vmatprep.subr.bf16.mxu0 0
    %1411 = vmatpush1.bf16.msra.mxu0 %v1294
    %1412 = vmatprep.subr.bf16.mxu0 0
    %1413 = vmatpush1.bf16.msra.mxu0 %v1297
    %1414 = vmatprep.subr.bf16.mxu0 0
    %1415 = vmatpush1.bf16.msra.mxu0 %v1300
    %1416 = vmatprep.subr.bf16.mxu0 0
    %1417 = vmatpush1.bf16.msra.mxu0 %v1303
    %1418 = vmatprep.subr.bf16.mxu0 0
    %1419 = vmatpush1.bf16.msra.mxu0 %v1306
    %1420 = vmatprep.subr.bf16.mxu0 0
    %1421 = vmatpush1.bf16.msra.mxu0 0
    %1422 = vmatprep.subr.bf16.mxu0 0
    %1423 = vmatpush1.bf16.msra.mxu0 0
    %1424 = vmatprep.subr.bf16.mxu0 0
    %1425 = vmatpush1.bf16.msra.mxu0 0
    %1426 = vmatprep.subr.bf16.mxu0 0
    %1427 = vmatpush1.bf16.msra.mxu0 0
    %1428 = vmatprep.subr.bf16.mxu0 0
    %1429 = vmatpush1.bf16.msra.mxu0 0
    %1430 = vmatprep.subr.bf16.mxu0 0
    %1431 = vmatpush1.bf16.msra.mxu0 0
    %1432 = vmatprep.subr.bf16.mxu0 0
    %1433 = vmatpush1.bf16.msra.mxu0 0
    %1434 = vmatprep.subr.bf16.mxu0 0
    %1435 = vmatpush1.bf16.msra.mxu0 0
    %1436 = vmatprep.mubr.bf16.mxu0 0
    %1437 = vmatmul.mubr.bf16.gmra.mrb[0].mxu0 %v1029
    %v1438 = vpop.f32.mrb[0].mxu0
    %v1439 = vadd.f32 %v1199, %v1438
    %v1440 = vpop.f32.mrb[0].mxu0
    %v1441 = vpop.f32.mrb[0].mxu0
    %v1442 = vadd.f32 %v1199, %v1441
    %v1443 = vpop.f32.mrb[0].mxu0
    %1444 = vmatprep.mubr.bf16.mxu0 0
    %1445 = vmatmul.mubr.bf16.gmra.mrb[0].mxu0 %v1030
    %v1446 = vpop.f32.mrb[0].mxu0
    %v1447 = vadd.f32 %v1199, %v1446
    %v1448 = vpop.f32.mrb[0].mxu0
    %v1449 = vpop.f32.mrb[0].mxu0
    %v1450 = vadd.f32 %v1199, %v1449
    %v1451 = vpop.f32.mrb[0].mxu0
    %1452 = vmatprep.mubr.bf16.mxu0 0
    %1453 = vmatmul.mubr.bf16.gmra.mrb[0].mxu0 %v1031
    %v1454 = vpop.f32.mrb[0].mxu0
    %v1455 = vadd.f32 %v1199, %v1454
    %v1456 = vpop.f32.mrb[0].mxu0
    %v1457 = vpop.f32.mrb[0].mxu0
    %v1458 = vadd.f32 %v1199, %v1457
    %v1459 = vpop.f32.mrb[0].mxu0
    %1460 = vmatprep.mubr.bf16.mxu0 0
    %1461 = vmatmul.mubr.bf16.gmra.mrb[0].mxu0 %v1032
    %v1462 = vpop.f32.mrb[0].mxu0
    %v1463 = vadd.f32 %v1199, %v1462
    %v1464 = vpop.f32.mrb[0].mxu0
    %v1465 = vpop.f32.mrb[0].mxu0
    %v1466 = vadd.f32 %v1199, %v1465
    %v1467 = vpop.f32.mrb[0].mxu0
    %1468 = vdwg.mxu0
    %1469 = vst [vmem:[#allocation3] sm:$0xff] %v1366
    %1470 = vst [vmem:[#allocation3 + $0x8] sm:$0xff] %v1368
    %1471 = vst [vmem:[#allocation3 + $0x10] sm:$0xff] %v1439
    %1472 = vst [vmem:[#allocation3 + $0x18] sm:$0xff] %v1370
    %1473 = vst [vmem:[#allocation3 + $0x20] sm:$0xff] %v1372
    %1474 = vst [vmem:[#allocation3 + $0x28] sm:$0xff] %v1442
    %1475 = vst [vmem:[#allocation3 + $0x30] sm:$0xff] %v1376
    %1476 = vst [vmem:[#allocation3 + $0x38] sm:$0xff] %v1378
    %1477 = vst [vmem:[#allocation3 + $0x40] sm:$0xff] %v1447
    %1478 = vst [vmem:[#allocation3 + $0x48] sm:$0xff] %v1380
    %1479 = vst [vmem:[#allocation3 + $0x50] sm:$0xff] %v1382
    %1480 = vst [vmem:[#allocation3 + $0x58] sm:$0xff] %v1450
    %1481 = vst [vmem:[#allocation3 + $0x60] sm:$0xff] %v1386
    %1482 = vst [vmem:[#allocation3 + $0x68] sm:$0xff] %v1388
    %1483 = vst [vmem:[#allocation3 + $0x70] sm:$0xff] %v1455
    %1484 = vst [vmem:[#allocation3 + $0x78] sm:$0xff] %v1390
    %1485 = vst [vmem:[#allocation3 + $0x80] sm:$0xff] %v1392
    %1486 = vst [vmem:[#allocation3 + $0x88] sm:$0xff] %v1458
    %1487 = vst [vmem:[#allocation3 + $0x90] sm:$0xff] %v1396
    %1488 = vst [vmem:[#allocation3 + $0x98] sm:$0xff] %v1398
    %1489 = vst [vmem:[#allocation3 + $0xa0] sm:$0xff] %v1463
    %1490 = vst [vmem:[#allocation3 + $0xa8] sm:$0xff] %v1400
    %1491 = vst [vmem:[#allocation3 + $0xb0] sm:$0xff] %v1402
    %1492 = vst [vmem:[#allocation3 + $0xb8] sm:$0xff] %v1466
    %v1493 = vld [vmem:[#allocation10] sm:$0xff]
    %v1494 = vld [vmem:[#allocation10 + $0x8] sm:$0xf]
    %v1495 = vld [vmem:[#allocation10 + $0xc] sm:$0xff]
    %v1496 = vld [vmem:[#allocation10 + $0x14] sm:$0xf]
    %v1497 = vld [vmem:[#allocation10 + $0x18] sm:$0xff]
    %v1498 = vld [vmem:[#allocation10 + $0x20] sm:$0xf]
    %v1499 = vld [vmem:[#allocation10 + $0x24] sm:$0xff]
    %v1500 = vld [vmem:[#allocation10 + $0x2c] sm:$0xf]
    %v1501 = vld [vmem:[#allocation10 + $0x30] sm:$0xff]
    %v1502 = vld [vmem:[#allocation10 + $0x38] sm:$0xf]
    %v1503 = vld [vmem:[#allocation10 + $0x3c] sm:$0xff]
    %v1504 = vld [vmem:[#allocation10 + $0x44] sm:$0xf]
    %v1505 = vld [vmem:[#allocation10 + $0x48] sm:$0xff]
    %v1506 = vld [vmem:[#allocation10 + $0x50] sm:$0xf]
    %v1507 = vld [vmem:[#allocation10 + $0x54] sm:$0xff]
    %v1508 = vld [vmem:[#allocation10 + $0x5c] sm:$0xf]
    %v1509 = vld [vmem:[#allocation10 + $0x60] sm:$0xff]
    %v1510 = vld [vmem:[#allocation10 + $0x68] sm:$0xf]
    %v1511 = vld [vmem:[#allocation10 + $0x6c] sm:$0xff]
    %v1512 = vld [vmem:[#allocation10 + $0x74] sm:$0xf]
    %v1513 = vld [vmem:[#allocation10 + $0x78] sm:$0xff]
    %v1514 = vld [vmem:[#allocation10 + $0x80] sm:$0xf]
    %v1515 = vld [vmem:[#allocation10 + $0x84] sm:$0xff]
    %v1516 = vld [vmem:[#allocation10 + $0x8c] sm:$0xf]
    %v1517 = vld [vmem:[#allocation10 + $0x90] sm:$0xff]
    %v1518 = vld [vmem:[#allocation10 + $0x98] sm:$0xf]
    %v1519 = vld [vmem:[#allocation10 + $0x9c] sm:$0xff]
    %v1520 = vld [vmem:[#allocation10 + $0xa4] sm:$0xf]
    %v1521 = vld [vmem:[#allocation10 + $0xa8] sm:$0xff]
    %v1522 = vld [vmem:[#allocation10 + $0xb0] sm:$0xf]
    %v1523 = vld [vmem:[#allocation10 + $0xb4] sm:$0xff]
    %v1524 = vld [vmem:[#allocation10 + $0xbc] sm:$0xf]
    %v1525 = vld [vmem:[#allocation12] sm:$0xff]
    %v1526 = vld [vmem:[#allocation12 + $0x8] sm:$0xff]
    %v1527 = vld [vmem:[#allocation12 + $0x10] sm:$0xff]
    %v1528 = vld [vmem:[#allocation12 + $0x18] sm:$0xff]
    %v1529 = vld [vmem:[#allocation12 + $0x20] sm:$0xff]
    %v1530 = vld [vmem:[#allocation12 + $0x28] sm:$0xff]
    %v1531 = vld [vmem:[#allocation12 + $0x30] sm:$0xff]
    %v1532 = vld [vmem:[#allocation12 + $0x38] sm:$0xff]
    %v1533 = vld [vmem:[#allocation12 + $0x40] sm:$0xff]
    %v1534 = vld [vmem:[#allocation12 + $0x48] sm:$0xff]
    %v1535 = vld [vmem:[#allocation12 + $0x50] sm:$0xff]
    %v1536 = vld [vmem:[#allocation12 + $0x58] sm:$0xff]
    %v1537 = vld [vmem:[#allocation12 + $0x60] sm:$0xff]
    %v1538 = vld [vmem:[#allocation12 + $0x68] sm:$0xff]
    %v1539 = vld [vmem:[#allocation12 + $0x70] sm:$0xff]
    %v1540 = vld [vmem:[#allocation12 + $0x78] sm:$0xff]
    %v1541 = vld [vmem:[#allocation12 + $0x80] sm:$0xff]
    %v1542 = vld [vmem:[#allocation12 + $0x88] sm:$0xff]
    %v1543 = vld [vmem:[#allocation12 + $0x90] sm:$0xff]
    %v1544 = vld [vmem:[#allocation12 + $0x98] sm:$0xff]
    %v1545 = vld [vmem:[#allocation12 + $0xa0] sm:$0xff]
    %v1546 = vld [vmem:[#allocation12 + $0xa8] sm:$0xff]
    %v1547 = vld [vmem:[#allocation12 + $0xb0] sm:$0xff]
    %v1548 = vld [vmem:[#allocation12 + $0xb8] sm:$0xff]
    %v1549 = vld [vmem:[#allocation12 + $0xc0] sm:$0xff]
    %v1550 = vld [vmem:[#allocation12 + $0xc8] sm:$0xff]
    %v1551 = vld [vmem:[#allocation12 + $0xd0] sm:$0xff]
    %v1552 = vld [vmem:[#allocation12 + $0xd8] sm:$0xff]
    %v1553 = vld [vmem:[#allocation12 + $0xe0] sm:$0xff]
    %v1554 = vld [vmem:[#allocation12 + $0xe8] sm:$0xff]
    %v1555 = vld [vmem:[#allocation12 + $0xf0] sm:$0xff]
    %v1556 = vld [vmem:[#allocation12 + $0xf8] sm:$0xff]
    %v1557 = vld [vmem:[#allocation12 + $0x100] sm:$0xff]
    %v1558 = vld [vmem:[#allocation12 + $0x108] sm:$0xff]
    %v1559 = vld [vmem:[#allocation12 + $0x110] sm:$0xff]
    %v1560 = vld [vmem:[#allocation12 + $0x118] sm:$0xff]
    %v1561 = vld [vmem:[#allocation12 + $0x120] sm:$0xff]
    %v1562 = vld [vmem:[#allocation12 + $0x128] sm:$0xff]
    %v1563 = vld [vmem:[#allocation12 + $0x130] sm:$0xff]
    %v1564 = vld [vmem:[#allocation12 + $0x138] sm:$0xff]
    %v1565 = vld [vmem:[#allocation12 + $0x140] sm:$0xff]
    %v1566 = vld [vmem:[#allocation12 + $0x148] sm:$0xff]
    %v1567 = vld [vmem:[#allocation12 + $0x150] sm:$0xff]
    %v1568 = vld [vmem:[#allocation12 + $0x158] sm:$0xff]
    %v1569 = vld [vmem:[#allocation12 + $0x160] sm:$0xff]
    %v1570 = vld [vmem:[#allocation12 + $0x168] sm:$0xff]
    %v1571 = vld [vmem:[#allocation12 + $0x170] sm:$0xff]
    %v1572 = vld [vmem:[#allocation12 + $0x178] sm:$0xff]
    %v1573 = vld [vmem:[#allocation12 + $0x180] sm:$0xff]
    %v1574 = vld [vmem:[#allocation12 + $0x188] sm:$0xff]
    %v1575 = vld [vmem:[#allocation12 + $0x190] sm:$0xff]
    %v1576 = vld [vmem:[#allocation12 + $0x198] sm:$0xff]
    %v1577 = vld [vmem:[#allocation12 + $0x1a0] sm:$0xff]
    %v1578 = vld [vmem:[#allocation12 + $0x1a8] sm:$0xff]
    %v1579 = vld [vmem:[#allocation12 + $0x1b0] sm:$0xff]
    %v1580 = vld [vmem:[#allocation12 + $0x1b8] sm:$0xff]
    %v1581 = vld [vmem:[#allocation12 + $0x1c0] sm:$0xff]
    %v1582 = vld [vmem:[#allocation12 + $0x1c8] sm:$0xff]
    %v1583 = vld [vmem:[#allocation12 + $0x1d0] sm:$0xff]
    %v1584 = vld [vmem:[#allocation12 + $0x1d8] sm:$0xff]
    %v1585 = vld [vmem:[#allocation12 + $0x1e0] sm:$0xff]
    %v1586 = vld [vmem:[#allocation12 + $0x1e8] sm:$0xff]
    %v1587 = vld [vmem:[#allocation12 + $0x1f0] sm:$0xff]
    %v1588 = vld [vmem:[#allocation12 + $0x1f8] sm:$0xff]
    %v1589 = vld [vmem:[#allocation15] sm:$0x7]
    %v1591 = vlaneseq
    %v1592 = vshrl.u32 %v1591, 7
    %v1593 = vsub.s32 0, %v1592
    %v1594 = vrot.slane %v1589, %v1593
    %v1595 = vlaneseq
    %v1596 = vshrl.u32 %v1595, 7
    %v1597 = vsub.s32 1, %v1596
    %v1598 = vrot.slane %v1589, %v1597
    %v1599 = vlaneseq
    %v1600 = vshrl.u32 %v1599, 7
    %v1601 = vsub.s32 2, %v1600
    %v1602 = vrot.slane %v1589, %v1601
    %v1606 = vld [vmem:[#allocation16] sm:$0xf]
    %v1608 = vlaneseq
    %v1609 = vshrl.u32 %v1608, 7
    %v1610 = vsub.s32 0, %v1609
    %v1611 = vrot.slane %v1606, %v1610
    %v1612 = vlaneseq
    %v1613 = vshrl.u32 %v1612, 7
    %v1614 = vsub.s32 1, %v1613
    %v1615 = vrot.slane %v1606, %v1614
    %v1616 = vlaneseq
    %v1617 = vshrl.u32 %v1616, 7
    %v1618 = vsub.s32 2, %v1617
    %v1619 = vrot.slane %v1606, %v1618
    %v1620 = vlaneseq
    %v1621 = vshrl.u32 %v1620, 7
    %v1622 = vsub.s32 3, %v1621
    %v1623 = vrot.slane %v1606, %v1622
    %v1628 = vld [vmem:[%s11] sm:$0x1]
    %v1630 = vlaneseq
    %v1631 = vshrl.u32 %v1630, 7
    %v1632 = vsub.s32 0, %v1631
    %v1633 = vrot.slane %v1628, %v1632
    %s1635 = scalar_lea.vmem %s11, 1
    %v1636 = vld [vmem:[%s1635] sm:$0x1]
    %v1638 = vlaneseq
    %v1639 = vshrl.u32 %v1638, 7
    %v1640 = vsub.s32 0, %v1639
    %v1641 = vrot.slane %v1636, %v1640
    %s1643 = scalar_lea.vmem %s11, 2
    %v1644 = vld [vmem:[%s1643] sm:$0x1]
    %v1646 = vlaneseq
    %v1647 = vshrl.u32 %v1646, 7
    %v1648 = vsub.s32 0, %v1647
    %v1649 = vrot.slane %v1644, %v1648
    %s1651 = scalar_lea.vmem %s11, 3
    %v1652 = vld [vmem:[%s1651] sm:$0x1]
    %v1654 = vlaneseq
    %v1655 = vshrl.u32 %v1654, 7
    %v1656 = vsub.s32 0, %v1655
    %v1657 = vrot.slane %v1652, %v1656
    %v1659 = vld [vmem:[#allocation3] sm:$0xff]
    %v1660 = vld [vmem:[#allocation3 + $0x8] sm:$0xff]
    %v1661 = vld [vmem:[#allocation3 + $0x10] sm:$0xff]
    %v1694 = vunpack.c.l.b16 %v1493
    %v1695 = vunpack.c.h.b16 %v1493
    %v1696 = vunpack.c.l.b16 %v1494
    %v1697 = vunpack.c.l.b16 %v1495
    %v1698 = vunpack.c.h.b16 %v1495
    %v1699 = vunpack.c.l.b16 %v1496
    %v1700 = vunpack.c.l.b16 %v1497
    %v1701 = vunpack.c.h.b16 %v1497
    %v1702 = vunpack.c.l.b16 %v1498
    %v1703 = vunpack.c.l.b16 %v1499
    %v1704 = vunpack.c.h.b16 %v1499
    %v1705 = vunpack.c.l.b16 %v1500
    %v1706 = vunpack.c.l.b16 %v1501
    %v1707 = vunpack.c.h.b16 %v1501
    %v1708 = vunpack.c.l.b16 %v1502
    %v1709 = vunpack.c.l.b16 %v1503
    %v1710 = vunpack.c.h.b16 %v1503
    %v1711 = vunpack.c.l.b16 %v1504
    %v1712 = vunpack.c.l.b16 %v1505
    %v1713 = vunpack.c.h.b16 %v1505
    %v1714 = vunpack.c.l.b16 %v1506
    %v1715 = vunpack.c.l.b16 %v1507
    %v1716 = vunpack.c.h.b16 %v1507
    %v1717 = vunpack.c.l.b16 %v1508
    %v1718 = vunpack.c.l.b16 %v1509
    %v1719 = vunpack.c.h.b16 %v1509
    %v1720 = vunpack.c.l.b16 %v1510
    %v1721 = vunpack.c.l.b16 %v1511
    %v1722 = vunpack.c.h.b16 %v1511
    %v1723 = vunpack.c.l.b16 %v1512
    %v1724 = vunpack.c.l.b16 %v1513
    %v1725 = vunpack.c.h.b16 %v1513
    %v1726 = vunpack.c.l.b16 %v1514
    %v1727 = vunpack.c.l.b16 %v1515
    %v1728 = vunpack.c.h.b16 %v1515
    %v1729 = vunpack.c.l.b16 %v1516
    %v1730 = vunpack.c.l.b16 %v1517
    %v1731 = vunpack.c.h.b16 %v1517
    %v1732 = vunpack.c.l.b16 %v1518
    %v1733 = vunpack.c.l.b16 %v1519
    %v1734 = vunpack.c.h.b16 %v1519
    %v1735 = vunpack.c.l.b16 %v1520
    %v1736 = vunpack.c.l.b16 %v1521
    %v1737 = vunpack.c.h.b16 %v1521
    %v1738 = vunpack.c.l.b16 %v1522
    %v1739 = vunpack.c.l.b16 %v1523
    %v1740 = vunpack.c.h.b16 %v1523
    %v1741 = vunpack.c.l.b16 %v1524
    %v1742 = vpack.c.b16 %v1697, %v1694
    %v1743 = vpack.c.b16 %v1698, %v1695
    %v1744 = vpack.c.b16 %v1699, %v1696
    %v1745 = vpack.c.b16 %v1703, %v1700
    %v1746 = vpack.c.b16 %v1704, %v1701
    %v1747 = vpack.c.b16 %v1705, %v1702
    %v1748 = vpack.c.b16 %v1709, %v1706
    %v1749 = vpack.c.b16 %v1710, %v1707
    %v1750 = vpack.c.b16 %v1711, %v1708
    %v1751 = vpack.c.b16 %v1715, %v1712
    %v1752 = vpack.c.b16 %v1716, %v1713
    %v1753 = vpack.c.b16 %v1717, %v1714
    %v1754 = vpack.c.b16 %v1721, %v1718
    %v1755 = vpack.c.b16 %v1722, %v1719
    %v1756 = vpack.c.b16 %v1723, %v1720
    %v1757 = vpack.c.b16 %v1727, %v1724
    %v1758 = vpack.c.b16 %v1728, %v1725
    %v1759 = vpack.c.b16 %v1729, %v1726
    %v1760 = vpack.c.b16 %v1733, %v1730
    %v1761 = vpack.c.b16 %v1734, %v1731
    %v1762 = vpack.c.b16 %v1735, %v1732
    %v1763 = vpack.c.b16 %v1739, %v1736
    %v1764 = vpack.c.b16 %v1740, %v1737
    %v1765 = vpack.c.b16 %v1741, %v1738
    %1790 = vmatprep.subr.bf16.mxu0 %v1743
    %1791 = vmatpush1.bf16.msra.mxu0 %v1742
    %1792 = vmatprep.subr.bf16.mxu0 %v1746
    %1793 = vmatpush1.bf16.msra.mxu0 %v1745
    %1794 = vmatprep.subr.bf16.mxu0 %v1749
    %1795 = vmatpush1.bf16.msra.mxu0 %v1748
    %1796 = vmatprep.subr.bf16.mxu0 %v1752
    %1797 = vmatpush1.bf16.msra.mxu0 %v1751
    %1798 = vmatprep.subr.bf16.mxu0 %v1755
    %1799 = vmatpush1.bf16.msra.mxu0 %v1754
    %1800 = vmatprep.subr.bf16.mxu0 %v1758
    %1801 = vmatpush1.bf16.msra.mxu0 %v1757
    %1802 = vmatprep.subr.bf16.mxu0 %v1761
    %1803 = vmatpush1.bf16.msra.mxu0 %v1760
    %1804 = vmatprep.subr.bf16.mxu0 %v1764
    %1805 = vmatpush1.bf16.msra.mxu0 %v1763
    %1806 = vmatprep.subr.bf16.mxu0 0
    %1807 = vmatpush1.bf16.msra.mxu0 0
    %1808 = vmatprep.subr.bf16.mxu0 0
    %1809 = vmatpush1.bf16.msra.mxu0 0
    %1810 = vmatprep.subr.bf16.mxu0 0
    %1811 = vmatpush1.bf16.msra.mxu0 0
    %1812 = vmatprep.subr.bf16.mxu0 0
    %1813 = vmatpush1.bf16.msra.mxu0 0
    %1814 = vmatprep.subr.bf16.mxu0 0
    %1815 = vmatpush1.bf16.msra.mxu0 0
    %1816 = vmatprep.subr.bf16.mxu0 0
    %1817 = vmatpush1.bf16.msra.mxu0 0
    %1818 = vmatprep.subr.bf16.mxu0 0
    %1819 = vmatpush1.bf16.msra.mxu0 0
    %1820 = vmatprep.subr.bf16.mxu0 0
    %1821 = vmatpush1.bf16.msra.mxu0 0
    %1822 = vmatprep.mubr.bf16.mxu0 0
    %1823 = vmatmul.mubr.bf16.gmra.mrb[0].mxu0 0
    %v1824 = vpop.f32.mrb[0].mxu0
    %v1825 = vadd.f32 %v1594, %v1824
    %v1826 = vpop.f32.mrb[0].mxu0
    %v1827 = vadd.f32 %v1598, %v1826
    %v1828 = vpop.f32.mrb[0].mxu0
    %v1829 = vpop.f32.mrb[0].mxu0
    %1830 = vdwg.mxu0
    %1831 = vmatprep.subr.bf16.mxu0 0
    %1832 = vmatpush1.bf16.msra.mxu0 %v1744
    %1833 = vmatprep.subr.bf16.mxu0 0
    %1834 = vmatpush1.bf16.msra.mxu0 %v1747
    %1835 = vmatprep.subr.bf16.mxu0 0
    %1836 = vmatpush1.bf16.msra.mxu0 %v1750
    %1837 = vmatprep.subr.bf16.mxu0 0
    %1838 = vmatpush1.bf16.msra.mxu0 %v1753
    %1839 = vmatprep.subr.bf16.mxu0 0
    %1840 = vmatpush1.bf16.msra.mxu0 %v1756
    %1841 = vmatprep.subr.bf16.mxu0 0
    %1842 = vmatpush1.bf16.msra.mxu0 %v1759
    %1843 = vmatprep.subr.bf16.mxu0 0
    %1844 = vmatpush1.bf16.msra.mxu0 %v1762
    %1845 = vmatprep.subr.bf16.mxu0 0
    %1846 = vmatpush1.bf16.msra.mxu0 %v1765
    %1847 = vmatprep.subr.bf16.mxu0 0
    %1848 = vmatpush1.bf16.msra.mxu0 0
    %1849 = vmatprep.subr.bf16.mxu0 0
    %1850 = vmatpush1.bf16.msra.mxu0 0
    %1851 = vmatprep.subr.bf16.mxu0 0
    %1852 = vmatpush1.bf16.msra.mxu0 0
    %1853 = vmatprep.subr.bf16.mxu0 0
    %1854 = vmatpush1.bf16.msra.mxu0 0
    %1855 = vmatprep.subr.bf16.mxu0 0
    %1856 = vmatpush1.bf16.msra.mxu0 0
    %1857 = vmatprep.subr.bf16.mxu0 0
    %1858 = vmatpush1.bf16.msra.mxu0 0
    %1859 = vmatprep.subr.bf16.mxu0 0
    %1860 = vmatpush1.bf16.msra.mxu0 0
    %1861 = vmatprep.subr.bf16.mxu0 0
    %1862 = vmatpush1.bf16.msra.mxu0 0
    %1863 = vmatprep.mubr.bf16.mxu0 0
    %1864 = vmatmul.mubr.bf16.gmra.mrb[0].mxu0 0
    %v1865 = vpop.f32.mrb[0].mxu0
    %v1866 = vadd.f32 %v1602, %v1865
    %v1867 = vpop.f32.mrb[0].mxu0
    %v1868 = vpop.f32.mrb[0].mxu0
    %v1869 = vpop.f32.mrb[0].mxu0
    %1870 = vdwg.mxu0
    %v1871 = vadd.f32 %v1659, %v1825
    %v1872 = vxor.u32 %v1871, 2147483648
    %v1873 = vmul.f32 %v1872, 1.442695
    %v1874 = vpow.pop %v1873
    %v1875 = vadd.f32 %v1874, 1.0
    %v1876 = vrcp.pop %v1875
    %v1877 = vmul.f32 1.0, %v1876
    %v1878 = vadd.f32 %v1660, %v1827
    %v1879 = vxor.u32 %v1878, 2147483648
    %v1880 = vmul.f32 %v1879, 1.442695
    %v1881 = vpow.pop %v1880
    %v1882 = vadd.f32 %v1881, 1.0
    %v1883 = vrcp.pop %v1882
    %v1884 = vmul.f32 1.0, %v1883
    %v1885 = vmul.f32 %v1877, %v1866
    %v1886 = vadd.f32 %v1661, %v1885
    %v1887 = vtanh.pop %v1886
    %v1888 = vsub.f32 1.0, %v1884
    %v1889 = vmul.f32 %v1888, %v1887
    %v1890 = vmul.f32 %v1884, 0.0
    %v1891 = vadd.f32 %v1889, %v1890
    %1892 = vadd.xlane.f32.xlu0 %v1891
    %v1893 = vpop.xlane.xlu0 %1892
    %v1894 = vrcp.pop 128.0
    %v1895 = vmul.f32 %v1893, %v1894
    %v1896 = vsub.f32 %v1891, %v1895
    %v1897 = vmul.f32 %v1896, %v1896
    %1898 = vadd.xlane.f32.xlu0 %v1897
    %v1899 = vpop.xlane.xlu0 %1898
    %v1900 = vmul.f32 %v1899, %v1894
    %v1901 = vadd.f32 %v1900, 1e-05
    %v1902 = vrsqrt.pop %v1901
    %v1903 = vmul.f32 %v1896, %v1902
    %v1904 = vmul.f32 %v1903, %v1633
    %v1905 = vadd.f32 %v1904, %v1641
    %v1906 = vpack.c.bf16 %v1905, %v1905
    %v1907 = vpack.c.bf16 0.0, 0.0
    %v1972 = vunpack.c.l.b16 %v1525
    %v1973 = vunpack.c.h.b16 %v1525
    %v1974 = vunpack.c.l.b16 %v1526
    %v1975 = vunpack.c.h.b16 %v1526
    %v1976 = vunpack.c.l.b16 %v1527
    %v1977 = vunpack.c.h.b16 %v1527
    %v1978 = vunpack.c.l.b16 %v1528
    %v1979 = vunpack.c.h.b16 %v1528
    %v1980 = vunpack.c.l.b16 %v1529
    %v1981 = vunpack.c.h.b16 %v1529
    %v1982 = vunpack.c.l.b16 %v1530
    %v1983 = vunpack.c.h.b16 %v1530
    %v1984 = vunpack.c.l.b16 %v1531
    %v1985 = vunpack.c.h.b16 %v1531
    %v1986 = vunpack.c.l.b16 %v1532
    %v1987 = vunpack.c.h.b16 %v1532
    %v1988 = vunpack.c.l.b16 %v1533
    %v1989 = vunpack.c.h.b16 %v1533
    %v1990 = vunpack.c.l.b16 %v1534
    %v1991 = vunpack.c.h.b16 %v1534
    %v1992 = vunpack.c.l.b16 %v1535
    %v1993 = vunpack.c.h.b16 %v1535
    %v1994 = vunpack.c.l.b16 %v1536
    %v1995 = vunpack.c.h.b16 %v1536
    %v1996 = vunpack.c.l.b16 %v1537
    %v1997 = vunpack.c.h.b16 %v1537
    %v1998 = vunpack.c.l.b16 %v1538
    %v1999 = vunpack.c.h.b16 %v1538
    %v2000 = vunpack.c.l.b16 %v1539
    %v2001 = vunpack.c.h.b16 %v1539
    %v2002 = vunpack.c.l.b16 %v1540
    %v2003 = vunpack.c.h.b16 %v1540
    %v2004 = vunpack.c.l.b16 %v1541
    %v2005 = vunpack.c.h.b16 %v1541
    %v2006 = vunpack.c.l.b16 %v1542
    %v2007 = vunpack.c.h.b16 %v1542
    %v2008 = vunpack.c.l.b16 %v1543
    %v2009 = vunpack.c.h.b16 %v1543
    %v2010 = vunpack.c.l.b16 %v1544
    %v2011 = vunpack.c.h.b16 %v1544
    %v2012 = vunpack.c.l.b16 %v1545
    %v2013 = vunpack.c.h.b16 %v1545
    %v2014 = vunpack.c.l.b16 %v1546
    %v2015 = vunpack.c.h.b16 %v1546
    %v2016 = vunpack.c.l.b16 %v1547
    %v2017 = vunpack.c.h.b16 %v1547
    %v2018 = vunpack.c.l.b16 %v1548
    %v2019 = vunpack.c.h.b16 %v1548
    %v2020 = vunpack.c.l.b16 %v1549
    %v2021 = vunpack.c.h.b16 %v1549
    %v2022 = vunpack.c.l.b16 %v1550
    %v2023 = vunpack.c.h.b16 %v1550
    %v2024 = vunpack.c.l.b16 %v1551
    %v2025 = vunpack.c.h.b16 %v1551
    %v2026 = vunpack.c.l.b16 %v1552
    %v2027 = vunpack.c.h.b16 %v1552
    %v2028 = vunpack.c.l.b16 %v1553
    %v2029 = vunpack.c.h.b16 %v1553
    %v2030 = vunpack.c.l.b16 %v1554
    %v2031 = vunpack.c.h.b16 %v1554
    %v2032 = vunpack.c.l.b16 %v1555
    %v2033 = vunpack.c.h.b16 %v1555
    %v2034 = vunpack.c.l.b16 %v1556
    %v2035 = vunpack.c.h.b16 %v1556
    %v2036 = vunpack.c.l.b16 %v1557
    %v2037 = vunpack.c.h.b16 %v1557
    %v2038 = vunpack.c.l.b16 %v1558
    %v2039 = vunpack.c.h.b16 %v1558
    %v2040 = vunpack.c.l.b16 %v1559
    %v2041 = vunpack.c.h.b16 %v1559
    %v2042 = vunpack.c.l.b16 %v1560
    %v2043 = vunpack.c.h.b16 %v1560
    %v2044 = vunpack.c.l.b16 %v1561
    %v2045 = vunpack.c.h.b16 %v1561
    %v2046 = vunpack.c.l.b16 %v1562
    %v2047 = vunpack.c.h.b16 %v1562
    %v2048 = vunpack.c.l.b16 %v1563
    %v2049 = vunpack.c.h.b16 %v1563
    %v2050 = vunpack.c.l.b16 %v1564
    %v2051 = vunpack.c.h.b16 %v1564
    %v2052 = vunpack.c.l.b16 %v1565
    %v2053 = vunpack.c.h.b16 %v1565
    %v2054 = vunpack.c.l.b16 %v1566
    %v2055 = vunpack.c.h.b16 %v1566
    %v2056 = vunpack.c.l.b16 %v1567
    %v2057 = vunpack.c.h.b16 %v1567
    %v2058 = vunpack.c.l.b16 %v1568
    %v2059 = vunpack.c.h.b16 %v1568
    %v2060 = vunpack.c.l.b16 %v1569
    %v2061 = vunpack.c.h.b16 %v1569
    %v2062 = vunpack.c.l.b16 %v1570
    %v2063 = vunpack.c.h.b16 %v1570
    %v2064 = vunpack.c.l.b16 %v1571
    %v2065 = vunpack.c.h.b16 %v1571
    %v2066 = vunpack.c.l.b16 %v1572
    %v2067 = vunpack.c.h.b16 %v1572
    %v2068 = vunpack.c.l.b16 %v1573
    %v2069 = vunpack.c.h.b16 %v1573
    %v2070 = vunpack.c.l.b16 %v1574
    %v2071 = vunpack.c.h.b16 %v1574
    %v2072 = vunpack.c.l.b16 %v1575
    %v2073 = vunpack.c.h.b16 %v1575
    %v2074 = vunpack.c.l.b16 %v1576
    %v2075 = vunpack.c.h.b16 %v1576
    %v2076 = vunpack.c.l.b16 %v1577
    %v2077 = vunpack.c.h.b16 %v1577
    %v2078 = vunpack.c.l.b16 %v1578
    %v2079 = vunpack.c.h.b16 %v1578
    %v2080 = vunpack.c.l.b16 %v1579
    %v2081 = vunpack.c.h.b16 %v1579
    %v2082 = vunpack.c.l.b16 %v1580
    %v2083 = vunpack.c.h.b16 %v1580
    %v2084 = vunpack.c.l.b16 %v1581
    %v2085 = vunpack.c.h.b16 %v1581
    %v2086 = vunpack.c.l.b16 %v1582
    %v2087 = vunpack.c.h.b16 %v1582
    %v2088 = vunpack.c.l.b16 %v1583
    %v2089 = vunpack.c.h.b16 %v1583
    %v2090 = vunpack.c.l.b16 %v1584
    %v2091 = vunpack.c.h.b16 %v1584
    %v2092 = vunpack.c.l.b16 %v1585
    %v2093 = vunpack.c.h.b16 %v1585
    %v2094 = vunpack.c.l.b16 %v1586
    %v2095 = vunpack.c.h.b16 %v1586
    %v2096 = vunpack.c.l.b16 %v1587
    %v2097 = vunpack.c.h.b16 %v1587
    %v2098 = vunpack.c.l.b16 %v1588
    %v2099 = vunpack.c.h.b16 %v1588
    %v2100 = vpack.c.b16 %v1976, %v1972
    %v2101 = vpack.c.b16 %v1977, %v1973
    %v2102 = vpack.c.b16 %v1978, %v1974
    %v2103 = vpack.c.b16 %v1979, %v1975
    %v2104 = vpack.c.b16 %v1984, %v1980
    %v2105 = vpack.c.b16 %v1985, %v1981
    %v2106 = vpack.c.b16 %v1986, %v1982
    %v2107 = vpack.c.b16 %v1987, %v1983
    %v2108 = vpack.c.b16 %v1992, %v1988
    %v2109 = vpack.c.b16 %v1993, %v1989
    %v2110 = vpack.c.b16 %v1994, %v1990
    %v2111 = vpack.c.b16 %v1995, %v1991
    %v2112 = vpack.c.b16 %v2000, %v1996
    %v2113 = vpack.c.b16 %v2001, %v1997
    %v2114 = vpack.c.b16 %v2002, %v1998
    %v2115 = vpack.c.b16 %v2003, %v1999
    %v2116 = vpack.c.b16 %v2008, %v2004
    %v2117 = vpack.c.b16 %v2009, %v2005
    %v2118 = vpack.c.b16 %v2010, %v2006
    %v2119 = vpack.c.b16 %v2011, %v2007
    %v2120 = vpack.c.b16 %v2016, %v2012
    %v2121 = vpack.c.b16 %v2017, %v2013
    %v2122 = vpack.c.b16 %v2018, %v2014
    %v2123 = vpack.c.b16 %v2019, %v2015
    %v2124 = vpack.c.b16 %v2024, %v2020
    %v2125 = vpack.c.b16 %v2025, %v2021
    %v2126 = vpack.c.b16 %v2026, %v2022
    %v2127 = vpack.c.b16 %v2027, %v2023
    %v2128 = vpack.c.b16 %v2032, %v2028
    %v2129 = vpack.c.b16 %v2033, %v2029
    %v2130 = vpack.c.b16 %v2034, %v2030
    %v2131 = vpack.c.b16 %v2035, %v2031
    %v2132 = vpack.c.b16 %v2040, %v2036
    %v2133 = vpack.c.b16 %v2041, %v2037
    %v2134 = vpack.c.b16 %v2042, %v2038
    %v2135 = vpack.c.b16 %v2043, %v2039
    %v2136 = vpack.c.b16 %v2048, %v2044
    %v2137 = vpack.c.b16 %v2049, %v2045
    %v2138 = vpack.c.b16 %v2050, %v2046
    %v2139 = vpack.c.b16 %v2051, %v2047
    %v2140 = vpack.c.b16 %v2056, %v2052
    %v2141 = vpack.c.b16 %v2057, %v2053
    %v2142 = vpack.c.b16 %v2058, %v2054
    %v2143 = vpack.c.b16 %v2059, %v2055
    %v2144 = vpack.c.b16 %v2064, %v2060
    %v2145 = vpack.c.b16 %v2065, %v2061
    %v2146 = vpack.c.b16 %v2066, %v2062
    %v2147 = vpack.c.b16 %v2067, %v2063
    %v2148 = vpack.c.b16 %v2072, %v2068
    %v2149 = vpack.c.b16 %v2073, %v2069
    %v2150 = vpack.c.b16 %v2074, %v2070
    %v2151 = vpack.c.b16 %v2075, %v2071
    %v2152 = vpack.c.b16 %v2080, %v2076
    %v2153 = vpack.c.b16 %v2081, %v2077
    %v2154 = vpack.c.b16 %v2082, %v2078
    %v2155 = vpack.c.b16 %v2083, %v2079
    %v2156 = vpack.c.b16 %v2088, %v2084
    %v2157 = vpack.c.b16 %v2089, %v2085
    %v2158 = vpack.c.b16 %v2090, %v2086
    %v2159 = vpack.c.b16 %v2091, %v2087
    %v2160 = vpack.c.b16 %v2096, %v2092
    %v2161 = vpack.c.b16 %v2097, %v2093
    %v2162 = vpack.c.b16 %v2098, %v2094
    %v2163 = vpack.c.b16 %v2099, %v2095
    %2228 = vmatprep.subr.bf16.mxu0 %v2101
    %2229 = vmatpush1.bf16.msra.mxu0 %v2100
    %2230 = vmatprep.subr.bf16.mxu0 %v2105
    %2231 = vmatpush1.bf16.msra.mxu0 %v2104
    %2232 = vmatprep.subr.bf16.mxu0 %v2109
    %2233 = vmatpush1.bf16.msra.mxu0 %v2108
    %2234 = vmatprep.subr.bf16.mxu0 %v2113
    %2235 = vmatpush1.bf16.msra.mxu0 %v2112
    %2236 = vmatprep.subr.bf16.mxu0 %v2117
    %2237 = vmatpush1.bf16.msra.mxu0 %v2116
    %2238 = vmatprep.subr.bf16.mxu0 %v2121
    %2239 = vmatpush1.bf16.msra.mxu0 %v2120
    %2240 = vmatprep.subr.bf16.mxu0 %v2125
    %2241 = vmatpush1.bf16.msra.mxu0 %v2124
    %2242 = vmatprep.subr.bf16.mxu0 %v2129
    %2243 = vmatpush1.bf16.msra.mxu0 %v2128
    %2244 = vmatprep.subr.bf16.mxu0 %v2133
    %2245 = vmatpush1.bf16.msra.mxu0 %v2132
    %2246 = vmatprep.subr.bf16.mxu0 %v2137
    %2247 = vmatpush1.bf16.msra.mxu0 %v2136
    %2248 = vmatprep.subr.bf16.mxu0 %v2141
    %2249 = vmatpush1.bf16.msra.mxu0 %v2140
    %2250 = vmatprep.subr.bf16.mxu0 %v2145
    %2251 = vmatpush1.bf16.msra.mxu0 %v2144
    %2252 = vmatprep.subr.bf16.mxu0 %v2149
    %2253 = vmatpush1.bf16.msra.mxu0 %v2148
    %2254 = vmatprep.subr.bf16.mxu0 %v2153
    %2255 = vmatpush1.bf16.msra.mxu0 %v2152
    %2256 = vmatprep.subr.bf16.mxu0 %v2157
    %2257 = vmatpush1.bf16.msra.mxu0 %v2156
    %2258 = vmatprep.subr.bf16.mxu0 %v2161
    %2259 = vmatpush1.bf16.msra.mxu0 %v2160
    %2260 = vmatprep.mubr.bf16.mxu0 %v1907
    %2261 = vmatmul.mubr.bf16.gmra.mrb[0].mxu0 %v1906
    %v2262 = vpop.f32.mrb[0].mxu0
    %v2263 = vadd.f32 %v1611, %v2262
    %v2264 = vpop.f32.mrb[0].mxu0
    %v2265 = vadd.f32 %v1615, %v2264
    %v2266 = vpop.f32.mrb[0].mxu0
    %v2267 = vpop.f32.mrb[0].mxu0
    %2268 = vdwg.mxu0
    %2269 = vmatprep.subr.bf16.mxu0 %v2103
    %2270 = vmatpush1.bf16.msra.mxu0 %v2102
    %2271 = vmatprep.subr.bf16.mxu0 %v2107
    %2272 = vmatpush1.bf16.msra.mxu0 %v2106
    %2273 = vmatprep.subr.bf16.mxu0 %v2111
    %2274 = vmatpush1.bf16.msra.mxu0 %v2110
    %2275 = vmatprep.subr.bf16.mxu0 %v2115
    %2276 = vmatpush1.bf16.msra.mxu0 %v2114
    %2277 = vmatprep.subr.bf16.mxu0 %v2119
    %2278 = vmatpush1.bf16.msra.mxu0 %v2118
    %2279 = vmatprep.subr.bf16.mxu0 %v2123
    %2280 = vmatpush1.bf16.msra.mxu0 %v2122
    %2281 = vmatprep.subr.bf16.mxu0 %v2127
    %2282 = vmatpush1.bf16.msra.mxu0 %v2126
    %2283 = vmatprep.subr.bf16.mxu0 %v2131
    %2284 = vmatpush1.bf16.msra.mxu0 %v2130
    %2285 = vmatprep.subr.bf16.mxu0 %v2135
    %2286 = vmatpush1.bf16.msra.mxu0 %v2134
    %2287 = vmatprep.subr.bf16.mxu0 %v2139
    %2288 = vmatpush1.bf16.msra.mxu0 %v2138
    %2289 = vmatprep.subr.bf16.mxu0 %v2143
    %2290 = vmatpush1.bf16.msra.mxu0 %v2142
    %2291 = vmatprep.subr.bf16.mxu0 %v2147
    %2292 = vmatpush1.bf16.msra.mxu0 %v2146
    %2293 = vmatprep.subr.bf16.mxu0 %v2151
    %2294 = vmatpush1.bf16.msra.mxu0 %v2150
    %2295 = vmatprep.subr.bf16.mxu0 %v2155
    %2296 = vmatpush1.bf16.msra.mxu0 %v2154
    %2297 = vmatprep.subr.bf16.mxu0 %v2159
    %2298 = vmatpush1.bf16.msra.mxu0 %v2158
    %2299 = vmatprep.subr.bf16.mxu0 %v2163
    %2300 = vmatpush1.bf16.msra.mxu0 %v2162
    %2301 = vmatprep.mubr.bf16.mxu0 %v1907
    %2302 = vmatmul.mubr.bf16.gmra.mrb[0].mxu0 %v1906
    %v2303 = vpop.f32.mrb[0].mxu0
    %v2304 = vadd.f32 %v1619, %v2303
    %v2305 = vpop.f32.mrb[0].mxu0
    %v2306 = vadd.f32 %v1623, %v2305
    %v2307 = vpop.f32.mrb[0].mxu0
    %v2308 = vpop.f32.mrb[0].mxu0
    %2309 = vdwg.mxu0
    %v2310 = vxor.u32 %v2263, 2147483648
    %v2311 = vmul.f32 %v2310, 1.442695
    %v2312 = vpow.pop %v2311
    %v2313 = vadd.f32 %v2312, 1.0
    %v2314 = vrcp.pop %v2313
    %v2315 = vmul.f32 1.0, %v2314
    %v2316 = vxor.u32 %v2265, 2147483648
    %v2317 = vmul.f32 %v2316, 1.442695
    %v2318 = vpow.pop %v2317
    %v2319 = vadd.f32 %v2318, 1.0
    %v2320 = vrcp.pop %v2319
    %v2321 = vmul.f32 1.0, %v2320
    %v2322 = vmul.f32 %v2315, %v2306
    %v2323 = vadd.f32 %v2304, %v2322
    %v2324 = vtanh.pop %v2323
    %v2325 = vsub.f32 1.0, %v2321
    %v2326 = vmul.f32 %v2325, %v2324
    %v2327 = vmul.f32 %v2321, 0.0
    %v2328 = vadd.f32 %v2326, %v2327
    %v2329 = vld [vmem:[#allocation4] sm:$0xff]
    %2330 = vadd.xlane.f32.xlu0 %v2328
    %v2331 = vpop.xlane.xlu0 %2330
    %v2332 = vmul.f32 %v2331, %v1894
    %v2333 = vsub.f32 %v2328, %v2332
    %v2334 = vmul.f32 %v2333, %v2333
    %2335 = vadd.xlane.f32.xlu0 %v2334
    %v2336 = vpop.xlane.xlu0 %2335
    %v2337 = vmul.f32 %v2336, %v1894
    %v2338 = vadd.f32 %v2337, 1e-05
    %v2339 = vrsqrt.pop %v2338
    %v2340 = vmul.f32 %v2333, %v2339
    %v2341 = vmul.f32 %v2340, %v1649
    %v2342 = vadd.f32 %v2341, %v1657
    %v2343 = vadd.f32 %v2329, %v2342
    %2344 = vst [vmem:[#allocation4] sm:$0xff] %v2343
    %v2345 = vld [vmem:[#allocation3 + $0x18] sm:$0xff]
    %v2346 = vld [vmem:[#allocation3 + $0x20] sm:$0xff]
    %v2347 = vld [vmem:[#allocation3 + $0x28] sm:$0xff]
    %v2348 = vpack.c.bf16 %v1891, %v1891
    %2349 = vmatprep.subr.bf16.mxu0 %v1743
    %2350 = vmatpush1.bf16.msra.mxu0 %v1742
    %2351 = vmatprep.subr.bf16.mxu0 %v1746
    %2352 = vmatpush1.bf16.msra.mxu0 %v1745
    %2353 = vmatprep.subr.bf16.mxu0 %v1749
    %2354 = vmatpush1.bf16.msra.mxu0 %v1748
    %2355 = vmatprep.subr.bf16.mxu0 %v1752
    %2356 = vmatpush1.bf16.msra.mxu0 %v1751
    %2357 = vmatprep.subr.bf16.mxu0 %v1755
    %2358 = vmatpush1.bf16.msra.mxu0 %v1754
    %2359 = vmatprep.subr.bf16.mxu0 %v1758
    %2360 = vmatpush1.bf16.msra.mxu0 %v1757
    %2361 = vmatprep.subr.bf16.mxu0 %v1761
    %2362 = vmatpush1.bf16.msra.mxu0 %v1760
    %2363 = vmatprep.subr.bf16.mxu0 %v1764
    %2364 = vmatpush1.bf16.msra.mxu0 %v1763
    %2365 = vmatprep.subr.bf16.mxu0 0
    %2366 = vmatpush1.bf16.msra.mxu0 0
    %2367 = vmatprep.subr.bf16.mxu0 0
    %2368 = vmatpush1.bf16.msra.mxu0 0
    %2369 = vmatprep.subr.bf16.mxu0 0
    %2370 = vmatpush1.bf16.msra.mxu0 0
    %2371 = vmatprep.subr.bf16.mxu0 0
    %2372 = vmatpush1.bf16.msra.mxu0 0
    %2373 = vmatprep.subr.bf16.mxu0 0
    %2374 = vmatpush1.bf16.msra.mxu0 0
    %2375 = vmatprep.subr.bf16.mxu0 0
    %2376 = vmatpush1.bf16.msra.mxu0 0
    %2377 = vmatprep.subr.bf16.mxu0 0
    %2378 = vmatpush1.bf16.msra.mxu0 0
    %2379 = vmatprep.subr.bf16.mxu0 0
    %2380 = vmatpush1.bf16.msra.mxu0 0
    %2381 = vmatprep.mubr.bf16.mxu0 0
    %2382 = vmatmul.mubr.bf16.gmra.mrb[0].mxu0 %v2348
    %v2383 = vpop.f32.mrb[0].mxu0
    %v2384 = vadd.f32 %v1594, %v2383
    %v2385 = vpop.f32.mrb[0].mxu0
    %v2386 = vadd.f32 %v1598, %v2385
    %v2387 = vpop.f32.mrb[0].mxu0
    %v2388 = vpop.f32.mrb[0].mxu0
    %2389 = vdwg.mxu0
    %2390 = vmatprep.subr.bf16.mxu0 0
    %2391 = vmatpush1.bf16.msra.mxu0 %v1744
    %2392 = vmatprep.subr.bf16.mxu0 0
    %2393 = vmatpush1.bf16.msra.mxu0 %v1747
    %2394 = vmatprep.subr.bf16.mxu0 0
    %2395 = vmatpush1.bf16.msra.mxu0 %v1750
    %2396 = vmatprep.subr.bf16.mxu0 0
    %2397 = vmatpush1.bf16.msra.mxu0 %v1753
    %2398 = vmatprep.subr.bf16.mxu0 0
    %2399 = vmatpush1.bf16.msra.mxu0 %v1756
    %2400 = vmatprep.subr.bf16.mxu0 0
    %2401 = vmatpush1.bf16.msra.mxu0 %v1759
    %2402 = vmatprep.subr.bf16.mxu0 0
    %2403 = vmatpush1.bf16.msra.mxu0 %v1762
    %2404 = vmatprep.subr.bf16.mxu0 0
    %2405 = vmatpush1.bf16.msra.mxu0 %v1765
    %2406 = vmatprep.subr.bf16.mxu0 0
    %2407 = vmatpush1.bf16.msra.mxu0 0
    %2408 = vmatprep.subr.bf16.mxu0 0
    %2409 = vmatpush1.bf16.msra.mxu0 0
    %2410 = vmatprep.subr.bf16.mxu0 0
    %2411 = vmatpush1.bf16.msra.mxu0 0
    %2412 = vmatprep.subr.bf16.mxu0 0
    %2413 = vmatpush1.bf16.msra.mxu0 0
    %2414 = vmatprep.subr.bf16.mxu0 0
    %2415 = vmatpush1.bf16.msra.mxu0 0
    %2416 = vmatprep.subr.bf16.mxu0 0
    %2417 = vmatpush1.bf16.msra.mxu0 0
    %2418 = vmatprep.subr.bf16.mxu0 0
    %2419 = vmatpush1.bf16.msra.mxu0 0
    %2420 = vmatprep.subr.bf16.mxu0 0
    %2421 = vmatpush1.bf16.msra.mxu0 0
    %2422 = vmatprep.mubr.bf16.mxu0 0
    %2423 = vmatmul.mubr.bf16.gmra.mrb[0].mxu0 %v2348
    %v2424 = vpop.f32.mrb[0].mxu0
    %v2425 = vadd.f32 %v1602, %v2424
    %v2426 = vpop.f32.mrb[0].mxu0
    %v2427 = vpop.f32.mrb[0].mxu0
    %v2428 = vpop.f32.mrb[0].mxu0
    %2429 = vdwg.mxu0
    %v2430 = vadd.f32 %v2345, %v2384
    %v2431 = vxor.u32 %v2430, 2147483648
    %v2432 = vmul.f32 %v2431, 1.442695
    %v2433 = vpow.pop %v2432
    %v2434 = vadd.f32 %v2433, 1.0
    %v2435 = vrcp.pop %v2434
    %v2436 = vmul.f32 1.0, %v2435
    %v2437 = vadd.f32 %v2346, %v2386
    %v2438 = vxor.u32 %v2437, 2147483648
    %v2439 = vmul.f32 %v2438, 1.442695
    %v2440 = vpow.pop %v2439
    %v2441 = vadd.f32 %v2440, 1.0
    %v2442 = vrcp.pop %v2441
    %v2443 = vmul.f32 1.0, %v2442
    %v2444 = vmul.f32 %v2436, %v2425
    %v2445 = vadd.f32 %v2347, %v2444
    %v2446 = vtanh.pop %v2445
    %v2447 = vsub.f32 1.0, %v2443
    %v2448 = vmul.f32 %v2447, %v2446
    %v2449 = vmul.f32 %v2443, %v1891
    %v2450 = vadd.f32 %v2448, %v2449
    %2451 = vadd.xlane.f32.xlu0 %v2450
    %v2452 = vpop.xlane.xlu0 %2451
    %v2453 = vmul.f32 %v2452, %v1894
    %v2454 = vsub.f32 %v2450, %v2453
    %v2455 = vmul.f32 %v2454, %v2454
    %2456 = vadd.xlane.f32.xlu0 %v2455
    %v2457 = vpop.xlane.xlu0 %2456
    %v2458 = vmul.f32 %v2457, %v1894
    %v2459 = vadd.f32 %v2458, 1e-05
    %v2460 = vrsqrt.pop %v2459
    %v2461 = vmul.f32 %v2454, %v2460
    %v2462 = vmul.f32 %v2461, %v1633
    %v2463 = vadd.f32 %v2462, %v1641
    %v2464 = vpack.c.bf16 %v2463, %v2463
    %v2465 = vpack.c.bf16 %v2328, %v2328
    %2466 = vmatprep.subr.bf16.mxu0 %v2101
    %2467 = vmatpush1.bf16.msra.mxu0 %v2100
    %2468 = vmatprep.subr.bf16.mxu0 %v2105
    %2469 = vmatpush1.bf16.msra.mxu0 %v2104
    %2470 = vmatprep.subr.bf16.mxu0 %v2109
    %2471 = vmatpush1.bf16.msra.mxu0 %v2108
    %2472 = vmatprep.subr.bf16.mxu0 %v2113
    %2473 = vmatpush1.bf16.msra.mxu0 %v2112
    %2474 = vmatprep.subr.bf16.mxu0 %v2117
    %2475 = vmatpush1.bf16.msra.mxu0 %v2116
    %2476 = vmatprep.subr.bf16.mxu0 %v2121
    %2477 = vmatpush1.bf16.msra.mxu0 %v2120
    %2478 = vmatprep.subr.bf16.mxu0 %v2125
    %2479 = vmatpush1.bf16.msra.mxu0 %v2124
    %2480 = vmatprep.subr.bf16.mxu0 %v2129
    %2481 = vmatpush1.bf16.msra.mxu0 %v2128
    %2482 = vmatprep.subr.bf16.mxu0 %v2133
    %2483 = vmatpush1.bf16.msra.mxu0 %v2132
    %2484 = vmatprep.subr.bf16.mxu0 %v2137
    %2485 = vmatpush1.bf16.msra.mxu0 %v2136
    %2486 = vmatprep.subr.bf16.mxu0 %v2141
    %2487 = vmatpush1.bf16.msra.mxu0 %v2140
    %2488 = vmatprep.subr.bf16.mxu0 %v2145
    %2489 = vmatpush1.bf16.msra.mxu0 %v2144
    %2490 = vmatprep.subr.bf16.mxu0 %v2149
    %2491 = vmatpush1.bf16.msra.mxu0 %v2148
    %2492 = vmatprep.subr.bf16.mxu0 %v2153
    %2493 = vmatpush1.bf16.msra.mxu0 %v2152
    %2494 = vmatprep.subr.bf16.mxu0 %v2157
    %2495 = vmatpush1.bf16.msra.mxu0 %v2156
    %2496 = vmatprep.subr.bf16.mxu0 %v2161
    %2497 = vmatpush1.bf16.msra.mxu0 %v2160
    %2498 = vmatprep.mubr.bf16.mxu0 %v2465
    %2499 = vmatmul.mubr.bf16.gmra.mrb[0].mxu0 %v2464
    %v2500 = vpop.f32.mrb[0].mxu0
    %v2501 = vadd.f32 %v1611, %v2500
    %v2502 = vpop.f32.mrb[0].mxu0
    %v2503 = vadd.f32 %v1615, %v2502
    %v2504 = vpop.f32.mrb[0].mxu0
    %v2505 = vpop.f32.mrb[0].mxu0
    %2506 = vdwg.mxu0
    %2507 = vmatprep.subr.bf16.mxu0 %v2103
    %2508 = vmatpush1.bf16.msra.mxu0 %v2102
    %2509 = vmatprep.subr.bf16.mxu0 %v2107
    %2510 = vmatpush1.bf16.msra.mxu0 %v2106
    %2511 = vmatprep.subr.bf16.mxu0 %v2111
    %2512 = vmatpush1.bf16.msra.mxu0 %v2110
    %2513 = vmatprep.subr.bf16.mxu0 %v2115
    %2514 = vmatpush1.bf16.msra.mxu0 %v2114
    %2515 = vmatprep.subr.bf16.mxu0 %v2119
    %2516 = vmatpush1.bf16.msra.mxu0 %v2118
    %2517 = vmatprep.subr.bf16.mxu0 %v2123
    %2518 = vmatpush1.bf16.msra.mxu0 %v2122
    %2519 = vmatprep.subr.bf16.mxu0 %v2127
    %2520 = vmatpush1.bf16.msra.mxu0 %v2126
    %2521 = vmatprep.subr.bf16.mxu0 %v2131
    %2522 = vmatpush1.bf16.msra.mxu0 %v2130
    %2523 = vmatprep.subr.bf16.mxu0 %v2135
    %2524 = vmatpush1.bf16.msra.mxu0 %v2134
    %2525 = vmatprep.subr.bf16.mxu0 %v2139
    %2526 = vmatpush1.bf16.msra.mxu0 %v2138
    %2527 = vmatprep.subr.bf16.mxu0 %v2143
    %2528 = vmatpush1.bf16.msra.mxu0 %v2142
    %2529 = vmatprep.subr.bf16.mxu0 %v2147
    %2530 = vmatpush1.bf16.msra.mxu0 %v2146
    %2531 = vmatprep.subr.bf16.mxu0 %v2151
    %2532 = vmatpush1.bf16.msra.mxu0 %v2150
    %2533 = vmatprep.subr.bf16.mxu0 %v2155
    %2534 = vmatpush1.bf16.msra.mxu0 %v2154
    %2535 = vmatprep.subr.bf16.mxu0 %v2159
    %2536 = vmatpush1.bf16.msra.mxu0 %v2158
    %2537 = vmatprep.subr.bf16.mxu0 %v2163
    %2538 = vmatpush1.bf16.msra.mxu0 %v2162
    %2539 = vmatprep.mubr.bf16.mxu0 %v2465
    %2540 = vmatmul.mubr.bf16.gmra.mrb[0].mxu0 %v2464
    %v2541 = vpop.f32.mrb[0].mxu0
    %v2542 = vadd.f32 %v1619, %v2541
    %v2543 = vpop.f32.mrb[0].mxu0
    %v2544 = vadd.f32 %v1623, %v2543
    %v2545 = vpop.f32.mrb[0].mxu0
    %v2546 = vpop.f32.mrb[0].mxu0
    %2547 = vdwg.mxu0
    %v2548 = vxor.u32 %v2501, 2147483648
    %v2549 = vmul.f32 %v2548, 1.442695
    %v2550 = vpow.pop %v2549
    %v2551 = vadd.f32 %v2550, 1.0
    %v2552 = vrcp.pop %v2551
    %v2553 = vmul.f32 1.0, %v2552
    %v2554 = vxor.u32 %v2503, 2147483648
    %v2555 = vmul.f32 %v2554, 1.442695
    %v2556 = vpow.pop %v2555
    %v2557 = vadd.f32 %v2556, 1.0
    %v2558 = vrcp.pop %v2557
    %v2559 = vmul.f32 1.0, %v2558
    %v2560 = vmul.f32 %v2553, %v2544
    %v2561 = vadd.f32 %v2542, %v2560
    %v2562 = vtanh.pop %v2561
    %v2563 = vsub.f32 1.0, %v2559
    %v2564 = vmul.f32 %v2563, %v2562
    %v2565 = vmul.f32 %v2559, %v2328
    %v2566 = vadd.f32 %v2564, %v2565
    %v2567 = vld [vmem:[#allocation4 + $0x8] sm:$0xff]
    %2568 = vadd.xlane.f32.xlu0 %v2566
    %v2569 = vpop.xlane.xlu0 %2568
    %v2570 = vmul.f32 %v2569, %v1894
    %v2571 = vsub.f32 %v2566, %v2570
    %v2572 = vmul.f32 %v2571, %v2571
    %2573 = vadd.xlane.f32.xlu0 %v2572
    %v2574 = vpop.xlane.xlu0 %2573
    %v2575 = vmul.f32 %v2574, %v1894
    %v2576 = vadd.f32 %v2575, 1e-05
    %v2577 = vrsqrt.pop %v2576
    %v2578 = vmul.f32 %v2571, %v2577
    %v2579 = vmul.f32 %v2578, %v1649
    %v2580 = vadd.f32 %v2579, %v1657
    %v2581 = vadd.f32 %v2567, %v2580
    %2582 = vst [vmem:[#allocation4 + $0x8] sm:$0xff] %v2581
    %v2583 = vld [vmem:[#allocation3 + $0x30] sm:$0xff]
    %v2584 = vld [vmem:[#allocation3 + $0x38] sm:$0xff]
    %v2585 = vld [vmem:[#allocation3 + $0x40] sm:$0xff]
    %v2586 = vpack.c.bf16 %v2450, %v2450
    %2587 = vmatprep.subr.bf16.mxu0 %v1743
    %2588 = vmatpush1.bf16.msra.mxu0 %v1742
    %2589 = vmatprep.subr.bf16.mxu0 %v1746
    %2590 = vmatpush1.bf16.msra.mxu0 %v1745
    %2591 = vmatprep.subr.bf16.mxu0 %v1749
    %2592 = vmatpush1.bf16.msra.mxu0 %v1748
    %2593 = vmatprep.subr.bf16.mxu0 %v1752
    %2594 = vmatpush1.bf16.msra.mxu0 %v1751
    %2595 = vmatprep.subr.bf16.mxu0 %v1755
    %2596 = vmatpush1.bf16.msra.mxu0 %v1754
    %2597 = vmatprep.subr.bf16.mxu0 %v1758
    %2598 = vmatpush1.bf16.msra.mxu0 %v1757
    %2599 = vmatprep.subr.bf16.mxu0 %v1761
    %2600 = vmatpush1.bf16.msra.mxu0 %v1760
    %2601 = vmatprep.subr.bf16.mxu0 %v1764
    %2602 = vmatpush1.bf16.msra.mxu0 %v1763
    %2603 = vmatprep.subr.bf16.mxu0 0
    %2604 = vmatpush1.bf16.msra.mxu0 0
    %2605 = vmatprep.subr.bf16.mxu0 0
    %2606 = vmatpush1.bf16.msra.mxu0 0
    %2607 = vmatprep.subr.bf16.mxu0 0
    %2608 = vmatpush1.bf16.msra.mxu0 0
    %2609 = vmatprep.subr.bf16.mxu0 0
    %2610 = vmatpush1.bf16.msra.mxu0 0
    %2611 = vmatprep.subr.bf16.mxu0 0
    %2612 = vmatpush1.bf16.msra.mxu0 0
    %2613 = vmatprep.subr.bf16.mxu0 0
    %2614 = vmatpush1.bf16.msra.mxu0 0
    %2615 = vmatprep.subr.bf16.mxu0 0
    %2616 = vmatpush1.bf16.msra.mxu0 0
    %2617 = vmatprep.subr.bf16.mxu0 0
    %2618 = vmatpush1.bf16.msra.mxu0 0
    %2619 = vmatprep.mubr.bf16.mxu0 0
    %2620 = vmatmul.mubr.bf16.gmra.mrb[0].mxu0 %v2586
    %v2621 = vpop.f32.mrb[0].mxu0
    %v2622 = vadd.f32 %v1594, %v2621
    %v2623 = vpop.f32.mrb[0].mxu0
    %v2624 = vadd.f32 %v1598, %v2623
    %v2625 = vpop.f32.mrb[0].mxu0
    %v2626 = vpop.f32.mrb[0].mxu0
    %2627 = vdwg.mxu0
    %2628 = vmatprep.subr.bf16.mxu0 0
    %2629 = vmatpush1.bf16.msra.mxu0 %v1744
    %2630 = vmatprep.subr.bf16.mxu0 0
    %2631 = vmatpush1.bf16.msra.mxu0 %v1747
    %2632 = vmatprep.subr.bf16.mxu0 0
    %2633 = vmatpush1.bf16.msra.mxu0 %v1750
    %2634 = vmatprep.subr.bf16.mxu0 0
    %2635 = vmatpush1.bf16.msra.mxu0 %v1753
    %2636 = vmatprep.subr.bf16.mxu0 0
    %2637 = vmatpush1.bf16.msra.mxu0 %v1756
    %2638 = vmatprep.subr.bf16.mxu0 0
    %2639 = vmatpush1.bf16.msra.mxu0 %v1759
    %2640 = vmatprep.subr.bf16.mxu0 0
    %2641 = vmatpush1.bf16.msra.mxu0 %v1762
    %2642 = vmatprep.subr.bf16.mxu0 0
    %2643 = vmatpush1.bf16.msra.mxu0 %v1765
    %2644 = vmatprep.subr.bf16.mxu0 0
    %2645 = vmatpush1.bf16.msra.mxu0 0
    %2646 = vmatprep.subr.bf16.mxu0 0
    %2647 = vmatpush1.bf16.msra.mxu0 0
    %2648 = vmatprep.subr.bf16.mxu0 0
    %2649 = vmatpush1.bf16.msra.mxu0 0
    %2650 = vmatprep.subr.bf16.mxu0 0
    %2651 = vmatpush1.bf16.msra.mxu0 0
    %2652 = vmatprep.subr.bf16.mxu0 0
    %2653 = vmatpush1.bf16.msra.mxu0 0
    %2654 = vmatprep.subr.bf16.mxu0 0
    %2655 = vmatpush1.bf16.msra.mxu0 0
    %2656 = vmatprep.subr.bf16.mxu0 0
    %2657 = vmatpush1.bf16.msra.mxu0 0
    %2658 = vmatprep.subr.bf16.mxu0 0
    %2659 = vmatpush1.bf16.msra.mxu0 0
    %2660 = vmatprep.mubr.bf16.mxu0 0
    %2661 = vmatmul.mubr.bf16.gmra.mrb[0].mxu0 %v2586
    %v2662 = vpop.f32.mrb[0].mxu0
    %v2663 = vadd.f32 %v1602, %v2662
    %v2664 = vpop.f32.mrb[0].mxu0
    %v2665 = vpop.f32.mrb[0].mxu0
    %v2666 = vpop.f32.mrb[0].mxu0
    %2667 = vdwg.mxu0
    %v2668 = vadd.f32 %v2583, %v2622
    %v2669 = vxor.u32 %v2668, 2147483648
    %v2670 = vmul.f32 %v2669, 1.442695
    %v2671 = vpow.pop %v2670
    %v2672 = vadd.f32 %v2671, 1.0
    %v2673 = vrcp.pop %v2672
    %v2674 = vmul.f32 1.0, %v2673
    %v2675 = vadd.f32 %v2584, %v2624
    %v2676 = vxor.u32 %v2675, 2147483648
    %v2677 = vmul.f32 %v2676, 1.442695
    %v2678 = vpow.pop %v2677
    %v2679 = vadd.f32 %v2678, 1.0
    %v2680 = vrcp.pop %v2679
    %v2681 = vmul.f32 1.0, %v2680
    %v2682 = vmul.f32 %v2674, %v2663
    %v2683 = vadd.f32 %v2585, %v2682
    %v2684 = vtanh.pop %v2683
    %v2685 = vsub.f32 1.0, %v2681
    %v2686 = vmul.f32 %v2685, %v2684
    %v2687 = vmul.f32 %v2681, %v2450
    %v2688 = vadd.f32 %v2686, %v2687
    %2689 = vadd.xlane.f32.xlu0 %v2688
    %v2690 = vpop.xlane.xlu0 %2689
    %v2691 = vmul.f32 %v2690, %v1894
    %v2692 = vsub.f32 %v2688, %v2691
    %v2693 = vmul.f32 %v2692, %v2692
    %2694 = vadd.xlane.f32.xlu0 %v2693
    %v2695 = vpop.xlane.xlu0 %2694
    %v2696 = vmul.f32 %v2695, %v1894
    %v2697 = vadd.f32 %v2696, 1e-05
    %v2698 = vrsqrt.pop %v2697
    %v2699 = vmul.f32 %v2692, %v2698
    %v2700 = vmul.f32 %v2699, %v1633
    %v2701 = vadd.f32 %v2700, %v1641
    %v2702 = vpack.c.bf16 %v2701, %v2701
    %v2703 = vpack.c.bf16 %v2566, %v2566
    %2704 = vmatprep.subr.bf16.mxu0 %v2101
    %2705 = vmatpush1.bf16.msra.mxu0 %v2100
    %2706 = vmatprep.subr.bf16.mxu0 %v2105
    %2707 = vmatpush1.bf16.msra.mxu0 %v2104
    %2708 = vmatprep.subr.bf16.mxu0 %v2109
    %2709 = vmatpush1.bf16.msra.mxu0 %v2108
    %2710 = vmatprep.subr.bf16.mxu0 %v2113
    %2711 = vmatpush1.bf16.msra.mxu0 %v2112
    %2712 = vmatprep.subr.bf16.mxu0 %v2117
    %2713 = vmatpush1.bf16.msra.mxu0 %v2116
    %2714 = vmatprep.subr.bf16.mxu0 %v2121
    %2715 = vmatpush1.bf16.msra.mxu0 %v2120
    %2716 = vmatprep.subr.bf16.mxu0 %v2125
    %2717 = vmatpush1.bf16.msra.mxu0 %v2124
    %2718 = vmatprep.subr.bf16.mxu0 %v2129
    %2719 = vmatpush1.bf16.msra.mxu0 %v2128
    %2720 = vmatprep.subr.bf16.mxu0 %v2133
    %2721 = vmatpush1.bf16.msra.mxu0 %v2132
    %2722 = vmatprep.subr.bf16.mxu0 %v2137
    %2723 = vmatpush1.bf16.msra.mxu0 %v2136
    %2724 = vmatprep.subr.bf16.mxu0 %v2141
    %2725 = vmatpush1.bf16.msra.mxu0 %v2140
    %2726 = vmatprep.subr.bf16.mxu0 %v2145
    %2727 = vmatpush1.bf16.msra.mxu0 %v2144
    %2728 = vmatprep.subr.bf16.mxu0 %v2149
    %2729 = vmatpush1.bf16.msra.mxu0 %v2148
    %2730 = vmatprep.subr.bf16.mxu0 %v2153
    %2731 = vmatpush1.bf16.msra.mxu0 %v2152
    %2732 = vmatprep.subr.bf16.mxu0 %v2157
    %2733 = vmatpush1.bf16.msra.mxu0 %v2156
    %2734 = vmatprep.subr.bf16.mxu0 %v2161
    %2735 = vmatpush1.bf16.msra.mxu0 %v2160
    %2736 = vmatprep.mubr.bf16.mxu0 %v2703
    %2737 = vmatmul.mubr.bf16.gmra.mrb[0].mxu0 %v2702
    %v2738 = vpop.f32.mrb[0].mxu0
    %v2739 = vadd.f32 %v1611, %v2738
    %v2740 = vpop.f32.mrb[0].mxu0
    %v2741 = vadd.f32 %v1615, %v2740
    %v2742 = vpop.f32.mrb[0].mxu0
    %v2743 = vpop.f32.mrb[0].mxu0
    %2744 = vdwg.mxu0
    %2745 = vmatprep.subr.bf16.mxu0 %v2103
    %2746 = vmatpush1.bf16.msra.mxu0 %v2102
    %2747 = vmatprep.subr.bf16.mxu0 %v2107
    %2748 = vmatpush1.bf16.msra.mxu0 %v2106
    %2749 = vmatprep.subr.bf16.mxu0 %v2111
    %2750 = vmatpush1.bf16.msra.mxu0 %v2110
    %2751 = vmatprep.subr.bf16.mxu0 %v2115
    %2752 = vmatpush1.bf16.msra.mxu0 %v2114
    %2753 = vmatprep.subr.bf16.mxu0 %v2119
    %2754 = vmatpush1.bf16.msra.mxu0 %v2118
    %2755 = vmatprep.subr.bf16.mxu0 %v2123
    %2756 = vmatpush1.bf16.msra.mxu0 %v2122
    %2757 = vmatprep.subr.bf16.mxu0 %v2127
    %2758 = vmatpush1.bf16.msra.mxu0 %v2126
    %2759 = vmatprep.subr.bf16.mxu0 %v2131
    %2760 = vmatpush1.bf16.msra.mxu0 %v2130
    %2761 = vmatprep.subr.bf16.mxu0 %v2135
    %2762 = vmatpush1.bf16.msra.mxu0 %v2134
    %2763 = vmatprep.subr.bf16.mxu0 %v2139
    %2764 = vmatpush1.bf16.msra.mxu0 %v2138
    %2765 = vmatprep.subr.bf16.mxu0 %v2143
    %2766 = vmatpush1.bf16.msra.mxu0 %v2142
    %2767 = vmatprep.subr.bf16.mxu0 %v2147
    %2768 = vmatpush1.bf16.msra.mxu0 %v2146
    %2769 = vmatprep.subr.bf16.mxu0 %v2151
    %2770 = vmatpush1.bf16.msra.mxu0 %v2150
    %2771 = vmatprep.subr.bf16.mxu0 %v2155
    %2772 = vmatpush1.bf16.msra.mxu0 %v2154
    %2773 = vmatprep.subr.bf16.mxu0 %v2159
    %2774 = vmatpush1.bf16.msra.mxu0 %v2158
    %2775 = vmatprep.subr.bf16.mxu0 %v2163
    %2776 = vmatpush1.bf16.msra.mxu0 %v2162
    %2777 = vmatprep.mubr.bf16.mxu0 %v2703
    %2778 = vmatmul.mubr.bf16.gmra.mrb[0].mxu0 %v2702
    %v2779 = vpop.f32.mrb[0].mxu0
    %v2780 = vadd.f32 %v1619, %v2779
    %v2781 = vpop.f32.mrb[0].mxu0
    %v2782 = vadd.f32 %v1623, %v2781
    %v2783 = vpop.f32.mrb[0].mxu0
    %v2784 = vpop.f32.mrb[0].mxu0
    %2785 = vdwg.mxu0
    %v2786 = vxor.u32 %v2739, 2147483648
    %v2787 = vmul.f32 %v2786, 1.442695
    %v2788 = vpow.pop %v2787
    %v2789 = vadd.f32 %v2788, 1.0
    %v2790 = vrcp.pop %v2789
    %v2791 = vmul.f32 1.0, %v2790
    %v2792 = vxor.u32 %v2741, 2147483648
    %v2793 = vmul.f32 %v2792, 1.442695
    %v2794 = vpow.pop %v2793
    %v2795 = vadd.f32 %v2794, 1.0
    %v2796 = vrcp.pop %v2795
    %v2797 = vmul.f32 1.0, %v2796
    %v2798 = vmul.f32 %v2791, %v2782
    %v2799 = vadd.f32 %v2780, %v2798
    %v2800 = vtanh.pop %v2799
    %v2801 = vsub.f32 1.0, %v2797
    %v2802 = vmul.f32 %v2801, %v2800
    %v2803 = vmul.f32 %v2797, %v2566
    %v2804 = vadd.f32 %v2802, %v2803
    %v2805 = vld [vmem:[#allocation4 + $0x10] sm:$0xff]
    %2806 = vadd.xlane.f32.xlu0 %v2804
    %v2807 = vpop.xlane.xlu0 %2806
    %v2808 = vmul.f32 %v2807, %v1894
    %v2809 = vsub.f32 %v2804, %v2808
    %v2810 = vmul.f32 %v2809, %v2809
    %2811 = vadd.xlane.f32.xlu0 %v2810
    %v2812 = vpop.xlane.xlu0 %2811
    %v2813 = vmul.f32 %v2812, %v1894
    %v2814 = vadd.f32 %v2813, 1e-05
    %v2815 = vrsqrt.pop %v2814
    %v2816 = vmul.f32 %v2809, %v2815
    %v2817 = vmul.f32 %v2816, %v1649
    %v2818 = vadd.f32 %v2817, %v1657
    %v2819 = vadd.f32 %v2805, %v2818
    %2820 = vst [vmem:[#allocation4 + $0x10] sm:$0xff] %v2819
    %v2821 = vld [vmem:[#allocation3 + $0x48] sm:$0xff]
    %v2822 = vld [vmem:[#allocation3 + $0x50] sm:$0xff]
    %v2823 = vld [vmem:[#allocation3 + $0x58] sm:$0xff]
    %v2824 = vpack.c.bf16 %v2688, %v2688
    %2825 = vmatprep.subr.bf16.mxu0 %v1743
    %2826 = vmatpush1.bf16.msra.mxu0 %v1742
    %2827 = vmatprep.subr.bf16.mxu0 %v1746
    %2828 = vmatpush1.bf16.msra.mxu0 %v1745
    %2829 = vmatprep.subr.bf16.mxu0 %v1749
    %2830 = vmatpush1.bf16.msra.mxu0 %v1748
    %2831 = vmatprep.subr.bf16.mxu0 %v1752
    %2832 = vmatpush1.bf16.msra.mxu0 %v1751
    %2833 = vmatprep.subr.bf16.mxu0 %v1755
    %2834 = vmatpush1.bf16.msra.mxu0 %v1754
    %2835 = vmatprep.subr.bf16.mxu0 %v1758
    %2836 = vmatpush1.bf16.msra.mxu0 %v1757
    %2837 = vmatprep.subr.bf16.mxu0 %v1761
    %2838 = vmatpush1.bf16.msra.mxu0 %v1760
    %2839 = vmatprep.subr.bf16.mxu0 %v1764
    %2840 = vmatpush1.bf16.msra.mxu0 %v1763
    %2841 = vmatprep.subr.bf16.mxu0 0
    %2842 = vmatpush1.bf16.msra.mxu0 0
    %2843 = vmatprep.subr.bf16.mxu0 0
    %2844 = vmatpush1.bf16.msra.mxu0 0
    %2845 = vmatprep.subr.bf16.mxu0 0
    %2846 = vmatpush1.bf16.msra.mxu0 0
    %2847 = vmatprep.subr.bf16.mxu0 0
    %2848 = vmatpush1.bf16.msra.mxu0 0
    %2849 = vmatprep.subr.bf16.mxu0 0
    %2850 = vmatpush1.bf16.msra.mxu0 0
    %2851 = vmatprep.subr.bf16.mxu0 0
    %2852 = vmatpush1.bf16.msra.mxu0 0
    %2853 = vmatprep.subr.bf16.mxu0 0
    %2854 = vmatpush1.bf16.msra.mxu0 0
    %2855 = vmatprep.subr.bf16.mxu0 0
    %2856 = vmatpush1.bf16.msra.mxu0 0
    %2857 = vmatprep.mubr.bf16.mxu0 0
    %2858 = vmatmul.mubr.bf16.gmra.mrb[0].mxu0 %v2824
    %v2859 = vpop.f32.mrb[0].mxu0
    %v2860 = vadd.f32 %v1594, %v2859
    %v2861 = vpop.f32.mrb[0].mxu0
    %v2862 = vadd.f32 %v1598, %v2861
    %v2863 = vpop.f32.mrb[0].mxu0
    %v2864 = vpop.f32.mrb[0].mxu0
    %2865 = vdwg.mxu0
    %2866 = vmatprep.subr.bf16.mxu0 0
    %2867 = vmatpush1.bf16.msra.mxu0 %v1744
    %2868 = vmatprep.subr.bf16.mxu0 0
    %2869 = vmatpush1.bf16.msra.mxu0 %v1747
    %2870 = vmatprep.subr.bf16.mxu0 0
    %2871 = vmatpush1.bf16.msra.mxu0 %v1750
    %2872 = vmatprep.subr.bf16.mxu0 0
    %2873 = vmatpush1.bf16.msra.mxu0 %v1753
    %2874 = vmatprep.subr.bf16.mxu0 0
    %2875 = vmatpush1.bf16.msra.mxu0 %v1756
    %2876 = vmatprep.subr.bf16.mxu0 0
    %2877 = vmatpush1.bf16.msra.mxu0 %v1759
    %2878 = vmatprep.subr.bf16.mxu0 0
    %2879 = vmatpush1.bf16.msra.mxu0 %v1762
    %2880 = vmatprep.subr.bf16.mxu0 0
    %2881 = vmatpush1.bf16.msra.mxu0 %v1765
    %2882 = vmatprep.subr.bf16.mxu0 0
    %2883 = vmatpush1.bf16.msra.mxu0 0
    %2884 = vmatprep.subr.bf16.mxu0 0
    %2885 = vmatpush1.bf16.msra.mxu0 0
    %2886 = vmatprep.subr.bf16.mxu0 0
    %2887 = vmatpush1.bf16.msra.mxu0 0
    %2888 = vmatprep.subr.bf16.mxu0 0
    %2889 = vmatpush1.bf16.msra.mxu0 0
    %2890 = vmatprep.subr.bf16.mxu0 0
    %2891 = vmatpush1.bf16.msra.mxu0 0
    %2892 = vmatprep.subr.bf16.mxu0 0
    %2893 = vmatpush1.bf16.msra.mxu0 0
    %2894 = vmatprep.subr.bf16.mxu0 0
    %2895 = vmatpush1.bf16.msra.mxu0 0
    %2896 = vmatprep.subr.bf16.mxu0 0
    %2897 = vmatpush1.bf16.msra.mxu0 0
    %2898 = vmatprep.mubr.bf16.mxu0 0
    %2899 = vmatmul.mubr.bf16.gmra.mrb[0].mxu0 %v2824
    %v2900 = vpop.f32.mrb[0].mxu0
    %v2901 = vadd.f32 %v1602, %v2900
    %v2902 = vpop.f32.mrb[0].mxu0
    %v2903 = vpop.f32.mrb[0].mxu0
    %v2904 = vpop.f32.mrb[0].mxu0
    %2905 = vdwg.mxu0
    %v2906 = vadd.f32 %v2821, %v2860
    %v2907 = vxor.u32 %v2906, 2147483648
    %v2908 = vmul.f32 %v2907, 1.442695
    %v2909 = vpow.pop %v2908
    %v2910 = vadd.f32 %v2909, 1.0
    %v2911 = vrcp.pop %v2910
    %v2912 = vmul.f32 1.0, %v2911
    %v2913 = vadd.f32 %v2822, %v2862
    %v2914 = vxor.u32 %v2913, 2147483648
    %v2915 = vmul.f32 %v2914, 1.442695
    %v2916 = vpow.pop %v2915
    %v2917 = vadd.f32 %v2916, 1.0
    %v2918 = vrcp.pop %v2917
    %v2919 = vmul.f32 1.0, %v2918
    %v2920 = vmul.f32 %v2912, %v2901
    %v2921 = vadd.f32 %v2823, %v2920
    %v2922 = vtanh.pop %v2921
    %v2923 = vsub.f32 1.0, %v2919
    %v2924 = vmul.f32 %v2923, %v2922
    %v2925 = vmul.f32 %v2919, %v2688
    %v2926 = vadd.f32 %v2924, %v2925
    %2927 = vadd.xlane.f32.xlu0 %v2926
    %v2928 = vpop.xlane.xlu0 %2927
    %v2929 = vmul.f32 %v2928, %v1894
    %v2930 = vsub.f32 %v2926, %v2929
    %v2931 = vmul.f32 %v2930, %v2930
    %2932 = vadd.xlane.f32.xlu0 %v2931
    %v2933 = vpop.xlane.xlu0 %2932
    %v2934 = vmul.f32 %v2933, %v1894
    %v2935 = vadd.f32 %v2934, 1e-05
    %v2936 = vrsqrt.pop %v2935
    %v2937 = vmul.f32 %v2930, %v2936
    %v2938 = vmul.f32 %v2937, %v1633
    %v2939 = vadd.f32 %v2938, %v1641
    %v2940 = vpack.c.bf16 %v2939, %v2939
    %v2941 = vpack.c.bf16 %v2804, %v2804
    %2942 = vmatprep.subr.bf16.mxu0 %v2101
    %2943 = vmatpush1.bf16.msra.mxu0 %v2100
    %2944 = vmatprep.subr.bf16.mxu0 %v2105
    %2945 = vmatpush1.bf16.msra.mxu0 %v2104
    %2946 = vmatprep.subr.bf16.mxu0 %v2109
    %2947 = vmatpush1.bf16.msra.mxu0 %v2108
    %2948 = vmatprep.subr.bf16.mxu0 %v2113
    %2949 = vmatpush1.bf16.msra.mxu0 %v2112
    %2950 = vmatprep.subr.bf16.mxu0 %v2117
    %2951 = vmatpush1.bf16.msra.mxu0 %v2116
    %2952 = vmatprep.subr.bf16.mxu0 %v2121
    %2953 = vmatpush1.bf16.msra.mxu0 %v2120
    %2954 = vmatprep.subr.bf16.mxu0 %v2125
    %2955 = vmatpush1.bf16.msra.mxu0 %v2124
    %2956 = vmatprep.subr.bf16.mxu0 %v2129
    %2957 = vmatpush1.bf16.msra.mxu0 %v2128
    %2958 = vmatprep.subr.bf16.mxu0 %v2133
    %2959 = vmatpush1.bf16.msra.mxu0 %v2132
    %2960 = vmatprep.subr.bf16.mxu0 %v2137
    %2961 = vmatpush1.bf16.msra.mxu0 %v2136
    %2962 = vmatprep.subr.bf16.mxu0 %v2141
    %2963 = vmatpush1.bf16.msra.mxu0 %v2140
    %2964 = vmatprep.subr.bf16.mxu0 %v2145
    %2965 = vmatpush1.bf16.msra.mxu0 %v2144
    %2966 = vmatprep.subr.bf16.mxu0 %v2149
    %2967 = vmatpush1.bf16.msra.mxu0 %v2148
    %2968 = vmatprep.subr.bf16.mxu0 %v2153
    %2969 = vmatpush1.bf16.msra.mxu0 %v2152
    %2970 = vmatprep.subr.bf16.mxu0 %v2157
    %2971 = vmatpush1.bf16.msra.mxu0 %v2156
    %2972 = vmatprep.subr.bf16.mxu0 %v2161
    %2973 = vmatpush1.bf16.msra.mxu0 %v2160
    %2974 = vmatprep.mubr.bf16.mxu0 %v2941
    %2975 = vmatmul.mubr.bf16.gmra.mrb[0].mxu0 %v2940
    %v2976 = vpop.f32.mrb[0].mxu0
    %v2977 = vadd.f32 %v1611, %v2976
    %v2978 = vpop.f32.mrb[0].mxu0
    %v2979 = vadd.f32 %v1615, %v2978
    %v2980 = vpop.f32.mrb[0].mxu0
    %v2981 = vpop.f32.mrb[0].mxu0
    %2982 = vdwg.mxu0
    %2983 = vmatprep.subr.bf16.mxu0 %v2103
    %2984 = vmatpush1.bf16.msra.mxu0 %v2102
    %2985 = vmatprep.subr.bf16.mxu0 %v2107
    %2986 = vmatpush1.bf16.msra.mxu0 %v2106
    %2987 = vmatprep.subr.bf16.mxu0 %v2111
    %2988 = vmatpush1.bf16.msra.mxu0 %v2110
    %2989 = vmatprep.subr.bf16.mxu0 %v2115
    %2990 = vmatpush1.bf16.msra.mxu0 %v2114
    %2991 = vmatprep.subr.bf16.mxu0 %v2119
    %2992 = vmatpush1.bf16.msra.mxu0 %v2118
    %2993 = vmatprep.subr.bf16.mxu0 %v2123
    %2994 = vmatpush1.bf16.msra.mxu0 %v2122
    %2995 = vmatprep.subr.bf16.mxu0 %v2127
    %2996 = vmatpush1.bf16.msra.mxu0 %v2126
    %2997 = vmatprep.subr.bf16.mxu0 %v2131
    %2998 = vmatpush1.bf16.msra.mxu0 %v2130
    %2999 = vmatprep.subr.bf16.mxu0 %v2135
    %3000 = vmatpush1.bf16.msra.mxu0 %v2134
    %3001 = vmatprep.subr.bf16.mxu0 %v2139
    %3002 = vmatpush1.bf16.msra.mxu0 %v2138
    %3003 = vmatprep.subr.bf16.mxu0 %v2143
    %3004 = vmatpush1.bf16.msra.mxu0 %v2142
    %3005 = vmatprep.subr.bf16.mxu0 %v2147
    %3006 = vmatpush1.bf16.msra.mxu0 %v2146
    %3007 = vmatprep.subr.bf16.mxu0 %v2151
    %3008 = vmatpush1.bf16.msra.mxu0 %v2150
    %3009 = vmatprep.subr.bf16.mxu0 %v2155
    %3010 = vmatpush1.bf16.msra.mxu0 %v2154
    %3011 = vmatprep.subr.bf16.mxu0 %v2159
    %3012 = vmatpush1.bf16.msra.mxu0 %v2158
    %3013 = vmatprep.subr.bf16.mxu0 %v2163
    %3014 = vmatpush1.bf16.msra.mxu0 %v2162
    %3015 = vmatprep.mubr.bf16.mxu0 %v2941
    %3016 = vmatmul.mubr.bf16.gmra.mrb[0].mxu0 %v2940
    %v3017 = vpop.f32.mrb[0].mxu0
    %v3018 = vadd.f32 %v1619, %v3017
    %v3019 = vpop.f32.mrb[0].mxu0
    %v3020 = vadd.f32 %v1623, %v3019
    %v3021 = vpop.f32.mrb[0].mxu0
    %v3022 = vpop.f32.mrb[0].mxu0
    %3023 = vdwg.mxu0
    %v3024 = vxor.u32 %v2977, 2147483648
    %v3025 = vmul.f32 %v3024, 1.442695
    %v3026 = vpow.pop %v3025
    %v3027 = vadd.f32 %v3026, 1.0
    %v3028 = vrcp.pop %v3027
    %v3029 = vmul.f32 1.0, %v3028
    %v3030 = vxor.u32 %v2979, 2147483648
    %v3031 = vmul.f32 %v3030, 1.442695
    %v3032 = vpow.pop %v3031
    %v3033 = vadd.f32 %v3032, 1.0
    %v3034 = vrcp.pop %v3033
    %v3035 = vmul.f32 1.0, %v3034
    %v3036 = vmul.f32 %v3029, %v3020
    %v3037 = vadd.f32 %v3018, %v3036
    %v3038 = vtanh.pop %v3037
    %v3039 = vsub.f32 1.0, %v3035
    %v3040 = vmul.f32 %v3039, %v3038
    %v3041 = vmul.f32 %v3035, %v2804
    %v3042 = vadd.f32 %v3040, %v3041
    %v3043 = vld [vmem:[#allocation4 + $0x18] sm:$0xff]
    %3044 = vadd.xlane.f32.xlu0 %v3042
    %v3045 = vpop.xlane.xlu0 %3044
    %v3046 = vmul.f32 %v3045, %v1894
    %v3047 = vsub.f32 %v3042, %v3046
    %v3048 = vmul.f32 %v3047, %v3047
    %3049 = vadd.xlane.f32.xlu0 %v3048
    %v3050 = vpop.xlane.xlu0 %3049
    %v3051 = vmul.f32 %v3050, %v1894
    %v3052 = vadd.f32 %v3051, 1e-05
    %v3053 = vrsqrt.pop %v3052
    %v3054 = vmul.f32 %v3047, %v3053
    %v3055 = vmul.f32 %v3054, %v1649
    %v3056 = vadd.f32 %v3055, %v1657
    %v3057 = vadd.f32 %v3043, %v3056
    %3058 = vst [vmem:[#allocation4 + $0x18] sm:$0xff] %v3057
    %v3059 = vld [vmem:[#allocation3 + $0x60] sm:$0xff]
    %v3060 = vld [vmem:[#allocation3 + $0x68] sm:$0xff]
    %v3061 = vld [vmem:[#allocation3 + $0x70] sm:$0xff]
    %v3062 = vpack.c.bf16 %v2926, %v2926
    %3063 = vmatprep.subr.bf16.mxu0 %v1743
    %3064 = vmatpush1.bf16.msra.mxu0 %v1742
    %3065 = vmatprep.subr.bf16.mxu0 %v1746
    %3066 = vmatpush1.bf16.msra.mxu0 %v1745
    %3067 = vmatprep.subr.bf16.mxu0 %v1749
    %3068 = vmatpush1.bf16.msra.mxu0 %v1748
    %3069 = vmatprep.subr.bf16.mxu0 %v1752
    %3070 = vmatpush1.bf16.msra.mxu0 %v1751
    %3071 = vmatprep.subr.bf16.mxu0 %v1755
    %3072 = vmatpush1.bf16.msra.mxu0 %v1754
    %3073 = vmatprep.subr.bf16.mxu0 %v1758
    %3074 = vmatpush1.bf16.msra.mxu0 %v1757
    %3075 = vmatprep.subr.bf16.mxu0 %v1761
    %3076 = vmatpush1.bf16.msra.mxu0 %v1760
    %3077 = vmatprep.subr.bf16.mxu0 %v1764
    %3078 = vmatpush1.bf16.msra.mxu0 %v1763
    %3079 = vmatprep.subr.bf16.mxu0 0
    %3080 = vmatpush1.bf16.msra.mxu0 0
    %3081 = vmatprep.subr.bf16.mxu0 0
    %3082 = vmatpush1.bf16.msra.mxu0 0
    %3083 = vmatprep.subr.bf16.mxu0 0
    %3084 = vmatpush1.bf16.msra.mxu0 0
    %3085 = vmatprep.subr.bf16.mxu0 0
    %3086 = vmatpush1.bf16.msra.mxu0 0
    %3087 = vmatprep.subr.bf16.mxu0 0
    %3088 = vmatpush1.bf16.msra.mxu0 0
    %3089 = vmatprep.subr.bf16.mxu0 0
    %3090 = vmatpush1.bf16.msra.mxu0 0
    %3091 = vmatprep.subr.bf16.mxu0 0
    %3092 = vmatpush1.bf16.msra.mxu0 0
    %3093 = vmatprep.subr.bf16.mxu0 0
    %3094 = vmatpush1.bf16.msra.mxu0 0
    %3095 = vmatprep.mubr.bf16.mxu0 0
    %3096 = vmatmul.mubr.bf16.gmra.mrb[0].mxu0 %v3062
    %v3097 = vpop.f32.mrb[0].mxu0
    %v3098 = vadd.f32 %v1594, %v3097
    %v3099 = vpop.f32.mrb[0].mxu0
    %v3100 = vadd.f32 %v1598, %v3099
    %v3101 = vpop.f32.mrb[0].mxu0
    %v3102 = vpop.f32.mrb[0].mxu0
    %3103 = vdwg.mxu0
    %3104 = vmatprep.subr.bf16.mxu0 0
    %3105 = vmatpush1.bf16.msra.mxu0 %v1744
    %3106 = vmatprep.subr.bf16.mxu0 0
    %3107 = vmatpush1.bf16.msra.mxu0 %v1747
    %3108 = vmatprep.subr.bf16.mxu0 0
    %3109 = vmatpush1.bf16.msra.mxu0 %v1750
    %3110 = vmatprep.subr.bf16.mxu0 0
    %3111 = vmatpush1.bf16.msra.mxu0 %v1753
    %3112 = vmatprep.subr.bf16.mxu0 0
    %3113 = vmatpush1.bf16.msra.mxu0 %v1756
    %3114 = vmatprep.subr.bf16.mxu0 0
    %3115 = vmatpush1.bf16.msra.mxu0 %v1759
    %3116 = vmatprep.subr.bf16.mxu0 0
    %3117 = vmatpush1.bf16.msra.mxu0 %v1762
    %3118 = vmatprep.subr.bf16.mxu0 0
    %3119 = vmatpush1.bf16.msra.mxu0 %v1765
    %3120 = vmatprep.subr.bf16.mxu0 0
    %3121 = vmatpush1.bf16.msra.mxu0 0
    %3122 = vmatprep.subr.bf16.mxu0 0
    %3123 = vmatpush1.bf16.msra.mxu0 0
    %3124 = vmatprep.subr.bf16.mxu0 0
    %3125 = vmatpush1.bf16.msra.mxu0 0
    %3126 = vmatprep.subr.bf16.mxu0 0
    %3127 = vmatpush1.bf16.msra.mxu0 0
    %3128 = vmatprep.subr.bf16.mxu0 0
    %3129 = vmatpush1.bf16.msra.mxu0 0
    %3130 = vmatprep.subr.bf16.mxu0 0
    %3131 = vmatpush1.bf16.msra.mxu0 0
    %3132 = vmatprep.subr.bf16.mxu0 0
    %3133 = vmatpush1.bf16.msra.mxu0 0
    %3134 = vmatprep.subr.bf16.mxu0 0
    %3135 = vmatpush1.bf16.msra.mxu0 0
    %3136 = vmatprep.mubr.bf16.mxu0 0
    %3137 = vmatmul.mubr.bf16.gmra.mrb[0].mxu0 %v3062
    %v3138 = vpop.f32.mrb[0].mxu0
    %v3139 = vadd.f32 %v1602, %v3138
    %v3140 = vpop.f32.mrb[0].mxu0
    %v3141 = vpop.f32.mrb[0].mxu0
    %v3142 = vpop.f32.mrb[0].mxu0
    %3143 = vdwg.mxu0
    %v3144 = vadd.f32 %v3059, %v3098
    %v3145 = vxor.u32 %v3144, 2147483648
    %v3146 = vmul.f32 %v3145, 1.442695
    %v3147 = vpow.pop %v3146
    %v3148 = vadd.f32 %v3147, 1.0
    %v3149 = vrcp.pop %v3148
    %v3150 = vmul.f32 1.0, %v3149
    %v3151 = vadd.f32 %v3060, %v3100
    %v3152 = vxor.u32 %v3151, 2147483648
    %v3153 = vmul.f32 %v3152, 1.442695
    %v3154 = vpow.pop %v3153
    %v3155 = vadd.f32 %v3154, 1.0
    %v3156 = vrcp.pop %v3155
    %v3157 = vmul.f32 1.0, %v3156
    %v3158 = vmul.f32 %v3150, %v3139
    %v3159 = vadd.f32 %v3061, %v3158
    %v3160 = vtanh.pop %v3159
    %v3161 = vsub.f32 1.0, %v3157
    %v3162 = vmul.f32 %v3161, %v3160
    %v3163 = vmul.f32 %v3157, %v2926
    %v3164 = vadd.f32 %v3162, %v3163
    %3165 = vadd.xlane.f32.xlu0 %v3164
    %v3166 = vpop.xlane.xlu0 %3165
    %v3167 = vmul.f32 %v3166, %v1894
    %v3168 = vsub.f32 %v3164, %v3167
    %v3169 = vmul.f32 %v3168, %v3168
    %3170 = vadd.xlane.f32.xlu0 %v3169
    %v3171 = vpop.xlane.xlu0 %3170
    %v3172 = vmul.f32 %v3171, %v1894
    %v3173 = vadd.f32 %v3172, 1e-05
    %v3174 = vrsqrt.pop %v3173
    %v3175 = vmul.f32 %v3168, %v3174
    %v3176 = vmul.f32 %v3175, %v1633
    %v3177 = vadd.f32 %v3176, %v1641
    %v3178 = vpack.c.bf16 %v3177, %v3177
    %v3179 = vpack.c.bf16 %v3042, %v3042
    %3180 = vmatprep.subr.bf16.mxu0 %v2101
    %3181 = vmatpush1.bf16.msra.mxu0 %v2100
    %3182 = vmatprep.subr.bf16.mxu0 %v2105
    %3183 = vmatpush1.bf16.msra.mxu0 %v2104
    %3184 = vmatprep.subr.bf16.mxu0 %v2109
    %3185 = vmatpush1.bf16.msra.mxu0 %v2108
    %3186 = vmatprep.subr.bf16.mxu0 %v2113
    %3187 = vmatpush1.bf16.msra.mxu0 %v2112
    %3188 = vmatprep.subr.bf16.mxu0 %v2117
    %3189 = vmatpush1.bf16.msra.mxu0 %v2116
    %3190 = vmatprep.subr.bf16.mxu0 %v2121
    %3191 = vmatpush1.bf16.msra.mxu0 %v2120
    %3192 = vmatprep.subr.bf16.mxu0 %v2125
    %3193 = vmatpush1.bf16.msra.mxu0 %v2124
    %3194 = vmatprep.subr.bf16.mxu0 %v2129
    %3195 = vmatpush1.bf16.msra.mxu0 %v2128
    %3196 = vmatprep.subr.bf16.mxu0 %v2133
    %3197 = vmatpush1.bf16.msra.mxu0 %v2132
    %3198 = vmatprep.subr.bf16.mxu0 %v2137
    %3199 = vmatpush1.bf16.msra.mxu0 %v2136
    %3200 = vmatprep.subr.bf16.mxu0 %v2141
    %3201 = vmatpush1.bf16.msra.mxu0 %v2140
    %3202 = vmatprep.subr.bf16.mxu0 %v2145
    %3203 = vmatpush1.bf16.msra.mxu0 %v2144
    %3204 = vmatprep.subr.bf16.mxu0 %v2149
    %3205 = vmatpush1.bf16.msra.mxu0 %v2148
    %3206 = vmatprep.subr.bf16.mxu0 %v2153
    %3207 = vmatpush1.bf16.msra.mxu0 %v2152
    %3208 = vmatprep.subr.bf16.mxu0 %v2157
    %3209 = vmatpush1.bf16.msra.mxu0 %v2156
    %3210 = vmatprep.subr.bf16.mxu0 %v2161
    %3211 = vmatpush1.bf16.msra.mxu0 %v2160
    %3212 = vmatprep.mubr.bf16.mxu0 %v3179
    %3213 = vmatmul.mubr.bf16.gmra.mrb[0].mxu0 %v3178
    %v3214 = vpop.f32.mrb[0].mxu0
    %v3215 = vadd.f32 %v1611, %v3214
    %v3216 = vpop.f32.mrb[0].mxu0
    %v3217 = vadd.f32 %v1615, %v3216
    %v3218 = vpop.f32.mrb[0].mxu0
    %v3219 = vpop.f32.mrb[0].mxu0
    %3220 = vdwg.mxu0
    %3221 = vmatprep.subr.bf16.mxu0 %v2103
    %3222 = vmatpush1.bf16.msra.mxu0 %v2102
    %3223 = vmatprep.subr.bf16.mxu0 %v2107
    %3224 = vmatpush1.bf16.msra.mxu0 %v2106
    %3225 = vmatprep.subr.bf16.mxu0 %v2111
    %3226 = vmatpush1.bf16.msra.mxu0 %v2110
    %3227 = vmatprep.subr.bf16.mxu0 %v2115
    %3228 = vmatpush1.bf16.msra.mxu0 %v2114
    %3229 = vmatprep.subr.bf16.mxu0 %v2119
    %3230 = vmatpush1.bf16.msra.mxu0 %v2118
    %3231 = vmatprep.subr.bf16.mxu0 %v2123
    %3232 = vmatpush1.bf16.msra.mxu0 %v2122
    %3233 = vmatprep.subr.bf16.mxu0 %v2127
    %3234 = vmatpush1.bf16.msra.mxu0 %v2126
    %3235 = vmatprep.subr.bf16.mxu0 %v2131
    %3236 = vmatpush1.bf16.msra.mxu0 %v2130
    %3237 = vmatprep.subr.bf16.mxu0 %v2135
    %3238 = vmatpush1.bf16.msra.mxu0 %v2134
    %3239 = vmatprep.subr.bf16.mxu0 %v2139
    %3240 = vmatpush1.bf16.msra.mxu0 %v2138
    %3241 = vmatprep.subr.bf16.mxu0 %v2143
    %3242 = vmatpush1.bf16.msra.mxu0 %v2142
    %3243 = vmatprep.subr.bf16.mxu0 %v2147
    %3244 = vmatpush1.bf16.msra.mxu0 %v2146
    %3245 = vmatprep.subr.bf16.mxu0 %v2151
    %3246 = vmatpush1.bf16.msra.mxu0 %v2150
    %3247 = vmatprep.subr.bf16.mxu0 %v2155
    %3248 = vmatpush1.bf16.msra.mxu0 %v2154
    %3249 = vmatprep.subr.bf16.mxu0 %v2159
    %3250 = vmatpush1.bf16.msra.mxu0 %v2158
    %3251 = vmatprep.subr.bf16.mxu0 %v2163
    %3252 = vmatpush1.bf16.msra.mxu0 %v2162
    %3253 = vmatprep.mubr.bf16.mxu0 %v3179
    %3254 = vmatmul.mubr.bf16.gmra.mrb[0].mxu0 %v3178
    %v3255 = vpop.f32.mrb[0].mxu0
    %v3256 = vadd.f32 %v1619, %v3255
    %v3257 = vpop.f32.mrb[0].mxu0
    %v3258 = vadd.f32 %v1623, %v3257
    %v3259 = vpop.f32.mrb[0].mxu0
    %v3260 = vpop.f32.mrb[0].mxu0
    %3261 = vdwg.mxu0
    %v3262 = vxor.u32 %v3215, 2147483648
    %v3263 = vmul.f32 %v3262, 1.442695
    %v3264 = vpow.pop %v3263
    %v3265 = vadd.f32 %v3264, 1.0
    %v3266 = vrcp.pop %v3265
    %v3267 = vmul.f32 1.0, %v3266
    %v3268 = vxor.u32 %v3217, 2147483648
    %v3269 = vmul.f32 %v3268, 1.442695
    %v3270 = vpow.pop %v3269
    %v3271 = vadd.f32 %v3270, 1.0
    %v3272 = vrcp.pop %v3271
    %v3273 = vmul.f32 1.0, %v3272
    %v3274 = vmul.f32 %v3267, %v3258
    %v3275 = vadd.f32 %v3256, %v3274
    %v3276 = vtanh.pop %v3275
    %v3277 = vsub.f32 1.0, %v3273
    %v3278 = vmul.f32 %v3277, %v3276
    %v3279 = vmul.f32 %v3273, %v3042
    %v3280 = vadd.f32 %v3278, %v3279
    %v3281 = vld [vmem:[#allocation4 + $0x20] sm:$0xff]
    %3282 = vadd.xlane.f32.xlu0 %v3280
    %v3283 = vpop.xlane.xlu0 %3282
    %v3284 = vmul.f32 %v3283, %v1894
    %v3285 = vsub.f32 %v3280, %v3284
    %v3286 = vmul.f32 %v3285, %v3285
    %3287 = vadd.xlane.f32.xlu0 %v3286
    %v3288 = vpop.xlane.xlu0 %3287
    %v3289 = vmul.f32 %v3288, %v1894
    %v3290 = vadd.f32 %v3289, 1e-05
    %v3291 = vrsqrt.pop %v3290
    %v3292 = vmul.f32 %v3285, %v3291
    %v3293 = vmul.f32 %v3292, %v1649
    %v3294 = vadd.f32 %v3293, %v1657
    %v3295 = vadd.f32 %v3281, %v3294
    %3296 = vst [vmem:[#allocation4 + $0x20] sm:$0xff] %v3295
    %v3297 = vld [vmem:[#allocation3 + $0x78] sm:$0xff]
    %v3298 = vld [vmem:[#allocation3 + $0x80] sm:$0xff]
    %v3299 = vld [vmem:[#allocation3 + $0x88] sm:$0xff]
    %v3300 = vpack.c.bf16 %v3164, %v3164
    %3301 = vmatprep.subr.bf16.mxu0 %v1743
    %3302 = vmatpush1.bf16.msra.mxu0 %v1742
    %3303 = vmatprep.subr.bf16.mxu0 %v1746
    %3304 = vmatpush1.bf16.msra.mxu0 %v1745
    %3305 = vmatprep.subr.bf16.mxu0 %v1749
    %3306 = vmatpush1.bf16.msra.mxu0 %v1748
    %3307 = vmatprep.subr.bf16.mxu0 %v1752
    %3308 = vmatpush1.bf16.msra.mxu0 %v1751
    %3309 = vmatprep.subr.bf16.mxu0 %v1755
    %3310 = vmatpush1.bf16.msra.mxu0 %v1754
    %3311 = vmatprep.subr.bf16.mxu0 %v1758
    %3312 = vmatpush1.bf16.msra.mxu0 %v1757
    %3313 = vmatprep.subr.bf16.mxu0 %v1761
    %3314 = vmatpush1.bf16.msra.mxu0 %v1760
    %3315 = vmatprep.subr.bf16.mxu0 %v1764
    %3316 = vmatpush1.bf16.msra.mxu0 %v1763
    %3317 = vmatprep.subr.bf16.mxu0 0
    %3318 = vmatpush1.bf16.msra.mxu0 0
    %3319 = vmatprep.subr.bf16.mxu0 0
    %3320 = vmatpush1.bf16.msra.mxu0 0
    %3321 = vmatprep.subr.bf16.mxu0 0
    %3322 = vmatpush1.bf16.msra.mxu0 0
    %3323 = vmatprep.subr.bf16.mxu0 0
    %3324 = vmatpush1.bf16.msra.mxu0 0
    %3325 = vmatprep.subr.bf16.mxu0 0
    %3326 = vmatpush1.bf16.msra.mxu0 0
    %3327 = vmatprep.subr.bf16.mxu0 0
    %3328 = vmatpush1.bf16.msra.mxu0 0
    %3329 = vmatprep.subr.bf16.mxu0 0
    %3330 = vmatpush1.bf16.msra.mxu0 0
    %3331 = vmatprep.subr.bf16.mxu0 0
    %3332 = vmatpush1.bf16.msra.mxu0 0
    %3333 = vmatprep.mubr.bf16.mxu0 0
    %3334 = vmatmul.mubr.bf16.gmra.mrb[0].mxu0 %v3300
    %v3335 = vpop.f32.mrb[0].mxu0
    %v3336 = vadd.f32 %v1594, %v3335
    %v3337 = vpop.f32.mrb[0].mxu0
    %v3338 = vadd.f32 %v1598, %v3337
    %v3339 = vpop.f32.mrb[0].mxu0
    %v3340 = vpop.f32.mrb[0].mxu0
    %3341 = vdwg.mxu0
    %3342 = vmatprep.subr.bf16.mxu0 0
    %3343 = vmatpush1.bf16.msra.mxu0 %v1744
    %3344 = vmatprep.subr.bf16.mxu0 0
    %3345 = vmatpush1.bf16.msra.mxu0 %v1747
    %3346 = vmatprep.subr.bf16.mxu0 0
    %3347 = vmatpush1.bf16.msra.mxu0 %v1750
    %3348 = vmatprep.subr.bf16.mxu0 0
    %3349 = vmatpush1.bf16.msra.mxu0 %v1753
    %3350 = vmatprep.subr.bf16.mxu0 0
    %3351 = vmatpush1.bf16.msra.mxu0 %v1756
    %3352 = vmatprep.subr.bf16.mxu0 0
    %3353 = vmatpush1.bf16.msra.mxu0 %v1759
    %3354 = vmatprep.subr.bf16.mxu0 0
    %3355 = vmatpush1.bf16.msra.mxu0 %v1762
    %3356 = vmatprep.subr.bf16.mxu0 0
    %3357 = vmatpush1.bf16.msra.mxu0 %v1765
    %3358 = vmatprep.subr.bf16.mxu0 0
    %3359 = vmatpush1.bf16.msra.mxu0 0
    %3360 = vmatprep.subr.bf16.mxu0 0
    %3361 = vmatpush1.bf16.msra.mxu0 0
    %3362 = vmatprep.subr.bf16.mxu0 0
    %3363 = vmatpush1.bf16.msra.mxu0 0
    %3364 = vmatprep.subr.bf16.mxu0 0
    %3365 = vmatpush1.bf16.msra.mxu0 0
    %3366 = vmatprep.subr.bf16.mxu0 0
    %3367 = vmatpush1.bf16.msra.mxu0 0
    %3368 = vmatprep.subr.bf16.mxu0 0
    %3369 = vmatpush1.bf16.msra.mxu0 0
    %3370 = vmatprep.subr.bf16.mxu0 0
    %3371 = vmatpush1.bf16.msra.mxu0 0
    %3372 = vmatprep.subr.bf16.mxu0 0
    %3373 = vmatpush1.bf16.msra.mxu0 0
    %3374 = vmatprep.mubr.bf16.mxu0 0
    %3375 = vmatmul.mubr.bf16.gmra.mrb[0].mxu0 %v3300
    %v3376 = vpop.f32.mrb[0].mxu0
    %v3377 = vadd.f32 %v1602, %v3376
    %v3378 = vpop.f32.mrb[0].mxu0
    %v3379 = vpop.f32.mrb[0].mxu0
    %v3380 = vpop.f32.mrb[0].mxu0
    %3381 = vdwg.mxu0
    %v3382 = vadd.f32 %v3297, %v3336
    %v3383 = vxor.u32 %v3382, 2147483648
    %v3384 = vmul.f32 %v3383, 1.442695
    %v3385 = vpow.pop %v3384
    %v3386 = vadd.f32 %v3385, 1.0
    %v3387 = vrcp.pop %v3386
    %v3388 = vmul.f32 1.0, %v3387
    %v3389 = vadd.f32 %v3298, %v3338
    %v3390 = vxor.u32 %v3389, 2147483648
    %v3391 = vmul.f32 %v3390, 1.442695
    %v3392 = vpow.pop %v3391
    %v3393 = vadd.f32 %v3392, 1.0
    %v3394 = vrcp.pop %v3393
    %v3395 = vmul.f32 1.0, %v3394
    %v3396 = vmul.f32 %v3388, %v3377
    %v3397 = vadd.f32 %v3299, %v3396
    %v3398 = vtanh.pop %v3397
    %v3399 = vsub.f32 1.0, %v3395
    %v3400 = vmul.f32 %v3399, %v3398
    %v3401 = vmul.f32 %v3395, %v3164
    %v3402 = vadd.f32 %v3400, %v3401
    %3403 = vadd.xlane.f32.xlu0 %v3402
    %v3404 = vpop.xlane.xlu0 %3403
    %v3405 = vmul.f32 %v3404, %v1894
    %v3406 = vsub.f32 %v3402, %v3405
    %v3407 = vmul.f32 %v3406, %v3406
    %3408 = vadd.xlane.f32.xlu0 %v3407
    %v3409 = vpop.xlane.xlu0 %3408
    %v3410 = vmul.f32 %v3409, %v1894
    %v3411 = vadd.f32 %v3410, 1e-05
    %v3412 = vrsqrt.pop %v3411
    %v3413 = vmul.f32 %v3406, %v3412
    %v3414 = vmul.f32 %v3413, %v1633
    %v3415 = vadd.f32 %v3414, %v1641
    %v3416 = vpack.c.bf16 %v3415, %v3415
    %v3417 = vpack.c.bf16 %v3280, %v3280
    %3418 = vmatprep.subr.bf16.mxu0 %v2101
    %3419 = vmatpush1.bf16.msra.mxu0 %v2100
    %3420 = vmatprep.subr.bf16.mxu0 %v2105
    %3421 = vmatpush1.bf16.msra.mxu0 %v2104
    %3422 = vmatprep.subr.bf16.mxu0 %v2109
    %3423 = vmatpush1.bf16.msra.mxu0 %v2108
    %3424 = vmatprep.subr.bf16.mxu0 %v2113
    %3425 = vmatpush1.bf16.msra.mxu0 %v2112
    %3426 = vmatprep.subr.bf16.mxu0 %v2117
    %3427 = vmatpush1.bf16.msra.mxu0 %v2116
    %3428 = vmatprep.subr.bf16.mxu0 %v2121
    %3429 = vmatpush1.bf16.msra.mxu0 %v2120
    %3430 = vmatprep.subr.bf16.mxu0 %v2125
    %3431 = vmatpush1.bf16.msra.mxu0 %v2124
    %3432 = vmatprep.subr.bf16.mxu0 %v2129
    %3433 = vmatpush1.bf16.msra.mxu0 %v2128
    %3434 = vmatprep.subr.bf16.mxu0 %v2133
    %3435 = vmatpush1.bf16.msra.mxu0 %v2132
    %3436 = vmatprep.subr.bf16.mxu0 %v2137
    %3437 = vmatpush1.bf16.msra.mxu0 %v2136
    %3438 = vmatprep.subr.bf16.mxu0 %v2141
    %3439 = vmatpush1.bf16.msra.mxu0 %v2140
    %3440 = vmatprep.subr.bf16.mxu0 %v2145
    %3441 = vmatpush1.bf16.msra.mxu0 %v2144
    %3442 = vmatprep.subr.bf16.mxu0 %v2149
    %3443 = vmatpush1.bf16.msra.mxu0 %v2148
    %3444 = vmatprep.subr.bf16.mxu0 %v2153
    %3445 = vmatpush1.bf16.msra.mxu0 %v2152
    %3446 = vmatprep.subr.bf16.mxu0 %v2157
    %3447 = vmatpush1.bf16.msra.mxu0 %v2156
    %3448 = vmatprep.subr.bf16.mxu0 %v2161
    %3449 = vmatpush1.bf16.msra.mxu0 %v2160
    %3450 = vmatprep.mubr.bf16.mxu0 %v3417
    %3451 = vmatmul.mubr.bf16.gmra.mrb[0].mxu0 %v3416
    %v3452 = vpop.f32.mrb[0].mxu0
    %v3453 = vadd.f32 %v1611, %v3452
    %v3454 = vpop.f32.mrb[0].mxu0
    %v3455 = vadd.f32 %v1615, %v3454
    %v3456 = vpop.f32.mrb[0].mxu0
    %v3457 = vpop.f32.mrb[0].mxu0
    %3458 = vdwg.mxu0
    %3459 = vmatprep.subr.bf16.mxu0 %v2103
    %3460 = vmatpush1.bf16.msra.mxu0 %v2102
    %3461 = vmatprep.subr.bf16.mxu0 %v2107
    %3462 = vmatpush1.bf16.msra.mxu0 %v2106
    %3463 = vmatprep.subr.bf16.mxu0 %v2111
    %3464 = vmatpush1.bf16.msra.mxu0 %v2110
    %3465 = vmatprep.subr.bf16.mxu0 %v2115
    %3466 = vmatpush1.bf16.msra.mxu0 %v2114
    %3467 = vmatprep.subr.bf16.mxu0 %v2119
    %3468 = vmatpush1.bf16.msra.mxu0 %v2118
    %3469 = vmatprep.subr.bf16.mxu0 %v2123
    %3470 = vmatpush1.bf16.msra.mxu0 %v2122
    %3471 = vmatprep.subr.bf16.mxu0 %v2127
    %3472 = vmatpush1.bf16.msra.mxu0 %v2126
    %3473 = vmatprep.subr.bf16.mxu0 %v2131
    %3474 = vmatpush1.bf16.msra.mxu0 %v2130
    %3475 = vmatprep.subr.bf16.mxu0 %v2135
    %3476 = vmatpush1.bf16.msra.mxu0 %v2134
    %3477 = vmatprep.subr.bf16.mxu0 %v2139
    %3478 = vmatpush1.bf16.msra.mxu0 %v2138
    %3479 = vmatprep.subr.bf16.mxu0 %v2143
    %3480 = vmatpush1.bf16.msra.mxu0 %v2142
    %3481 = vmatprep.subr.bf16.mxu0 %v2147
    %3482 = vmatpush1.bf16.msra.mxu0 %v2146
    %3483 = vmatprep.subr.bf16.mxu0 %v2151
    %3484 = vmatpush1.bf16.msra.mxu0 %v2150
    %3485 = vmatprep.subr.bf16.mxu0 %v2155
    %3486 = vmatpush1.bf16.msra.mxu0 %v2154
    %3487 = vmatprep.subr.bf16.mxu0 %v2159
    %3488 = vmatpush1.bf16.msra.mxu0 %v2158
    %3489 = vmatprep.subr.bf16.mxu0 %v2163
    %3490 = vmatpush1.bf16.msra.mxu0 %v2162
    %3491 = vmatprep.mubr.bf16.mxu0 %v3417
    %3492 = vmatmul.mubr.bf16.gmra.mrb[0].mxu0 %v3416
    %v3493 = vpop.f32.mrb[0].mxu0
    %v3494 = vadd.f32 %v1619, %v3493
    %v3495 = vpop.f32.mrb[0].mxu0
    %v3496 = vadd.f32 %v1623, %v3495
    %v3497 = vpop.f32.mrb[0].mxu0
    %v3498 = vpop.f32.mrb[0].mxu0
    %3499 = vdwg.mxu0
    %v3500 = vxor.u32 %v3453, 2147483648
    %v3501 = vmul.f32 %v3500, 1.442695
    %v3502 = vpow.pop %v3501
    %v3503 = vadd.f32 %v3502, 1.0
    %v3504 = vrcp.pop %v3503
    %v3505 = vmul.f32 1.0, %v3504
    %v3506 = vxor.u32 %v3455, 2147483648
    %v3507 = vmul.f32 %v3506, 1.442695
    %v3508 = vpow.pop %v3507
    %v3509 = vadd.f32 %v3508, 1.0
    %v3510 = vrcp.pop %v3509
    %v3511 = vmul.f32 1.0, %v3510
    %v3512 = vmul.f32 %v3505, %v3496
    %v3513 = vadd.f32 %v3494, %v3512
    %v3514 = vtanh.pop %v3513
    %v3515 = vsub.f32 1.0, %v3511
    %v3516 = vmul.f32 %v3515, %v3514
    %v3517 = vmul.f32 %v3511, %v3280
    %v3518 = vadd.f32 %v3516, %v3517
    %v3519 = vld [vmem:[#allocation4 + $0x28] sm:$0xff]
    %3520 = vadd.xlane.f32.xlu0 %v3518
    %v3521 = vpop.xlane.xlu0 %3520
    %v3522 = vmul.f32 %v3521, %v1894
    %v3523 = vsub.f32 %v3518, %v3522
    %v3524 = vmul.f32 %v3523, %v3523
    %3525 = vadd.xlane.f32.xlu0 %v3524
    %v3526 = vpop.xlane.xlu0 %3525
    %v3527 = vmul.f32 %v3526, %v1894
    %v3528 = vadd.f32 %v3527, 1e-05
    %v3529 = vrsqrt.pop %v3528
    %v3530 = vmul.f32 %v3523, %v3529
    %v3531 = vmul.f32 %v3530, %v1649
    %v3532 = vadd.f32 %v3531, %v1657
    %v3533 = vadd.f32 %v3519, %v3532
    %3534 = vst [vmem:[#allocation4 + $0x28] sm:$0xff] %v3533
    %v3535 = vld [vmem:[#allocation3 + $0x90] sm:$0xff]
    %v3536 = vld [vmem:[#allocation3 + $0x98] sm:$0xff]
    %v3537 = vld [vmem:[#allocation3 + $0xa0] sm:$0xff]
    %v3538 = vpack.c.bf16 %v3402, %v3402
    %3539 = vmatprep.subr.bf16.mxu0 %v1743
    %3540 = vmatpush1.bf16.msra.mxu0 %v1742
    %3541 = vmatprep.subr.bf16.mxu0 %v1746
    %3542 = vmatpush1.bf16.msra.mxu0 %v1745
    %3543 = vmatprep.subr.bf16.mxu0 %v1749
    %3544 = vmatpush1.bf16.msra.mxu0 %v1748
    %3545 = vmatprep.subr.bf16.mxu0 %v1752
    %3546 = vmatpush1.bf16.msra.mxu0 %v1751
    %3547 = vmatprep.subr.bf16.mxu0 %v1755
    %3548 = vmatpush1.bf16.msra.mxu0 %v1754
    %3549 = vmatprep.subr.bf16.mxu0 %v1758
    %3550 = vmatpush1.bf16.msra.mxu0 %v1757
    %3551 = vmatprep.subr.bf16.mxu0 %v1761
    %3552 = vmatpush1.bf16.msra.mxu0 %v1760
    %3553 = vmatprep.subr.bf16.mxu0 %v1764
    %3554 = vmatpush1.bf16.msra.mxu0 %v1763
    %3555 = vmatprep.subr.bf16.mxu0 0
    %3556 = vmatpush1.bf16.msra.mxu0 0
    %3557 = vmatprep.subr.bf16.mxu0 0
    %3558 = vmatpush1.bf16.msra.mxu0 0
    %3559 = vmatprep.subr.bf16.mxu0 0
    %3560 = vmatpush1.bf16.msra.mxu0 0
    %3561 = vmatprep.subr.bf16.mxu0 0
    %3562 = vmatpush1.bf16.msra.mxu0 0
    %3563 = vmatprep.subr.bf16.mxu0 0
    %3564 = vmatpush1.bf16.msra.mxu0 0
    %3565 = vmatprep.subr.bf16.mxu0 0
    %3566 = vmatpush1.bf16.msra.mxu0 0
    %3567 = vmatprep.subr.bf16.mxu0 0
    %3568 = vmatpush1.bf16.msra.mxu0 0
    %3569 = vmatprep.subr.bf16.mxu0 0
    %3570 = vmatpush1.bf16.msra.mxu0 0
    %3571 = vmatprep.mubr.bf16.mxu0 0
    %3572 = vmatmul.mubr.bf16.gmra.mrb[0].mxu0 %v3538
    %v3573 = vpop.f32.mrb[0].mxu0
    %v3574 = vadd.f32 %v1594, %v3573
    %v3575 = vpop.f32.mrb[0].mxu0
    %v3576 = vadd.f32 %v1598, %v3575
    %v3577 = vpop.f32.mrb[0].mxu0
    %v3578 = vpop.f32.mrb[0].mxu0
    %3579 = vdwg.mxu0
    %3580 = vmatprep.subr.bf16.mxu0 0
    %3581 = vmatpush1.bf16.msra.mxu0 %v1744
    %3582 = vmatprep.subr.bf16.mxu0 0
    %3583 = vmatpush1.bf16.msra.mxu0 %v1747
    %3584 = vmatprep.subr.bf16.mxu0 0
    %3585 = vmatpush1.bf16.msra.mxu0 %v1750
    %3586 = vmatprep.subr.bf16.mxu0 0
    %3587 = vmatpush1.bf16.msra.mxu0 %v1753
    %3588 = vmatprep.subr.bf16.mxu0 0
    %3589 = vmatpush1.bf16.msra.mxu0 %v1756
    %3590 = vmatprep.subr.bf16.mxu0 0
    %3591 = vmatpush1.bf16.msra.mxu0 %v1759
    %3592 = vmatprep.subr.bf16.mxu0 0
    %3593 = vmatpush1.bf16.msra.mxu0 %v1762
    %3594 = vmatprep.subr.bf16.mxu0 0
    %3595 = vmatpush1.bf16.msra.mxu0 %v1765
    %3596 = vmatprep.subr.bf16.mxu0 0
    %3597 = vmatpush1.bf16.msra.mxu0 0
    %3598 = vmatprep.subr.bf16.mxu0 0
    %3599 = vmatpush1.bf16.msra.mxu0 0
    %3600 = vmatprep.subr.bf16.mxu0 0
    %3601 = vmatpush1.bf16.msra.mxu0 0
    %3602 = vmatprep.subr.bf16.mxu0 0
    %3603 = vmatpush1.bf16.msra.mxu0 0
    %3604 = vmatprep.subr.bf16.mxu0 0
    %3605 = vmatpush1.bf16.msra.mxu0 0
    %3606 = vmatprep.subr.bf16.mxu0 0
    %3607 = vmatpush1.bf16.msra.mxu0 0
    %3608 = vmatprep.subr.bf16.mxu0 0
    %3609 = vmatpush1.bf16.msra.mxu0 0
    %3610 = vmatprep.subr.bf16.mxu0 0
    %3611 = vmatpush1.bf16.msra.mxu0 0
    %3612 = vmatprep.mubr.bf16.mxu0 0
    %3613 = vmatmul.mubr.bf16.gmra.mrb[0].mxu0 %v3538
    %v3614 = vpop.f32.mrb[0].mxu0
    %v3615 = vadd.f32 %v1602, %v3614
    %v3616 = vpop.f32.mrb[0].mxu0
    %v3617 = vpop.f32.mrb[0].mxu0
    %v3618 = vpop.f32.mrb[0].mxu0
    %3619 = vdwg.mxu0
    %v3620 = vadd.f32 %v3535, %v3574
    %v3621 = vxor.u32 %v3620, 2147483648
    %v3622 = vmul.f32 %v3621, 1.442695
    %v3623 = vpow.pop %v3622
    %v3624 = vadd.f32 %v3623, 1.0
    %v3625 = vrcp.pop %v3624
    %v3626 = vmul.f32 1.0, %v3625
    %v3627 = vadd.f32 %v3536, %v3576
    %v3628 = vxor.u32 %v3627, 2147483648
    %v3629 = vmul.f32 %v3628, 1.442695
    %v3630 = vpow.pop %v3629
    %v3631 = vadd.f32 %v3630, 1.0
    %v3632 = vrcp.pop %v3631
    %v3633 = vmul.f32 1.0, %v3632
    %v3634 = vmul.f32 %v3626, %v3615
    %v3635 = vadd.f32 %v3537, %v3634
    %v3636 = vtanh.pop %v3635
    %v3637 = vsub.f32 1.0, %v3633
    %v3638 = vmul.f32 %v3637, %v3636
    %v3639 = vmul.f32 %v3633, %v3402
    %v3640 = vadd.f32 %v3638, %v3639
    %3641 = vadd.xlane.f32.xlu0 %v3640
    %v3642 = vpop.xlane.xlu0 %3641
    %v3643 = vmul.f32 %v3642, %v1894
    %v3644 = vsub.f32 %v3640, %v3643
    %v3645 = vmul.f32 %v3644, %v3644
    %3646 = vadd.xlane.f32.xlu0 %v3645
    %v3647 = vpop.xlane.xlu0 %3646
    %v3648 = vmul.f32 %v3647, %v1894
    %v3649 = vadd.f32 %v3648, 1e-05
    %v3650 = vrsqrt.pop %v3649
    %v3651 = vmul.f32 %v3644, %v3650
    %v3652 = vmul.f32 %v3651, %v1633
    %v3653 = vadd.f32 %v3652, %v1641
    %v3654 = vpack.c.bf16 %v3653, %v3653
    %v3655 = vpack.c.bf16 %v3518, %v3518
    %3656 = vmatprep.subr.bf16.mxu0 %v2101
    %3657 = vmatpush1.bf16.msra.mxu0 %v2100
    %3658 = vmatprep.subr.bf16.mxu0 %v2105
    %3659 = vmatpush1.bf16.msra.mxu0 %v2104
    %3660 = vmatprep.subr.bf16.mxu0 %v2109
    %3661 = vmatpush1.bf16.msra.mxu0 %v2108
    %3662 = vmatprep.subr.bf16.mxu0 %v2113
    %3663 = vmatpush1.bf16.msra.mxu0 %v2112
    %3664 = vmatprep.subr.bf16.mxu0 %v2117
    %3665 = vmatpush1.bf16.msra.mxu0 %v2116
    %3666 = vmatprep.subr.bf16.mxu0 %v2121
    %3667 = vmatpush1.bf16.msra.mxu0 %v2120
    %3668 = vmatprep.subr.bf16.mxu0 %v2125
    %3669 = vmatpush1.bf16.msra.mxu0 %v2124
    %3670 = vmatprep.subr.bf16.mxu0 %v2129
    %3671 = vmatpush1.bf16.msra.mxu0 %v2128
    %3672 = vmatprep.subr.bf16.mxu0 %v2133
    %3673 = vmatpush1.bf16.msra.mxu0 %v2132
    %3674 = vmatprep.subr.bf16.mxu0 %v2137
    %3675 = vmatpush1.bf16.msra.mxu0 %v2136
    %3676 = vmatprep.subr.bf16.mxu0 %v2141
    %3677 = vmatpush1.bf16.msra.mxu0 %v2140
    %3678 = vmatprep.subr.bf16.mxu0 %v2145
    %3679 = vmatpush1.bf16.msra.mxu0 %v2144
    %3680 = vmatprep.subr.bf16.mxu0 %v2149
    %3681 = vmatpush1.bf16.msra.mxu0 %v2148
    %3682 = vmatprep.subr.bf16.mxu0 %v2153
    %3683 = vmatpush1.bf16.msra.mxu0 %v2152
    %3684 = vmatprep.subr.bf16.mxu0 %v2157
    %3685 = vmatpush1.bf16.msra.mxu0 %v2156
    %3686 = vmatprep.subr.bf16.mxu0 %v2161
    %3687 = vmatpush1.bf16.msra.mxu0 %v2160
    %3688 = vmatprep.mubr.bf16.mxu0 %v3655
    %3689 = vmatmul.mubr.bf16.gmra.mrb[0].mxu0 %v3654
    %v3690 = vpop.f32.mrb[0].mxu0
    %v3691 = vadd.f32 %v1611, %v3690
    %v3692 = vpop.f32.mrb[0].mxu0
    %v3693 = vadd.f32 %v1615, %v3692
    %v3694 = vpop.f32.mrb[0].mxu0
    %v3695 = vpop.f32.mrb[0].mxu0
    %3696 = vdwg.mxu0
    %3697 = vmatprep.subr.bf16.mxu0 %v2103
    %3698 = vmatpush1.bf16.msra.mxu0 %v2102
    %3699 = vmatprep.subr.bf16.mxu0 %v2107
    %3700 = vmatpush1.bf16.msra.mxu0 %v2106
    %3701 = vmatprep.subr.bf16.mxu0 %v2111
    %3702 = vmatpush1.bf16.msra.mxu0 %v2110
    %3703 = vmatprep.subr.bf16.mxu0 %v2115
    %3704 = vmatpush1.bf16.msra.mxu0 %v2114
    %3705 = vmatprep.subr.bf16.mxu0 %v2119
    %3706 = vmatpush1.bf16.msra.mxu0 %v2118
    %3707 = vmatprep.subr.bf16.mxu0 %v2123
    %3708 = vmatpush1.bf16.msra.mxu0 %v2122
    %3709 = vmatprep.subr.bf16.mxu0 %v2127
    %3710 = vmatpush1.bf16.msra.mxu0 %v2126
    %3711 = vmatprep.subr.bf16.mxu0 %v2131
    %3712 = vmatpush1.bf16.msra.mxu0 %v2130
    %3713 = vmatprep.subr.bf16.mxu0 %v2135
    %3714 = vmatpush1.bf16.msra.mxu0 %v2134
    %3715 = vmatprep.subr.bf16.mxu0 %v2139
    %3716 = vmatpush1.bf16.msra.mxu0 %v2138
    %3717 = vmatprep.subr.bf16.mxu0 %v2143
    %3718 = vmatpush1.bf16.msra.mxu0 %v2142
    %3719 = vmatprep.subr.bf16.mxu0 %v2147
    %3720 = vmatpush1.bf16.msra.mxu0 %v2146
    %3721 = vmatprep.subr.bf16.mxu0 %v2151
    %3722 = vmatpush1.bf16.msra.mxu0 %v2150
    %3723 = vmatprep.subr.bf16.mxu0 %v2155
    %3724 = vmatpush1.bf16.msra.mxu0 %v2154
    %3725 = vmatprep.subr.bf16.mxu0 %v2159
    %3726 = vmatpush1.bf16.msra.mxu0 %v2158
    %3727 = vmatprep.subr.bf16.mxu0 %v2163
    %3728 = vmatpush1.bf16.msra.mxu0 %v2162
    %3729 = vmatprep.mubr.bf16.mxu0 %v3655
    %3730 = vmatmul.mubr.bf16.gmra.mrb[0].mxu0 %v3654
    %v3731 = vpop.f32.mrb[0].mxu0
    %v3732 = vadd.f32 %v1619, %v3731
    %v3733 = vpop.f32.mrb[0].mxu0
    %v3734 = vadd.f32 %v1623, %v3733
    %v3735 = vpop.f32.mrb[0].mxu0
    %v3736 = vpop.f32.mrb[0].mxu0
    %3737 = vdwg.mxu0
    %v3738 = vxor.u32 %v3691, 2147483648
    %v3739 = vmul.f32 %v3738, 1.442695
    %v3740 = vpow.pop %v3739
    %v3741 = vadd.f32 %v3740, 1.0
    %v3742 = vrcp.pop %v3741
    %v3743 = vmul.f32 1.0, %v3742
    %v3744 = vxor.u32 %v3693, 2147483648
    %v3745 = vmul.f32 %v3744, 1.442695
    %v3746 = vpow.pop %v3745
    %v3747 = vadd.f32 %v3746, 1.0
    %v3748 = vrcp.pop %v3747
    %v3749 = vmul.f32 1.0, %v3748
    %v3750 = vmul.f32 %v3743, %v3734
    %v3751 = vadd.f32 %v3732, %v3750
    %v3752 = vtanh.pop %v3751
    %v3753 = vsub.f32 1.0, %v3749
    %v3754 = vmul.f32 %v3753, %v3752
    %v3755 = vmul.f32 %v3749, %v3518
    %v3756 = vadd.f32 %v3754, %v3755
    %v3757 = vld [vmem:[#allocation4 + $0x30] sm:$0xff]
    %3758 = vadd.xlane.f32.xlu0 %v3756
    %v3759 = vpop.xlane.xlu0 %3758
    %v3760 = vmul.f32 %v3759, %v1894
    %v3761 = vsub.f32 %v3756, %v3760
    %v3762 = vmul.f32 %v3761, %v3761
    %3763 = vadd.xlane.f32.xlu0 %v3762
    %v3764 = vpop.xlane.xlu0 %3763
    %v3765 = vmul.f32 %v3764, %v1894
    %v3766 = vadd.f32 %v3765, 1e-05
    %v3767 = vrsqrt.pop %v3766
    %v3768 = vmul.f32 %v3761, %v3767
    %v3769 = vmul.f32 %v3768, %v1649
    %v3770 = vadd.f32 %v3769, %v1657
    %v3771 = vadd.f32 %v3757, %v3770
    %3772 = vst [vmem:[#allocation4 + $0x30] sm:$0xff] %v3771
    %v3773 = vld [vmem:[#allocation3 + $0xa8] sm:$0xff]
    %v3774 = vld [vmem:[#allocation3 + $0xb0] sm:$0xff]
    %v3775 = vld [vmem:[#allocation3 + $0xb8] sm:$0xff]
    %v3776 = vpack.c.bf16 %v3640, %v3640
    %3777 = vmatprep.subr.bf16.mxu0 %v1743
    %3778 = vmatpush1.bf16.msra.mxu0 %v1742
    %3779 = vmatprep.subr.bf16.mxu0 %v1746
    %3780 = vmatpush1.bf16.msra.mxu0 %v1745
    %3781 = vmatprep.subr.bf16.mxu0 %v1749
    %3782 = vmatpush1.bf16.msra.mxu0 %v1748
    %3783 = vmatprep.subr.bf16.mxu0 %v1752
    %3784 = vmatpush1.bf16.msra.mxu0 %v1751
    %3785 = vmatprep.subr.bf16.mxu0 %v1755
    %3786 = vmatpush1.bf16.msra.mxu0 %v1754
    %3787 = vmatprep.subr.bf16.mxu0 %v1758
    %3788 = vmatpush1.bf16.msra.mxu0 %v1757
    %3789 = vmatprep.subr.bf16.mxu0 %v1761
    %3790 = vmatpush1.bf16.msra.mxu0 %v1760
    %3791 = vmatprep.subr.bf16.mxu0 %v1764
    %3792 = vmatpush1.bf16.msra.mxu0 %v1763
    %3793 = vmatprep.subr.bf16.mxu0 0
    %3794 = vmatpush1.bf16.msra.mxu0 0
    %3795 = vmatprep.subr.bf16.mxu0 0
    %3796 = vmatpush1.bf16.msra.mxu0 0
    %3797 = vmatprep.subr.bf16.mxu0 0
    %3798 = vmatpush1.bf16.msra.mxu0 0
    %3799 = vmatprep.subr.bf16.mxu0 0
    %3800 = vmatpush1.bf16.msra.mxu0 0
    %3801 = vmatprep.subr.bf16.mxu0 0
    %3802 = vmatpush1.bf16.msra.mxu0 0
    %3803 = vmatprep.subr.bf16.mxu0 0
    %3804 = vmatpush1.bf16.msra.mxu0 0
    %3805 = vmatprep.subr.bf16.mxu0 0
    %3806 = vmatpush1.bf16.msra.mxu0 0
    %3807 = vmatprep.subr.bf16.mxu0 0
    %3808 = vmatpush1.bf16.msra.mxu0 0
    %3809 = vmatprep.mubr.bf16.mxu0 0
    %3810 = vmatmul.mubr.bf16.gmra.mrb[0].mxu0 %v3776
    %v3811 = vpop.f32.mrb[0].mxu0
    %v3812 = vadd.f32 %v1594, %v3811
    %v3813 = vpop.f32.mrb[0].mxu0
    %v3814 = vadd.f32 %v1598, %v3813
    %v3815 = vpop.f32.mrb[0].mxu0
    %v3816 = vpop.f32.mrb[0].mxu0
    %3817 = vdwg.mxu0
    %3818 = vmatprep.subr.bf16.mxu0 0
    %3819 = vmatpush1.bf16.msra.mxu0 %v1744
    %3820 = vmatprep.subr.bf16.mxu0 0
    %3821 = vmatpush1.bf16.msra.mxu0 %v1747
    %3822 = vmatprep.subr.bf16.mxu0 0
    %3823 = vmatpush1.bf16.msra.mxu0 %v1750
    %3824 = vmatprep.subr.bf16.mxu0 0
    %3825 = vmatpush1.bf16.msra.mxu0 %v1753
    %3826 = vmatprep.subr.bf16.mxu0 0
    %3827 = vmatpush1.bf16.msra.mxu0 %v1756
    %3828 = vmatprep.subr.bf16.mxu0 0
    %3829 = vmatpush1.bf16.msra.mxu0 %v1759
    %3830 = vmatprep.subr.bf16.mxu0 0
    %3831 = vmatpush1.bf16.msra.mxu0 %v1762
    %3832 = vmatprep.subr.bf16.mxu0 0
    %3833 = vmatpush1.bf16.msra.mxu0 %v1765
    %3834 = vmatprep.subr.bf16.mxu0 0
    %3835 = vmatpush1.bf16.msra.mxu0 0
    %3836 = vmatprep.subr.bf16.mxu0 0
    %3837 = vmatpush1.bf16.msra.mxu0 0
    %3838 = vmatprep.subr.bf16.mxu0 0
    %3839 = vmatpush1.bf16.msra.mxu0 0
    %3840 = vmatprep.subr.bf16.mxu0 0
    %3841 = vmatpush1.bf16.msra.mxu0 0
    %3842 = vmatprep.subr.bf16.mxu0 0
    %3843 = vmatpush1.bf16.msra.mxu0 0
    %3844 = vmatprep.subr.bf16.mxu0 0
    %3845 = vmatpush1.bf16.msra.mxu0 0
    %3846 = vmatprep.subr.bf16.mxu0 0
    %3847 = vmatpush1.bf16.msra.mxu0 0
    %3848 = vmatprep.subr.bf16.mxu0 0
    %3849 = vmatpush1.bf16.msra.mxu0 0
    %3850 = vmatprep.mubr.bf16.mxu0 0
    %3851 = vmatmul.mubr.bf16.gmra.mrb[0].mxu0 %v3776
    %v3852 = vpop.f32.mrb[0].mxu0
    %v3853 = vadd.f32 %v1602, %v3852
    %v3854 = vpop.f32.mrb[0].mxu0
    %v3855 = vpop.f32.mrb[0].mxu0
    %v3856 = vpop.f32.mrb[0].mxu0
    %3857 = vdwg.mxu0
    %v3858 = vadd.f32 %v3773, %v3812
    %v3859 = vxor.u32 %v3858, 2147483648
    %v3860 = vmul.f32 %v3859, 1.442695
    %v3861 = vpow.pop %v3860
    %v3862 = vadd.f32 %v3861, 1.0
    %v3863 = vrcp.pop %v3862
    %v3864 = vmul.f32 1.0, %v3863
    %v3865 = vadd.f32 %v3774, %v3814
    %v3866 = vxor.u32 %v3865, 2147483648
    %v3867 = vmul.f32 %v3866, 1.442695
    %v3868 = vpow.pop %v3867
    %v3869 = vadd.f32 %v3868, 1.0
    %v3870 = vrcp.pop %v3869
    %v3871 = vmul.f32 1.0, %v3870
    %v3872 = vmul.f32 %v3864, %v3853
    %v3873 = vadd.f32 %v3775, %v3872
    %v3874 = vtanh.pop %v3873
    %v3875 = vsub.f32 1.0, %v3871
    %v3876 = vmul.f32 %v3875, %v3874
    %v3877 = vmul.f32 %v3871, %v3640
    %v3878 = vadd.f32 %v3876, %v3877
    %3879 = vadd.xlane.f32.xlu0 %v3878
    %v3880 = vpop.xlane.xlu0 %3879
    %v3881 = vmul.f32 %v3880, %v1894
    %v3882 = vsub.f32 %v3878, %v3881
    %v3883 = vmul.f32 %v3882, %v3882
    %3884 = vadd.xlane.f32.xlu0 %v3883
    %v3885 = vpop.xlane.xlu0 %3884
    %v3886 = vmul.f32 %v3885, %v1894
    %v3887 = vadd.f32 %v3886, 1e-05
    %v3888 = vrsqrt.pop %v3887
    %v3889 = vmul.f32 %v3882, %v3888
    %v3890 = vmul.f32 %v3889, %v1633
    %v3891 = vadd.f32 %v3890, %v1641
    %v3892 = vpack.c.bf16 %v3891, %v3891
    %v3893 = vpack.c.bf16 %v3756, %v3756
    %3894 = vmatprep.subr.bf16.mxu0 %v2101
    %3895 = vmatpush1.bf16.msra.mxu0 %v2100
    %3896 = vmatprep.subr.bf16.mxu0 %v2105
    %3897 = vmatpush1.bf16.msra.mxu0 %v2104
    %3898 = vmatprep.subr.bf16.mxu0 %v2109
    %3899 = vmatpush1.bf16.msra.mxu0 %v2108
    %3900 = vmatprep.subr.bf16.mxu0 %v2113
    %3901 = vmatpush1.bf16.msra.mxu0 %v2112
    %3902 = vmatprep.subr.bf16.mxu0 %v2117
    %3903 = vmatpush1.bf16.msra.mxu0 %v2116
    %3904 = vmatprep.subr.bf16.mxu0 %v2121
    %3905 = vmatpush1.bf16.msra.mxu0 %v2120
    %3906 = vmatprep.subr.bf16.mxu0 %v2125
    %3907 = vmatpush1.bf16.msra.mxu0 %v2124
    %3908 = vmatprep.subr.bf16.mxu0 %v2129
    %3909 = vmatpush1.bf16.msra.mxu0 %v2128
    %3910 = vmatprep.subr.bf16.mxu0 %v2133
    %3911 = vmatpush1.bf16.msra.mxu0 %v2132
    %3912 = vmatprep.subr.bf16.mxu0 %v2137
    %3913 = vmatpush1.bf16.msra.mxu0 %v2136
    %3914 = vmatprep.subr.bf16.mxu0 %v2141
    %3915 = vmatpush1.bf16.msra.mxu0 %v2140
    %3916 = vmatprep.subr.bf16.mxu0 %v2145
    %3917 = vmatpush1.bf16.msra.mxu0 %v2144
    %3918 = vmatprep.subr.bf16.mxu0 %v2149
    %3919 = vmatpush1.bf16.msra.mxu0 %v2148
    %3920 = vmatprep.subr.bf16.mxu0 %v2153
    %3921 = vmatpush1.bf16.msra.mxu0 %v2152
    %3922 = vmatprep.subr.bf16.mxu0 %v2157
    %3923 = vmatpush1.bf16.msra.mxu0 %v2156
    %3924 = vmatprep.subr.bf16.mxu0 %v2161
    %3925 = vmatpush1.bf16.msra.mxu0 %v2160
    %3926 = vmatprep.mubr.bf16.mxu0 %v3893
    %3927 = vmatmul.mubr.bf16.gmra.mrb[0].mxu0 %v3892
    %v3928 = vpop.f32.mrb[0].mxu0
    %v3929 = vadd.f32 %v1611, %v3928
    %v3930 = vpop.f32.mrb[0].mxu0
    %v3931 = vadd.f32 %v1615, %v3930
    %v3932 = vpop.f32.mrb[0].mxu0
    %v3933 = vpop.f32.mrb[0].mxu0
    %3934 = vdwg.mxu0
    %3935 = vmatprep.subr.bf16.mxu0 %v2103
    %3936 = vmatpush1.bf16.msra.mxu0 %v2102
    %3937 = vmatprep.subr.bf16.mxu0 %v2107
    %3938 = vmatpush1.bf16.msra.mxu0 %v2106
    %3939 = vmatprep.subr.bf16.mxu0 %v2111
    %3940 = vmatpush1.bf16.msra.mxu0 %v2110
    %3941 = vmatprep.subr.bf16.mxu0 %v2115
    %3942 = vmatpush1.bf16.msra.mxu0 %v2114
    %3943 = vmatprep.subr.bf16.mxu0 %v2119
    %3944 = vmatpush1.bf16.msra.mxu0 %v2118
    %3945 = vmatprep.subr.bf16.mxu0 %v2123
    %3946 = vmatpush1.bf16.msra.mxu0 %v2122
    %3947 = vmatprep.subr.bf16.mxu0 %v2127
    %3948 = vmatpush1.bf16.msra.mxu0 %v2126
    %3949 = vmatprep.subr.bf16.mxu0 %v2131
    %3950 = vmatpush1.bf16.msra.mxu0 %v2130
    %3951 = vmatprep.subr.bf16.mxu0 %v2135
    %3952 = vmatpush1.bf16.msra.mxu0 %v2134
    %3953 = vmatprep.subr.bf16.mxu0 %v2139
    %3954 = vmatpush1.bf16.msra.mxu0 %v2138
    %3955 = vmatprep.subr.bf16.mxu0 %v2143
    %3956 = vmatpush1.bf16.msra.mxu0 %v2142
    %3957 = vmatprep.subr.bf16.mxu0 %v2147
    %3958 = vmatpush1.bf16.msra.mxu0 %v2146
    %3959 = vmatprep.subr.bf16.mxu0 %v2151
    %3960 = vmatpush1.bf16.msra.mxu0 %v2150
    %3961 = vmatprep.subr.bf16.mxu0 %v2155
    %3962 = vmatpush1.bf16.msra.mxu0 %v2154
    %3963 = vmatprep.subr.bf16.mxu0 %v2159
    %3964 = vmatpush1.bf16.msra.mxu0 %v2158
    %3965 = vmatprep.subr.bf16.mxu0 %v2163
    %3966 = vmatpush1.bf16.msra.mxu0 %v2162
    %3967 = vmatprep.mubr.bf16.mxu0 %v3893
    %3968 = vmatmul.mubr.bf16.gmra.mrb[0].mxu0 %v3892
    %v3969 = vpop.f32.mrb[0].mxu0
    %v3970 = vadd.f32 %v1619, %v3969
    %v3971 = vpop.f32.mrb[0].mxu0
    %v3972 = vadd.f32 %v1623, %v3971
    %v3973 = vpop.f32.mrb[0].mxu0
    %v3974 = vpop.f32.mrb[0].mxu0
    %3975 = vdwg.mxu0
    %v3976 = vxor.u32 %v3929, 2147483648
    %v3977 = vmul.f32 %v3976, 1.442695
    %v3978 = vpow.pop %v3977
    %v3979 = vadd.f32 %v3978, 1.0
    %v3980 = vrcp.pop %v3979
    %v3981 = vmul.f32 1.0, %v3980
    %v3982 = vxor.u32 %v3931, 2147483648
    %v3983 = vmul.f32 %v3982, 1.442695
    %v3984 = vpow.pop %v3983
    %v3985 = vadd.f32 %v3984, 1.0
    %v3986 = vrcp.pop %v3985
    %v3987 = vmul.f32 1.0, %v3986
    %v3988 = vmul.f32 %v3981, %v3972
    %v3989 = vadd.f32 %v3970, %v3988
    %v3990 = vtanh.pop %v3989
    %v3991 = vsub.f32 1.0, %v3987
    %v3992 = vmul.f32 %v3991, %v3990
    %v3993 = vmul.f32 %v3987, %v3756
    %v3994 = vadd.f32 %v3992, %v3993
    %v3995 = vld [vmem:[#allocation4 + $0x38] sm:$0xff]
    %3996 = vadd.xlane.f32.xlu0 %v3994
    %v3997 = vpop.xlane.xlu0 %3996
    %v3998 = vmul.f32 %v3997, %v1894
    %v3999 = vsub.f32 %v3994, %v3998
    %v4000 = vmul.f32 %v3999, %v3999
    %4001 = vadd.xlane.f32.xlu0 %v4000
    %v4002 = vpop.xlane.xlu0 %4001
    %v4003 = vmul.f32 %v4002, %v1894
    %v4004 = vadd.f32 %v4003, 1e-05
    %v4005 = vrsqrt.pop %v4004
    %v4006 = vmul.f32 %v3999, %v4005
    %v4007 = vmul.f32 %v4006, %v1649
    %v4008 = vadd.f32 %v4007, %v1657
    %v4009 = vadd.f32 %v3995, %v4008
    %4010 = vst [vmem:[#allocation4 + $0x38] sm:$0xff] %v4009
    %v4011 = vld [vmem:[#allocation4] sm:$0xff]
    %v4012 = vld [vmem:[#allocation4 + $0x8] sm:$0xff]
    %v4013 = vld [vmem:[#allocation4 + $0x10] sm:$0xff]
    %v4014 = vld [vmem:[#allocation4 + $0x18] sm:$0xff]
    %v4015 = vld [vmem:[#allocation4 + $0x20] sm:$0xff]
    %v4016 = vld [vmem:[#allocation4 + $0x28] sm:$0xff]
    %v4017 = vld [vmem:[#allocation4 + $0x30] sm:$0xff]
    %v4018 = vld [vmem:[#allocation4 + $0x38] sm:$0xff]
    %v4019 = vld [vmem:[%s12] sm:$0xf]
    %v4020 = vld [vmem:[%s12 + $0x4] sm:$0xf]
    %v4021 = vld [vmem:[%s12 + $0x8] sm:$0xf]
    %v4022 = vld [vmem:[%s12 + $0xc] sm:$0xf]
    %v4023 = vld [vmem:[%s12 + $0x10] sm:$0xf]
    %v4024 = vld [vmem:[%s12 + $0x14] sm:$0xf]
    %v4025 = vld [vmem:[%s12 + $0x18] sm:$0xf]
    %v4026 = vld [vmem:[%s12 + $0x1c] sm:$0xf]
    %v4027 = vld [vmem:[%s12 + $0x20] sm:$0xf]
    %v4028 = vld [vmem:[%s12 + $0x24] sm:$0xf]
    %v4029 = vld [vmem:[%s12 + $0x28] sm:$0xf]
    %v4030 = vld [vmem:[%s12 + $0x2c] sm:$0xf]
    %v4031 = vld [vmem:[%s12 + $0x30] sm:$0xf]
    %v4032 = vld [vmem:[%s12 + $0x34] sm:$0xf]
    %v4033 = vld [vmem:[%s12 + $0x38] sm:$0xf]
    %v4034 = vld [vmem:[%s12 + $0x3c] sm:$0xf]
    %v4035 = vpack.c.bf16 %v4012, %v4011
    %v4036 = vpack.c.bf16 %v4014, %v4013
    %v4037 = vpack.c.bf16 %v4016, %v4015
    %v4038 = vpack.c.bf16 %v4018, %v4017
    %v4039 = vld [vmem:[%s13] sm:$0x1]
    %v4041 = vlaneseq
    %v4042 = vshrl.u32 %v4041, 7
    %v4043 = vsub.s32 0, %v4042
    %v4044 = vrot.slane %v4039, %v4043
    %v4062 = vunpack.c.l.b16 %v4019
    %v4063 = vunpack.c.l.b16 %v4020
    %v4064 = vunpack.c.l.b16 %v4021
    %v4065 = vunpack.c.l.b16 %v4022
    %v4066 = vunpack.c.l.b16 %v4023
    %v4067 = vunpack.c.l.b16 %v4024
    %v4068 = vunpack.c.l.b16 %v4025
    %v4069 = vunpack.c.l.b16 %v4026
    %v4070 = vunpack.c.l.b16 %v4027
    %v4071 = vunpack.c.l.b16 %v4028
    %v4072 = vunpack.c.l.b16 %v4029
    %v4073 = vunpack.c.l.b16 %v4030
    %v4074 = vunpack.c.l.b16 %v4031
    %v4075 = vunpack.c.l.b16 %v4032
    %v4076 = vunpack.c.l.b16 %v4033
    %v4077 = vunpack.c.l.b16 %v4034
    %v4078 = vpack.c.b16 %v4063, %v4062
    %v4079 = vpack.c.b16 %v4065, %v4064
    %v4080 = vpack.c.b16 %v4067, %v4066
    %v4081 = vpack.c.b16 %v4069, %v4068
    %v4082 = vpack.c.b16 %v4071, %v4070
    %v4083 = vpack.c.b16 %v4073, %v4072
    %v4084 = vpack.c.b16 %v4075, %v4074
    %v4085 = vpack.c.b16 %v4077, %v4076
    %4094 = vmatprep.subr.bf16.mxu0 0
    %4095 = vmatpush1.bf16.msra.mxu0 %v4078
    %4096 = vmatprep.subr.bf16.mxu0 0
    %4097 = vmatpush1.bf16.msra.mxu0 %v4079
    %4098 = vmatprep.subr.bf16.mxu0 0
    %4099 = vmatpush1.bf16.msra.mxu0 %v4080
    %4100 = vmatprep.subr.bf16.mxu0 0
    %4101 = vmatpush1.bf16.msra.mxu0 %v4081
    %4102 = vmatprep.subr.bf16.mxu0 0
    %4103 = vmatpush1.bf16.msra.mxu0 %v4082
    %4104 = vmatprep.subr.bf16.mxu0 0
    %4105 = vmatpush1.bf16.msra.mxu0 %v4083
    %4106 = vmatprep.subr.bf16.mxu0 0
    %4107 = vmatpush1.bf16.msra.mxu0 %v4084
    %4108 = vmatprep.subr.bf16.mxu0 0
    %4109 = vmatpush1.bf16.msra.mxu0 %v4085
    %4110 = vmatprep.subr.bf16.mxu0 0
    %4111 = vmatpush1.bf16.msra.mxu0 0
    %4112 = vmatprep.subr.bf16.mxu0 0
    %4113 = vmatpush1.bf16.msra.mxu0 0
    %4114 = vmatprep.subr.bf16.mxu0 0
    %4115 = vmatpush1.bf16.msra.mxu0 0
    %4116 = vmatprep.subr.bf16.mxu0 0
    %4117 = vmatpush1.bf16.msra.mxu0 0
    %4118 = vmatprep.subr.bf16.mxu0 0
    %4119 = vmatpush1.bf16.msra.mxu0 0
    %4120 = vmatprep.subr.bf16.mxu0 0
    %4121 = vmatpush1.bf16.msra.mxu0 0
    %4122 = vmatprep.subr.bf16.mxu0 0
    %4123 = vmatpush1.bf16.msra.mxu0 0
    %4124 = vmatprep.subr.bf16.mxu0 0
    %4125 = vmatpush1.bf16.msra.mxu0 0
    %4126 = vmatprep.mubr.bf16.mxu0 0
    %4127 = vmatmul.mubr.bf16.gmra.mrb[0].mxu0 %v4035
    %v4128 = vpop.f32.mrb[0].mxu0
    %v4129 = vadd.f32 %v4044, %v4128
    %v4130 = vpop.f32.mrb[0].mxu0
    %v4131 = vpop.f32.mrb[0].mxu0
    %v4132 = vadd.f32 %v4044, %v4131
    %v4133 = vpop.f32.mrb[0].mxu0
    %4134 = vmatprep.mubr.bf16.mxu0 0
    %4135 = vmatmul.mubr.bf16.gmra.mrb[0].mxu0 %v4036
    %v4136 = vpop.f32.mrb[0].mxu0
    %v4137 = vadd.f32 %v4044, %v4136
    %v4138 = vpop.f32.mrb[0].mxu0
    %v4139 = vpop.f32.mrb[0].mxu0
    %v4140 = vadd.f32 %v4044, %v4139
    %v4141 = vpop.f32.mrb[0].mxu0
    %4142 = vmatprep.mubr.bf16.mxu0 0
    %4143 = vmatmul.mubr.bf16.gmra.mrb[0].mxu0 %v4037
    %v4144 = vpop.f32.mrb[0].mxu0
    %v4145 = vadd.f32 %v4044, %v4144
    %v4146 = vpop.f32.mrb[0].mxu0
    %v4147 = vpop.f32.mrb[0].mxu0
    %v4148 = vadd.f32 %v4044, %v4147
    %v4149 = vpop.f32.mrb[0].mxu0
    %4150 = vmatprep.mubr.bf16.mxu0 0
    %4151 = vmatmul.mubr.bf16.gmra.mrb[0].mxu0 %v4038
    %v4152 = vpop.f32.mrb[0].mxu0
    %v4153 = vadd.f32 %v4044, %v4152
    %v4154 = vpop.f32.mrb[0].mxu0
    %v4155 = vpop.f32.mrb[0].mxu0
    %v4156 = vadd.f32 %v4044, %v4155
    %v4157 = vpop.f32.mrb[0].mxu0
    %4158 = vdwg.mxu0
    %v4159 = vxor.u32 %v4129, 2147483648
    %v4160 = vxor.u32 %v4132, 2147483648
    %v4161 = vxor.u32 %v4137, 2147483648
    %v4162 = vxor.u32 %v4140, 2147483648
    %v4163 = vxor.u32 %v4145, 2147483648
    %v4164 = vxor.u32 %v4148, 2147483648
    %v4165 = vxor.u32 %v4153, 2147483648
    %v4166 = vxor.u32 %v4156, 2147483648
    %v4167 = vmul.f32 %v4159, 1.442695
    %v4168 = vpow.pop %v4167
    %v4169 = vmul.f32 %v4160, 1.442695
    %v4170 = vpow.pop %v4169
    %v4171 = vmul.f32 %v4161, 1.442695
    %v4172 = vpow.pop %v4171
    %v4173 = vmul.f32 %v4162, 1.442695
    %v4174 = vpow.pop %v4173
    %v4175 = vmul.f32 %v4163, 1.442695
    %v4176 = vpow.pop %v4175
    %v4177 = vmul.f32 %v4164, 1.442695
    %v4178 = vpow.pop %v4177
    %v4179 = vmul.f32 %v4165, 1.442695
    %v4180 = vpow.pop %v4179
    %v4181 = vmul.f32 %v4166, 1.442695
    %v4182 = vpow.pop %v4181
    %v4183 = vadd.f32 %v4168, 1.0
    %v4184 = vadd.f32 %v4170, 1.0
    %v4185 = vadd.f32 %v4172, 1.0
    %v4186 = vadd.f32 %v4174, 1.0
    %v4187 = vadd.f32 %v4176, 1.0
    %v4188 = vadd.f32 %v4178, 1.0
    %v4189 = vadd.f32 %v4180, 1.0
    %v4190 = vadd.f32 %v4182, 1.0
    %v4191 = vrcp.pop %v4183
    %v4192 = vmul.f32 1.0, %v4191
    %v4193 = vrcp.pop %v4184
    %v4194 = vmul.f32 1.0, %v4193
    %v4195 = vrcp.pop %v4185
    %v4196 = vmul.f32 1.0, %v4195
    %v4197 = vrcp.pop %v4186
    %v4198 = vmul.f32 1.0, %v4197
    %v4199 = vrcp.pop %v4187
    %v4200 = vmul.f32 1.0, %v4199
    %v4201 = vrcp.pop %v4188
    %v4202 = vmul.f32 1.0, %v4201
    %v4203 = vrcp.pop %v4189
    %v4204 = vmul.f32 1.0, %v4203
    %v4205 = vrcp.pop %v4190
    %v4206 = vmul.f32 1.0, %v4205
    %4207 = vst [vmem:[%s14] sm:$0xff] %v4192
    %4208 = vst [vmem:[%s14 + $0x8] sm:$0xff] %v4194
    %4209 = vst [vmem:[%s14 + $0x10] sm:$0xff] %v4196
    %4210 = vst [vmem:[%s14 + $0x18] sm:$0xff] %v4198
    %4211 = vst [vmem:[%s14 + $0x20] sm:$0xff] %v4200
    %4212 = vst [vmem:[%s14 + $0x28] sm:$0xff] %v4202
    %4213 = vst [vmem:[%s14 + $0x30] sm:$0xff] %v4204
    %4214 = vst [vmem:[%s14 + $0x38] sm:$0xff] %v4206
    // Predicated region
    $region90: #{unet2_forward.1} parent=1 // pred_check
      _
    $region91: #{unet2_forward.1} parent=1 // pred_check_branch
      %4216 = sbr.rel (0) target = $region93
    $region92: #{unet2_forward.1} parent=1 // pred_region
      _
    $region93: #{unet2_forward.1} parent=1 // pred_fallthru
      _
    // Predicated region
    $region94: #{unet2_forward.1} parent=1 // pred_check
      _
    $region95: #{unet2_forward.1} parent=1 // pred_check_branch
      %4218 = sbr.rel (0) target = $region97
    $region96: #{unet2_forward.1} parent=1 // pred_region
      _
    $region97: #{unet2_forward.1} parent=1 // pred_fallthru
      _
    %4219 = vsyncpa [#allocation6], 1
    %4220 = vsyncpa [#allocation8], 1
    %4221 = vsyncpa [#allocation11], 1
    %4222 = vsyncpa [#allocation14], 1
    %4223 = vsyncpa [#allocation17], 1

</llo_original>
